<compile_context>
chip_gen: v7x
topology: tpu7x:2x2x1
jax: 0.10.0
libtpu: 0.0.40
codegen_flags: <defaults>
</compile_context>

<pallas_src>
import functools

import jax
import jax.numpy as jnp
from jax import lax
from jax.experimental import pallas as pl
from jax.experimental.pallas import tpu as pltpu


def _round_up(x, m):
    return (x + m - 1) // m * m


def pixel_effect_kernel(rgb_ref, idx_ref, b_ref, out_ref, *,
                        num_bins, K, S, rpp, t_ho, tile_wo, chunk_w_in, n_wc):
    # rgb_ref : [3, S*rpp, Wp_in]  bf16  phase-major rows (zero padded)
    # idx_ref : [S*rpp, Wp_in]     int8  intensity bin per pixel (-1 in padding)
    # b_ref   : [chunk_w_in, tile_wo] bf16 banded column window-sum matrix
    # out_ref : [3, t_ho, n_wc*tile_wo] bf16 strided-conv resolution output
    b_mat = b_ref[...]

    for c in range(n_wc):                       # static column-chunk loop
        c0 = c * tile_wo * S                    # static, 128-aligned input offset

        def bin_body(z, carry):
            cmax, rsel, gsel, bsel = carry
            cnt_rows = jnp.zeros((t_ho, chunk_w_in), jnp.float32)
            r_rows = jnp.zeros((t_ho, chunk_w_in), jnp.float32)
            g_rows = jnp.zeros((t_ho, chunk_w_in), jnp.float32)
            b_rows = jnp.zeros((t_ho, chunk_w_in), jnp.float32)
            # Row window-sum: K contiguous slice adds (phase-major layout makes
            # the stride-S access contiguous) -> replaces the dense A matmul.
            for d in range(K):
                r_lo = (d % S) * rpp + (d // S)     # static offsets
                idx_d = idx_ref[r_lo:r_lo + t_ho, c0:c0 + chunk_w_in]
                m = idx_d.astype(jnp.int32) == z
                cnt_rows = cnt_rows + m.astype(jnp.float32)
                r_rows = r_rows + jnp.where(
                    m, rgb_ref[0, r_lo:r_lo + t_ho, c0:c0 + chunk_w_in].astype(jnp.float32), 0.0)
                g_rows = g_rows + jnp.where(
                    m, rgb_ref[1, r_lo:r_lo + t_ho, c0:c0 + chunk_w_in].astype(jnp.float32), 0.0)
                b_rows = b_rows + jnp.where(
                    m, rgb_ref[2, r_lo:r_lo + t_ho, c0:c0 + chunk_w_in].astype(jnp.float32), 0.0)
            # Column window-sum: 4 small bf16 MXU matmuls with f32 accumulation.
            cnt = jnp.dot(cnt_rows.astype(jnp.bfloat16), b_mat, preferred_element_type=jnp.float32)
            rs = jnp.dot(r_rows.astype(jnp.bfloat16), b_mat, preferred_element_type=jnp.float32)
            gs = jnp.dot(g_rows.astype(jnp.bfloat16), b_mat, preferred_element_type=jnp.float32)
            bs = jnp.dot(b_rows.astype(jnp.bfloat16), b_mat, preferred_element_type=jnp.float32)
            upd = cnt > cmax                    # strict ">" == torch first-max tie-break
            return (jnp.where(upd, cnt, cmax), jnp.where(upd, rs, rsel),
                    jnp.where(upd, gs, gsel), jnp.where(upd, bs, bsel))

        init = (jnp.full((t_ho, tile_wo), -1.0, jnp.float32),
                jnp.zeros((t_ho, tile_wo), jnp.float32),
                jnp.zeros((t_ho, tile_wo), jnp.float32),
                jnp.zeros((t_ho, tile_wo), jnp.float32))
        cmax, rsel, gsel, bsel = lax.fori_loop(
            0, num_bins, bin_body, init,
            unroll=(num_bins if num_bins <= 8 else 2))

        # Every real output window contains >= 1 pixel, so the clamp only
        # sanitizes the padded (cropped) region; approx recip -> idle EUP slot.
        inv = pl.reciprocal(jnp.maximum(cmax, 1.0), approx=True)
        j0 = c * tile_wo
        out_ref[0, :, j0:j0 + tile_wo] = (rsel * inv).astype(out_ref.dtype)
        out_ref[1, :, j0:j0 + tile_wo] = (gsel * inv).astype(out_ref.dtype)
        out_ref[2, :, j0:j0 + tile_wo] = (bsel * inv).astype(out_ref.dtype)


def pixel_effect(rgb, param_num_bins, param_kernel_size, param_pixel_size, *,
                 tile_ho=128, tile_wo=256):
    """rgb: [1, 3, H, W] float32 (NCHW, like the PyTorch module).

    tile_ho / tile_wo: output rows per grid step / output cols per in-kernel
    chunk.  v6e can profitably use tile_ho=256 (and a larger VMEM limit);
    defaults are sized to fit comfortably in v7x's 64 MiB VMEM.
    """
    bsz, ch, H, W = rgb.shape
    assert bsz == 1 and ch == 3
    NB, K, S = int(param_num_bins), int(param_kernel_size), int(param_pixel_size)
    assert NB >= 1 and K >= 1 and S >= 1
    P = (K - 1) // 2
    Ho = (H + 2 * P - K) // S + 1
    Wo = (W + 2 * P - K) // S + 1

    rgb = rgb.astype(jnp.float32)
    # intensity bin per pixel == torch.mean(dim=[0,1]) / 256 * NB, truncated.
    idx = (jnp.mean(rgb, axis=(0, 1)) / 256.0 * NB).astype(jnp.int32)
    idx = jnp.clip(idx, 0, NB - 1)
    idx_dtype = jnp.int8 if NB <= 127 else jnp.int32
    idx = idx.astype(idx_dtype)

    # ---- tiled / padded geometry -------------------------------------------
    t_ho = _round_up(min(tile_ho, Ho), 16)              # output rows per grid step
    n_rt = -(-Ho // t_ho)
    rpp = _round_up(t_ho + (K - 1) // S, 32)            # rows per phase (incl. halo)
    rows_blk = S * rpp

    t_wo = min(_round_up(tile_wo, 128), _round_up(Wo, 128))   # output cols per chunk
    n_wc = -(-Wo // t_wo)
    cw_full = t_wo * S + max(K - S, 0)                   # input cols a chunk needs
    if n_wc == 1:
        cw = _round_up(min(cw_full, (Wo - 1) * S + K), 128)
    else:
        cw = _round_up(cw_full, 128)
    Wp_in = _round_up(max((n_wc - 1) * t_wo * S + cw, W + 2 * P), 128)
    Wo_pad = n_wc * t_wo
    H_big = max((n_rt - 1) * t_ho * S + rpp * S, H + 2 * P)

    # Zero-pad rgb (bf16 MXU operands); pad idx with -1 so padding matches no bin.
    rgbp = jnp.pad(rgb[0], ((0, 0), (P, H_big - H - P), (P, Wp_in - W - P)))
    rgbp = rgbp.astype(jnp.bfloat16)
    idxp = jnp.pad(idx, ((P, H_big - H - P), (P, Wp_in - W - P)), constant_values=-1)

    # Phase-major, halo-duplicated row gather: rows_idx[t, p, q] = t*t_ho*S + q*S + p.
    rows_idx = (jnp.arange(n_rt)[:, None, None] * (t_ho * S)
                + jnp.arange(S)[None, :, None]
                + jnp.arange(rpp)[None, None, :] * S).reshape(-1)
    rgb_t = rgbp[:, rows_idx, :]                         # [3, n_rt*S*rpp, Wp_in]
    idx_t = idxp[rows_idx, :]                            # [n_rt*S*rpp, Wp_in]

    # Banded column window-sum matrix (same for every chunk / tile).
    wi = jnp.arange(cw)[:, None]
    oj = jnp.arange(t_wo)[None, :]
    b_mat = ((wi >= oj * S) & (wi < oj * S + K)).astype(jnp.bfloat16)

    out_pad = pl.pallas_call(
        functools.partial(pixel_effect_kernel, num_bins=NB, K=K, S=S, rpp=rpp,
                          t_ho=t_ho, tile_wo=t_wo, chunk_w_in=cw, n_wc=n_wc),
        out_shape=jax.ShapeDtypeStruct((3, n_rt * t_ho, Wo_pad), jnp.bfloat16),
        grid=(n_rt,),
        in_specs=[
            pl.BlockSpec((3, rows_blk, Wp_in), lambda t: (0, t, 0)),
            pl.BlockSpec((rows_blk, Wp_in), lambda t: (t, 0)),
            pl.BlockSpec((cw, t_wo), lambda t: (0, 0)),
        ],
        out_specs=pl.BlockSpec((3, t_ho, Wo_pad), lambda t: (0, t, 0)),
        compiler_params=pltpu.CompilerParams(
            dimension_semantics=("parallel",),           # row tiles are independent
            vmem_limit_bytes=48 * 1024 * 1024),          # fits v7x's 64 MiB physical VMEM
    )(rgb_t, idx_t, b_mat)

    out = out_pad[:, :Ho, :Wo].astype(jnp.float32)[None]   # crop row/lane padding
    # F.interpolate(scale_factor=S), default mode="nearest" == repeat along H and W.
    out = jnp.repeat(out, S, axis=2)
    out = jnp.repeat(out, S, axis=3)
    return out                                            # [1, 3, Ho*S, Wo*S]


def pixel_effect_ref(rgb, NB, K, S):
    """Pure-JAX f32 reference mirroring the PyTorch module."""
    _, _, H, W = rgb.shape
    P = (K - 1) // 2
    Ho = (H + 2 * P - K) // S + 1
    Wo = (W + 2 * P - K) // S + 1
    idx = jnp.clip((jnp.mean(rgb, axis=(0, 1)) / 256.0 * NB).astype(jnp.int32), 0, NB - 1)
    onehot = jnp.transpose(jax.nn.one_hot(idx, NB, dtype=jnp.float32), (2, 0, 1))  # [NB,H,W]

    def conv(x):  # ones KxK kernel, stride S, pad P, groups == channels
        xp = jnp.pad(x, ((0, 0), (P, P), (P, P)))
        acc = jnp.zeros((x.shape[0], Ho, Wo), jnp.float32)
        for ki in range(K):
            for kj in range(K):
                acc = acc + xp[:, ki:ki + Ho * S:S, kj:kj + Wo * S:S][:, :Ho, :Wo]
        return acc

    r = conv(rgb[0, 0][None] * onehot)
    g = conv(rgb[0, 1][None] * onehot)
    bb = conv(rgb[0, 2][None] * onehot)
    cnt = conv(onehot)
    am = jnp.argmax(cnt, axis=0)
    cm = jnp.max(cnt, axis=0)
    take = lambda x: jnp.take_along_axis(x, am[None], axis=0)[0]
    out = jnp.stack([take(r) / cm, take(g) / cm, take(bb) / cm], axis=0)[None]
    return jnp.repeat(jnp.repeat(out, S, axis=2), S, axis=3)


if __name__ == "__main__":
    key = jax.random.PRNGKey(0)
    H = W = 16
    NB, K, S = 8, 3, 2
    # values in [0, 256) so intensity bins span the full range (as /256*NB implies)
    rgb = jax.random.uniform(key, (1, 3, H, W), jnp.float32, minval=0.0, maxval=256.0)

    res = pixel_effect(rgb, NB, K, S)
    jax.block_until_ready(res)

    P = (K - 1) // 2
    Ho = (H + 2 * P - K) // S + 1
    Wo = (W + 2 * P - K) // S + 1
    assert res.shape == (1, 3, Ho * S, Wo * S), res.shape
    assert bool(jnp.all(jnp.isfinite(res)))

    # Counts (and hence the argmax selection) are bit-exact; RGB values carry
    # bf16 input/output + bf16 matmul-operand + approx-reciprocal quantization.
    ref = pixel_effect_ref(rgb, NB, K, S)
    max_err = float(jnp.max(jnp.abs(res - ref)))
    assert max_err < 1.0 + 0.02 * float(jnp.max(jnp.abs(ref))), max_err
    print("KERNEL_OK")
</pallas_src>

<mosaic_0001>
module attributes {stable_mosaic.version = 11 : i64} {
  func.func @pixel_effect_kernel(%arg0: i32, %arg1: memref<3x64x128xbf16, #tpu.memory_space<vmem>>, %arg2: memref<64x128xi8, #tpu.memory_space<vmem>>, %arg3: memref<128x128xbf16, #tpu.memory_space<vmem>>, %arg4: memref<3x16x128xbf16, #tpu.memory_space<vmem>>) attributes {dimension_semantics = [#tpu.dimension_semantics<parallel>], iteration_bounds = array<i64: 1>, scalar_prefetch = 0 : i64, scratch_operands = 0 : i64, tpu.core_type = #tpu.core_type<tc>, window_params = [{transform_indices = @transform_0, window_bounds = array<i64: 3, 64, 128>}, {transform_indices = @transform_1, window_bounds = array<i64: 64, 128>}, {pipeline_mode = #tpu.pipeline_mode<synchronous>, transform_indices = @transform_2, window_bounds = array<i64: 128, 128>}, {transform_indices = @transform_3, window_bounds = array<i64: 3, 16, 128>}]} {
    %c0 = arith.constant 0 : index
    %c0_0 = arith.constant 0 : index
    %0 = vector.load %arg3[%c0, %c0_0] : memref<128x128xbf16, #tpu.memory_space<vmem>>, vector<128x128xbf16>
    %cst = arith.constant -1.000000e+00 : f32
    %1 = vector.broadcast %cst : f32 to vector<16x128xf32>
    %cst_1 = arith.constant 0.000000e+00 : f32
    %2 = vector.broadcast %cst_1 : f32 to vector<16x128xf32>
    %cst_2 = arith.constant 0.000000e+00 : f32
    %3 = vector.broadcast %cst_2 : f32 to vector<16x128xf32>
    %cst_3 = arith.constant 0.000000e+00 : f32
    %4 = vector.broadcast %cst_3 : f32 to vector<16x128xf32>
    %c0_i32 = arith.constant 0 : i32
    %cst_4 = arith.constant 0.000000e+00 : f32
    %5 = vector.broadcast %cst_4 : f32 to vector<16x128xf32>
    %cst_5 = arith.constant 0.000000e+00 : f32
    %6 = vector.broadcast %cst_5 : f32 to vector<16x128xf32>
    %cst_6 = arith.constant 0.000000e+00 : f32
    %7 = vector.broadcast %cst_6 : f32 to vector<16x128xf32>
    %cst_7 = arith.constant 0.000000e+00 : f32
    %8 = vector.broadcast %cst_7 : f32 to vector<16x128xf32>
    %c0_8 = arith.constant 0 : index
    %c0_9 = arith.constant 0 : index
    %9 = vector.load %arg2[%c0_8, %c0_9] : memref<64x128xi8, #tpu.memory_space<vmem>>, vector<16x128xi8>
    %10 = arith.extsi %9 : vector<16x128xi8> to vector<16x128xi32>
    %11 = vector.broadcast %c0_i32 : i32 to vector<16x128xi32>
    %12 = arith.cmpi eq, %10, %11 : vector<16x128xi32>
    %13 = arith.extui %12 : vector<16x128xi1> to vector<16x128xi32>
    %14 = arith.sitofp %13 : vector<16x128xi32> to vector<16x128xf32>
    %15 = arith.addf %5, %14 : vector<16x128xf32>
    %c0_10 = arith.constant 0 : index
    %c0_11 = arith.constant 0 : index
    %c0_12 = arith.constant 0 : index
    %16 = vector.load %arg1[%c0_10, %c0_11, %c0_12] : memref<3x64x128xbf16, #tpu.memory_space<vmem>>, vector<1x16x128xbf16>
    %17 = vector.shape_cast %16 : vector<1x16x128xbf16> to vector<16x128xbf16>
    %18 = arith.extf %17 : vector<16x128xbf16> to vector<16x128xf32>
    %cst_13 = arith.constant 0.000000e+00 : f32
    %19 = vector.broadcast %cst_13 : f32 to vector<16x128xf32>
    %20 = arith.select %12, %18, %19 : vector<16x128xi1>, vector<16x128xf32>
    %21 = arith.addf %6, %20 : vector<16x128xf32>
    %c1 = arith.constant 1 : index
    %c0_14 = arith.constant 0 : index
    %c0_15 = arith.constant 0 : index
    %22 = vector.load %arg1[%c1, %c0_14, %c0_15] : memref<3x64x128xbf16, #tpu.memory_space<vmem>>, vector<1x16x128xbf16>
    %23 = vector.shape_cast %22 : vector<1x16x128xbf16> to vector<16x128xbf16>
    %24 = arith.extf %23 : vector<16x128xbf16> to vector<16x128xf32>
    %cst_16 = arith.constant 0.000000e+00 : f32
    %25 = vector.broadcast %cst_16 : f32 to vector<16x128xf32>
    %26 = arith.select %12, %24, %25 : vector<16x128xi1>, vector<16x128xf32>
    %27 = arith.addf %7, %26 : vector<16x128xf32>
    %c2 = arith.constant 2 : index
    %c0_17 = arith.constant 0 : index
    %c0_18 = arith.constant 0 : index
    %28 = vector.load %arg1[%c2, %c0_17, %c0_18] : memref<3x64x128xbf16, #tpu.memory_space<vmem>>, vector<1x16x128xbf16>
    %29 = vector.shape_cast %28 : vector<1x16x128xbf16> to vector<16x128xbf16>
    %30 = arith.extf %29 : vector<16x128xbf16> to vector<16x128xf32>
    %cst_19 = arith.constant 0.000000e+00 : f32
    %31 = vector.broadcast %cst_19 : f32 to vector<16x128xf32>
    %32 = arith.select %12, %30, %31 : vector<16x128xi1>, vector<16x128xf32>
    %33 = arith.addf %8, %32 : vector<16x128xf32>
    %c32 = arith.constant 32 : index
    %c0_20 = arith.constant 0 : index
    %34 = vector.load %arg2[%c32, %c0_20] : memref<64x128xi8, #tpu.memory_space<vmem>>, vector<16x128xi8>
    %35 = arith.extsi %34 : vector<16x128xi8> to vector<16x128xi32>
    %36 = vector.broadcast %c0_i32 : i32 to vector<16x128xi32>
    %37 = arith.cmpi eq, %35, %36 : vector<16x128xi32>
    %38 = arith.extui %37 : vector<16x128xi1> to vector<16x128xi32>
    %39 = arith.sitofp %38 : vector<16x128xi32> to vector<16x128xf32>
    %40 = arith.addf %15, %39 : vector<16x128xf32>
    %c0_21 = arith.constant 0 : index
    %c32_22 = arith.constant 32 : index
    %c0_23 = arith.constant 0 : index
    %41 = vector.load %arg1[%c0_21, %c32_22, %c0_23] : memref<3x64x128xbf16, #tpu.memory_space<vmem>>, vector<1x16x128xbf16>
    %42 = vector.shape_cast %41 : vector<1x16x128xbf16> to vector<16x128xbf16>
    %43 = arith.extf %42 : vector<16x128xbf16> to vector<16x128xf32>
    %cst_24 = arith.constant 0.000000e+00 : f32
    %44 = vector.broadcast %cst_24 : f32 to vector<16x128xf32>
    %45 = arith.select %37, %43, %44 : vector<16x128xi1>, vector<16x128xf32>
    %46 = arith.addf %21, %45 : vector<16x128xf32>
    %c1_25 = arith.constant 1 : index
    %c32_26 = arith.constant 32 : index
    %c0_27 = arith.constant 0 : index
    %47 = vector.load %arg1[%c1_25, %c32_26, %c0_27] : memref<3x64x128xbf16, #tpu.memory_space<vmem>>, vector<1x16x128xbf16>
    %48 = vector.shape_cast %47 : vector<1x16x128xbf16> to vector<16x128xbf16>
    %49 = arith.extf %48 : vector<16x128xbf16> to vector<16x128xf32>
    %cst_28 = arith.constant 0.000000e+00 : f32
    %50 = vector.broadcast %cst_28 : f32 to vector<16x128xf32>
    %51 = arith.select %37, %49, %50 : vector<16x128xi1>, vector<16x128xf32>
    %52 = arith.addf %27, %51 : vector<16x128xf32>
    %c2_29 = arith.constant 2 : index
    %c32_30 = arith.constant 32 : index
    %c0_31 = arith.constant 0 : index
    %53 = vector.load %arg1[%c2_29, %c32_30, %c0_31] : memref<3x64x128xbf16, #tpu.memory_space<vmem>>, vector<1x16x128xbf16>
    %54 = vector.shape_cast %53 : vector<1x16x128xbf16> to vector<16x128xbf16>
    %55 = arith.extf %54 : vector<16x128xbf16> to vector<16x128xf32>
    %cst_32 = arith.constant 0.000000e+00 : f32
    %56 = vector.broadcast %cst_32 : f32 to vector<16x128xf32>
    %57 = arith.select %37, %55, %56 : vector<16x128xi1>, vector<16x128xf32>
    %58 = arith.addf %33, %57 : vector<16x128xf32>
    %c1_33 = arith.constant 1 : index
    %c0_34 = arith.constant 0 : index
    %59 = vector.load %arg2[%c1_33, %c0_34] : memref<64x128xi8, #tpu.memory_space<vmem>>, vector<16x128xi8>
    %60 = arith.extsi %59 : vector<16x128xi8> to vector<16x128xi32>
    %61 = vector.broadcast %c0_i32 : i32 to vector<16x128xi32>
    %62 = arith.cmpi eq, %60, %61 : vector<16x128xi32>
    %63 = arith.extui %62 : vector<16x128xi1> to vector<16x128xi32>
    %64 = arith.sitofp %63 : vector<16x128xi32> to vector<16x128xf32>
    %65 = arith.addf %40, %64 : vector<16x128xf32>
    %c0_35 = arith.constant 0 : index
    %c1_36 = arith.constant 1 : index
    %c0_37 = arith.constant 0 : index
    %66 = vector.load %arg1[%c0_35, %c1_36, %c0_37] : memref<3x64x128xbf16, #tpu.memory_space<vmem>>, vector<1x16x128xbf16>
    %67 = vector.shape_cast %66 : vector<1x16x128xbf16> to vector<16x128xbf16>
    %68 = arith.extf %67 : vector<16x128xbf16> to vector<16x128xf32>
    %cst_38 = arith.constant 0.000000e+00 : f32
    %69 = vector.broadcast %cst_38 : f32 to vector<16x128xf32>
    %70 = arith.select %62, %68, %69 : vector<16x128xi1>, vector<16x128xf32>
    %71 = arith.addf %46, %70 : vector<16x128xf32>
    %c1_39 = arith.constant 1 : index
    %c1_40 = arith.constant 1 : index
    %c0_41 = arith.constant 0 : index
    %72 = vector.load %arg1[%c1_39, %c1_40, %c0_41] : memref<3x64x128xbf16, #tpu.memory_space<vmem>>, vector<1x16x128xbf16>
    %73 = vector.shape_cast %72 : vector<1x16x128xbf16> to vector<16x128xbf16>
    %74 = arith.extf %73 : vector<16x128xbf16> to vector<16x128xf32>
    %cst_42 = arith.constant 0.000000e+00 : f32
    %75 = vector.broadcast %cst_42 : f32 to vector<16x128xf32>
    %76 = arith.select %62, %74, %75 : vector<16x128xi1>, vector<16x128xf32>
    %77 = arith.addf %52, %76 : vector<16x128xf32>
    %c2_43 = arith.constant 2 : index
    %c1_44 = arith.constant 1 : index
    %c0_45 = arith.constant 0 : index
    %78 = vector.load %arg1[%c2_43, %c1_44, %c0_45] : memref<3x64x128xbf16, #tpu.memory_space<vmem>>, vector<1x16x128xbf16>
    %79 = vector.shape_cast %78 : vector<1x16x128xbf16> to vector<16x128xbf16>
    %80 = arith.extf %79 : vector<16x128xbf16> to vector<16x128xf32>
    %cst_46 = arith.constant 0.000000e+00 : f32
    %81 = vector.broadcast %cst_46 : f32 to vector<16x128xf32>
    %82 = arith.select %62, %80, %81 : vector<16x128xi1>, vector<16x128xf32>
    %83 = arith.addf %58, %82 : vector<16x128xf32>
    %84 = arith.truncf %65 : vector<16x128xf32> to vector<16x128xbf16>
    %cst_47 = arith.constant dense<0.000000e+00> : vector<16x128xf32>
    %85 = tpu.matmul %84, %0, %cst_47 {dimension_numbers = #tpu.dot_dimension_numbers<[1], [0], [0], [1], [0, 0, 1, 1], [], []>} : vector<16x128xbf16>, vector<128x128xbf16>, vector<16x128xf32> -> vector<16x128xf32>
    %86 = arith.truncf %71 : vector<16x128xf32> to vector<16x128xbf16>
    %cst_48 = arith.constant dense<0.000000e+00> : vector<16x128xf32>
    %87 = tpu.matmul %86, %0, %cst_48 {dimension_numbers = #tpu.dot_dimension_numbers<[1], [0], [0], [1], [0, 0, 1, 1], [], []>} : vector<16x128xbf16>, vector<128x128xbf16>, vector<16x128xf32> -> vector<16x128xf32>
    %88 = arith.truncf %77 : vector<16x128xf32> to vector<16x128xbf16>
    %cst_49 = arith.constant dense<0.000000e+00> : vector<16x128xf32>
    %89 = tpu.matmul %88, %0, %cst_49 {dimension_numbers = #tpu.dot_dimension_numbers<[1], [0], [0], [1], [0, 0, 1, 1], [], []>} : vector<16x128xbf16>, vector<128x128xbf16>, vector<16x128xf32> -> vector<16x128xf32>
    %90 = arith.truncf %83 : vector<16x128xf32> to vector<16x128xbf16>
    %cst_50 = arith.constant dense<0.000000e+00> : vector<16x128xf32>
    %91 = tpu.matmul %90, %0, %cst_50 {dimension_numbers = #tpu.dot_dimension_numbers<[1], [0], [0], [1], [0, 0, 1, 1], [], []>} : vector<16x128xbf16>, vector<128x128xbf16>, vector<16x128xf32> -> vector<16x128xf32>
    %92 = arith.cmpf ogt, %85, %1 : vector<16x128xf32>
    %93 = arith.select %92, %85, %1 : vector<16x128xi1>, vector<16x128xf32>
    %94 = arith.select %92, %87, %2 : vector<16x128xi1>, vector<16x128xf32>
    %95 = arith.select %92, %89, %3 : vector<16x128xi1>, vector<16x128xf32>
    %96 = arith.select %92, %91, %4 : vector<16x128xi1>, vector<16x128xf32>
    %c1_i32 = arith.constant 1 : i32
    %cst_51 = arith.constant 0.000000e+00 : f32
    %97 = vector.broadcast %cst_51 : f32 to vector<16x128xf32>
    %cst_52 = arith.constant 0.000000e+00 : f32
    %98 = vector.broadcast %cst_52 : f32 to vector<16x128xf32>
    %cst_53 = arith.constant 0.000000e+00 : f32
    %99 = vector.broadcast %cst_53 : f32 to vector<16x128xf32>
    %cst_54 = arith.constant 0.000000e+00 : f32
    %100 = vector.broadcast %cst_54 : f32 to vector<16x128xf32>
    %c0_55 = arith.constant 0 : index
    %c0_56 = arith.constant 0 : index
    %101 = vector.load %arg2[%c0_55, %c0_56] : memref<64x128xi8, #tpu.memory_space<vmem>>, vector<16x128xi8>
    %102 = arith.extsi %101 : vector<16x128xi8> to vector<16x128xi32>
    %103 = vector.broadcast %c1_i32 : i32 to vector<16x128xi32>
    %104 = arith.cmpi eq, %102, %103 : vector<16x128xi32>
    %105 = arith.extui %104 : vector<16x128xi1> to vector<16x128xi32>
    %106 = arith.sitofp %105 : vector<16x128xi32> to vector<16x128xf32>
    %107 = arith.addf %97, %106 : vector<16x128xf32>
    %c0_57 = arith.constant 0 : index
    %c0_58 = arith.constant 0 : index
    %c0_59 = arith.constant 0 : index
    %108 = vector.load %arg1[%c0_57, %c0_58, %c0_59] : memref<3x64x128xbf16, #tpu.memory_space<vmem>>, vector<1x16x128xbf16>
    %109 = vector.shape_cast %108 : vector<1x16x128xbf16> to vector<16x128xbf16>
    %110 = arith.extf %109 : vector<16x128xbf16> to vector<16x128xf32>
    %cst_60 = arith.constant 0.000000e+00 : f32
    %111 = vector.broadcast %cst_60 : f32 to vector<16x128xf32>
    %112 = arith.select %104, %110, %111 : vector<16x128xi1>, vector<16x128xf32>
    %113 = arith.addf %98, %112 : vector<16x128xf32>
    %c1_61 = arith.constant 1 : index
    %c0_62 = arith.constant 0 : index
    %c0_63 = arith.constant 0 : index
    %114 = vector.load %arg1[%c1_61, %c0_62, %c0_63] : memref<3x64x128xbf16, #tpu.memory_space<vmem>>, vector<1x16x128xbf16>
    %115 = vector.shape_cast %114 : vector<1x16x128xbf16> to vector<16x128xbf16>
    %116 = arith.extf %115 : vector<16x128xbf16> to vector<16x128xf32>
    %cst_64 = arith.constant 0.000000e+00 : f32
    %117 = vector.broadcast %cst_64 : f32 to vector<16x128xf32>
    %118 = arith.select %104, %116, %117 : vector<16x128xi1>, vector<16x128xf32>
    %119 = arith.addf %99, %118 : vector<16x128xf32>
    %c2_65 = arith.constant 2 : index
    %c0_66 = arith.constant 0 : index
    %c0_67 = arith.constant 0 : index
    %120 = vector.load %arg1[%c2_65, %c0_66, %c0_67] : memref<3x64x128xbf16, #tpu.memory_space<vmem>>, vector<1x16x128xbf16>
    %121 = vector.shape_cast %120 : vector<1x16x128xbf16> to vector<16x128xbf16>
    %122 = arith.extf %121 : vector<16x128xbf16> to vector<16x128xf32>
    %cst_68 = arith.constant 0.000000e+00 : f32
    %123 = vector.broadcast %cst_68 : f32 to vector<16x128xf32>
    %124 = arith.select %104, %122, %123 : vector<16x128xi1>, vector<16x128xf32>
    %125 = arith.addf %100, %124 : vector<16x128xf32>
    %c32_69 = arith.constant 32 : index
    %c0_70 = arith.constant 0 : index
    %126 = vector.load %arg2[%c32_69, %c0_70] : memref<64x128xi8, #tpu.memory_space<vmem>>, vector<16x128xi8>
    %127 = arith.extsi %126 : vector<16x128xi8> to vector<16x128xi32>
    %128 = vector.broadcast %c1_i32 : i32 to vector<16x128xi32>
    %129 = arith.cmpi eq, %127, %128 : vector<16x128xi32>
    %130 = arith.extui %129 : vector<16x128xi1> to vector<16x128xi32>
    %131 = arith.sitofp %130 : vector<16x128xi32> to vector<16x128xf32>
    %132 = arith.addf %107, %131 : vector<16x128xf32>
    %c0_71 = arith.constant 0 : index
    %c32_72 = arith.constant 32 : index
    %c0_73 = arith.constant 0 : index
    %133 = vector.load %arg1[%c0_71, %c32_72, %c0_73] : memref<3x64x128xbf16, #tpu.memory_space<vmem>>, vector<1x16x128xbf16>
    %134 = vector.shape_cast %133 : vector<1x16x128xbf16> to vector<16x128xbf16>
    %135 = arith.extf %134 : vector<16x128xbf16> to vector<16x128xf32>
    %cst_74 = arith.constant 0.000000e+00 : f32
    %136 = vector.broadcast %cst_74 : f32 to vector<16x128xf32>
    %137 = arith.select %129, %135, %136 : vector<16x128xi1>, vector<16x128xf32>
    %138 = arith.addf %113, %137 : vector<16x128xf32>
    %c1_75 = arith.constant 1 : index
    %c32_76 = arith.constant 32 : index
    %c0_77 = arith.constant 0 : index
    %139 = vector.load %arg1[%c1_75, %c32_76, %c0_77] : memref<3x64x128xbf16, #tpu.memory_space<vmem>>, vector<1x16x128xbf16>
    %140 = vector.shape_cast %139 : vector<1x16x128xbf16> to vector<16x128xbf16>
    %141 = arith.extf %140 : vector<16x128xbf16> to vector<16x128xf32>
    %cst_78 = arith.constant 0.000000e+00 : f32
    %142 = vector.broadcast %cst_78 : f32 to vector<16x128xf32>
    %143 = arith.select %129, %141, %142 : vector<16x128xi1>, vector<16x128xf32>
    %144 = arith.addf %119, %143 : vector<16x128xf32>
    %c2_79 = arith.constant 2 : index
    %c32_80 = arith.constant 32 : index
    %c0_81 = arith.constant 0 : index
    %145 = vector.load %arg1[%c2_79, %c32_80, %c0_81] : memref<3x64x128xbf16, #tpu.memory_space<vmem>>, vector<1x16x128xbf16>
    %146 = vector.shape_cast %145 : vector<1x16x128xbf16> to vector<16x128xbf16>
    %147 = arith.extf %146 : vector<16x128xbf16> to vector<16x128xf32>
    %cst_82 = arith.constant 0.000000e+00 : f32
    %148 = vector.broadcast %cst_82 : f32 to vector<16x128xf32>
    %149 = arith.select %129, %147, %148 : vector<16x128xi1>, vector<16x128xf32>
    %150 = arith.addf %125, %149 : vector<16x128xf32>
    %c1_83 = arith.constant 1 : index
    %c0_84 = arith.constant 0 : index
    %151 = vector.load %arg2[%c1_83, %c0_84] : memref<64x128xi8, #tpu.memory_space<vmem>>, vector<16x128xi8>
    %152 = arith.extsi %151 : vector<16x128xi8> to vector<16x128xi32>
    %153 = vector.broadcast %c1_i32 : i32 to vector<16x128xi32>
    %154 = arith.cmpi eq, %152, %153 : vector<16x128xi32>
    %155 = arith.extui %154 : vector<16x128xi1> to vector<16x128xi32>
    %156 = arith.sitofp %155 : vector<16x128xi32> to vector<16x128xf32>
    %157 = arith.addf %132, %156 : vector<16x128xf32>
    %c0_85 = arith.constant 0 : index
    %c1_86 = arith.constant 1 : index
    %c0_87 = arith.constant 0 : index
    %158 = vector.load %arg1[%c0_85, %c1_86, %c0_87] : memref<3x64x128xbf16, #tpu.memory_space<vmem>>, vector<1x16x128xbf16>
    %159 = vector.shape_cast %158 : vector<1x16x128xbf16> to vector<16x128xbf16>
    %160 = arith.extf %159 : vector<16x128xbf16> to vector<16x128xf32>
    %cst_88 = arith.constant 0.000000e+00 : f32
    %161 = vector.broadcast %cst_88 : f32 to vector<16x128xf32>
    %162 = arith.select %154, %160, %161 : vector<16x128xi1>, vector<16x128xf32>
    %163 = arith.addf %138, %162 : vector<16x128xf32>
    %c1_89 = arith.constant 1 : index
    %c1_90 = arith.constant 1 : index
    %c0_91 = arith.constant 0 : index
    %164 = vector.load %arg1[%c1_89, %c1_90, %c0_91] : memref<3x64x128xbf16, #tpu.memory_space<vmem>>, vector<1x16x128xbf16>
    %165 = vector.shape_cast %164 : vector<1x16x128xbf16> to vector<16x128xbf16>
    %166 = arith.extf %165 : vector<16x128xbf16> to vector<16x128xf32>
    %cst_92 = arith.constant 0.000000e+00 : f32
    %167 = vector.broadcast %cst_92 : f32 to vector<16x128xf32>
    %168 = arith.select %154, %166, %167 : vector<16x128xi1>, vector<16x128xf32>
    %169 = arith.addf %144, %168 : vector<16x128xf32>
    %c2_93 = arith.constant 2 : index
    %c1_94 = arith.constant 1 : index
    %c0_95 = arith.constant 0 : index
    %170 = vector.load %arg1[%c2_93, %c1_94, %c0_95] : memref<3x64x128xbf16, #tpu.memory_space<vmem>>, vector<1x16x128xbf16>
    %171 = vector.shape_cast %170 : vector<1x16x128xbf16> to vector<16x128xbf16>
    %172 = arith.extf %171 : vector<16x128xbf16> to vector<16x128xf32>
    %cst_96 = arith.constant 0.000000e+00 : f32
    %173 = vector.broadcast %cst_96 : f32 to vector<16x128xf32>
    %174 = arith.select %154, %172, %173 : vector<16x128xi1>, vector<16x128xf32>
    %175 = arith.addf %150, %174 : vector<16x128xf32>
    %176 = arith.truncf %157 : vector<16x128xf32> to vector<16x128xbf16>
    %cst_97 = arith.constant dense<0.000000e+00> : vector<16x128xf32>
    %177 = tpu.matmul %176, %0, %cst_97 {dimension_numbers = #tpu.dot_dimension_numbers<[1], [0], [0], [1], [0, 0, 1, 1], [], []>} : vector<16x128xbf16>, vector<128x128xbf16>, vector<16x128xf32> -> vector<16x128xf32>
    %178 = arith.truncf %163 : vector<16x128xf32> to vector<16x128xbf16>
    %cst_98 = arith.constant dense<0.000000e+00> : vector<16x128xf32>
    %179 = tpu.matmul %178, %0, %cst_98 {dimension_numbers = #tpu.dot_dimension_numbers<[1], [0], [0], [1], [0, 0, 1, 1], [], []>} : vector<16x128xbf16>, vector<128x128xbf16>, vector<16x128xf32> -> vector<16x128xf32>
    %180 = arith.truncf %169 : vector<16x128xf32> to vector<16x128xbf16>
    %cst_99 = arith.constant dense<0.000000e+00> : vector<16x128xf32>
    %181 = tpu.matmul %180, %0, %cst_99 {dimension_numbers = #tpu.dot_dimension_numbers<[1], [0], [0], [1], [0, 0, 1, 1], [], []>} : vector<16x128xbf16>, vector<128x128xbf16>, vector<16x128xf32> -> vector<16x128xf32>
    %182 = arith.truncf %175 : vector<16x128xf32> to vector<16x128xbf16>
    %cst_100 = arith.constant dense<0.000000e+00> : vector<16x128xf32>
    %183 = tpu.matmul %182, %0, %cst_100 {dimension_numbers = #tpu.dot_dimension_numbers<[1], [0], [0], [1], [0, 0, 1, 1], [], []>} : vector<16x128xbf16>, vector<128x128xbf16>, vector<16x128xf32> -> vector<16x128xf32>
    %184 = arith.cmpf ogt, %177, %93 : vector<16x128xf32>
    %185 = arith.select %184, %177, %93 : vector<16x128xi1>, vector<16x128xf32>
    %186 = arith.select %184, %179, %94 : vector<16x128xi1>, vector<16x128xf32>
    %187 = arith.select %184, %181, %95 : vector<16x128xi1>, vector<16x128xf32>
    %188 = arith.select %184, %183, %96 : vector<16x128xi1>, vector<16x128xf32>
    %c2_i32 = arith.constant 2 : i32
    %cst_101 = arith.constant 0.000000e+00 : f32
    %189 = vector.broadcast %cst_101 : f32 to vector<16x128xf32>
    %cst_102 = arith.constant 0.000000e+00 : f32
    %190 = vector.broadcast %cst_102 : f32 to vector<16x128xf32>
    %cst_103 = arith.constant 0.000000e+00 : f32
    %191 = vector.broadcast %cst_103 : f32 to vector<16x128xf32>
    %cst_104 = arith.constant 0.000000e+00 : f32
    %192 = vector.broadcast %cst_104 : f32 to vector<16x128xf32>
    %c0_105 = arith.constant 0 : index
    %c0_106 = arith.constant 0 : index
    %193 = vector.load %arg2[%c0_105, %c0_106] : memref<64x128xi8, #tpu.memory_space<vmem>>, vector<16x128xi8>
    %194 = arith.extsi %193 : vector<16x128xi8> to vector<16x128xi32>
    %195 = vector.broadcast %c2_i32 : i32 to vector<16x128xi32>
    %196 = arith.cmpi eq, %194, %195 : vector<16x128xi32>
    %197 = arith.extui %196 : vector<16x128xi1> to vector<16x128xi32>
    %198 = arith.sitofp %197 : vector<16x128xi32> to vector<16x128xf32>
    %199 = arith.addf %189, %198 : vector<16x128xf32>
    %c0_107 = arith.constant 0 : index
    %c0_108 = arith.constant 0 : index
    %c0_109 = arith.constant 0 : index
    %200 = vector.load %arg1[%c0_107, %c0_108, %c0_109] : memref<3x64x128xbf16, #tpu.memory_space<vmem>>, vector<1x16x128xbf16>
    %201 = vector.shape_cast %200 : vector<1x16x128xbf16> to vector<16x128xbf16>
    %202 = arith.extf %201 : vector<16x128xbf16> to vector<16x128xf32>
    %cst_110 = arith.constant 0.000000e+00 : f32
    %203 = vector.broadcast %cst_110 : f32 to vector<16x128xf32>
    %204 = arith.select %196, %202, %203 : vector<16x128xi1>, vector<16x128xf32>
    %205 = arith.addf %190, %204 : vector<16x128xf32>
    %c1_111 = arith.constant 1 : index
    %c0_112 = arith.constant 0 : index
    %c0_113 = arith.constant 0 : index
    %206 = vector.load %arg1[%c1_111, %c0_112, %c0_113] : memref<3x64x128xbf16, #tpu.memory_space<vmem>>, vector<1x16x128xbf16>
    %207 = vector.shape_cast %206 : vector<1x16x128xbf16> to vector<16x128xbf16>
    %208 = arith.extf %207 : vector<16x128xbf16> to vector<16x128xf32>
    %cst_114 = arith.constant 0.000000e+00 : f32
    %209 = vector.broadcast %cst_114 : f32 to vector<16x128xf32>
    %210 = arith.select %196, %208, %209 : vector<16x128xi1>, vector<16x128xf32>
    %211 = arith.addf %191, %210 : vector<16x128xf32>
    %c2_115 = arith.constant 2 : index
    %c0_116 = arith.constant 0 : index
    %c0_117 = arith.constant 0 : index
    %212 = vector.load %arg1[%c2_115, %c0_116, %c0_117] : memref<3x64x128xbf16, #tpu.memory_space<vmem>>, vector<1x16x128xbf16>
    %213 = vector.shape_cast %212 : vector<1x16x128xbf16> to vector<16x128xbf16>
    %214 = arith.extf %213 : vector<16x128xbf16> to vector<16x128xf32>
    %cst_118 = arith.constant 0.000000e+00 : f32
    %215 = vector.broadcast %cst_118 : f32 to vector<16x128xf32>
    %216 = arith.select %196, %214, %215 : vector<16x128xi1>, vector<16x128xf32>
    %217 = arith.addf %192, %216 : vector<16x128xf32>
    %c32_119 = arith.constant 32 : index
    %c0_120 = arith.constant 0 : index
    %218 = vector.load %arg2[%c32_119, %c0_120] : memref<64x128xi8, #tpu.memory_space<vmem>>, vector<16x128xi8>
    %219 = arith.extsi %218 : vector<16x128xi8> to vector<16x128xi32>
    %220 = vector.broadcast %c2_i32 : i32 to vector<16x128xi32>
    %221 = arith.cmpi eq, %219, %220 : vector<16x128xi32>
    %222 = arith.extui %221 : vector<16x128xi1> to vector<16x128xi32>
    %223 = arith.sitofp %222 : vector<16x128xi32> to vector<16x128xf32>
    %224 = arith.addf %199, %223 : vector<16x128xf32>
    %c0_121 = arith.constant 0 : index
    %c32_122 = arith.constant 32 : index
    %c0_123 = arith.constant 0 : index
    %225 = vector.load %arg1[%c0_121, %c32_122, %c0_123] : memref<3x64x128xbf16, #tpu.memory_space<vmem>>, vector<1x16x128xbf16>
    %226 = vector.shape_cast %225 : vector<1x16x128xbf16> to vector<16x128xbf16>
    %227 = arith.extf %226 : vector<16x128xbf16> to vector<16x128xf32>
    %cst_124 = arith.constant 0.000000e+00 : f32
    %228 = vector.broadcast %cst_124 : f32 to vector<16x128xf32>
    %229 = arith.select %221, %227, %228 : vector<16x128xi1>, vector<16x128xf32>
    %230 = arith.addf %205, %229 : vector<16x128xf32>
    %c1_125 = arith.constant 1 : index
    %c32_126 = arith.constant 32 : index
    %c0_127 = arith.constant 0 : index
    %231 = vector.load %arg1[%c1_125, %c32_126, %c0_127] : memref<3x64x128xbf16, #tpu.memory_space<vmem>>, vector<1x16x128xbf16>
    %232 = vector.shape_cast %231 : vector<1x16x128xbf16> to vector<16x128xbf16>
    %233 = arith.extf %232 : vector<16x128xbf16> to vector<16x128xf32>
    %cst_128 = arith.constant 0.000000e+00 : f32
    %234 = vector.broadcast %cst_128 : f32 to vector<16x128xf32>
    %235 = arith.select %221, %233, %234 : vector<16x128xi1>, vector<16x128xf32>
    %236 = arith.addf %211, %235 : vector<16x128xf32>
    %c2_129 = arith.constant 2 : index
    %c32_130 = arith.constant 32 : index
    %c0_131 = arith.constant 0 : index
    %237 = vector.load %arg1[%c2_129, %c32_130, %c0_131] : memref<3x64x128xbf16, #tpu.memory_space<vmem>>, vector<1x16x128xbf16>
    %238 = vector.shape_cast %237 : vector<1x16x128xbf16> to vector<16x128xbf16>
    %239 = arith.extf %238 : vector<16x128xbf16> to vector<16x128xf32>
    %cst_132 = arith.constant 0.000000e+00 : f32
    %240 = vector.broadcast %cst_132 : f32 to vector<16x128xf32>
    %241 = arith.select %221, %239, %240 : vector<16x128xi1>, vector<16x128xf32>
    %242 = arith.addf %217, %241 : vector<16x128xf32>
    %c1_133 = arith.constant 1 : index
    %c0_134 = arith.constant 0 : index
    %243 = vector.load %arg2[%c1_133, %c0_134] : memref<64x128xi8, #tpu.memory_space<vmem>>, vector<16x128xi8>
    %244 = arith.extsi %243 : vector<16x128xi8> to vector<16x128xi32>
    %245 = vector.broadcast %c2_i32 : i32 to vector<16x128xi32>
    %246 = arith.cmpi eq, %244, %245 : vector<16x128xi32>
    %247 = arith.extui %246 : vector<16x128xi1> to vector<16x128xi32>
    %248 = arith.sitofp %247 : vector<16x128xi32> to vector<16x128xf32>
    %249 = arith.addf %224, %248 : vector<16x128xf32>
    %c0_135 = arith.constant 0 : index
    %c1_136 = arith.constant 1 : index
    %c0_137 = arith.constant 0 : index
    %250 = vector.load %arg1[%c0_135, %c1_136, %c0_137] : memref<3x64x128xbf16, #tpu.memory_space<vmem>>, vector<1x16x128xbf16>
    %251 = vector.shape_cast %250 : vector<1x16x128xbf16> to vector<16x128xbf16>
    %252 = arith.extf %251 : vector<16x128xbf16> to vector<16x128xf32>
    %cst_138 = arith.constant 0.000000e+00 : f32
    %253 = vector.broadcast %cst_138 : f32 to vector<16x128xf32>
    %254 = arith.select %246, %252, %253 : vector<16x128xi1>, vector<16x128xf32>
    %255 = arith.addf %230, %254 : vector<16x128xf32>
    %c1_139 = arith.constant 1 : index
    %c1_140 = arith.constant 1 : index
    %c0_141 = arith.constant 0 : index
    %256 = vector.load %arg1[%c1_139, %c1_140, %c0_141] : memref<3x64x128xbf16, #tpu.memory_space<vmem>>, vector<1x16x128xbf16>
    %257 = vector.shape_cast %256 : vector<1x16x128xbf16> to vector<16x128xbf16>
    %258 = arith.extf %257 : vector<16x128xbf16> to vector<16x128xf32>
    %cst_142 = arith.constant 0.000000e+00 : f32
    %259 = vector.broadcast %cst_142 : f32 to vector<16x128xf32>
    %260 = arith.select %246, %258, %259 : vector<16x128xi1>, vector<16x128xf32>
    %261 = arith.addf %236, %260 : vector<16x128xf32>
    %c2_143 = arith.constant 2 : index
    %c1_144 = arith.constant 1 : index
    %c0_145 = arith.constant 0 : index
    %262 = vector.load %arg1[%c2_143, %c1_144, %c0_145] : memref<3x64x128xbf16, #tpu.memory_space<vmem>>, vector<1x16x128xbf16>
    %263 = vector.shape_cast %262 : vector<1x16x128xbf16> to vector<16x128xbf16>
    %264 = arith.extf %263 : vector<16x128xbf16> to vector<16x128xf32>
    %cst_146 = arith.constant 0.000000e+00 : f32
    %265 = vector.broadcast %cst_146 : f32 to vector<16x128xf32>
    %266 = arith.select %246, %264, %265 : vector<16x128xi1>, vector<16x128xf32>
    %267 = arith.addf %242, %266 : vector<16x128xf32>
    %268 = arith.truncf %249 : vector<16x128xf32> to vector<16x128xbf16>
    %cst_147 = arith.constant dense<0.000000e+00> : vector<16x128xf32>
    %269 = tpu.matmul %268, %0, %cst_147 {dimension_numbers = #tpu.dot_dimension_numbers<[1], [0], [0], [1], [0, 0, 1, 1], [], []>} : vector<16x128xbf16>, vector<128x128xbf16>, vector<16x128xf32> -> vector<16x128xf32>
    %270 = arith.truncf %255 : vector<16x128xf32> to vector<16x128xbf16>
    %cst_148 = arith.constant dense<0.000000e+00> : vector<16x128xf32>
    %271 = tpu.matmul %270, %0, %cst_148 {dimension_numbers = #tpu.dot_dimension_numbers<[1], [0], [0], [1], [0, 0, 1, 1], [], []>} : vector<16x128xbf16>, vector<128x128xbf16>, vector<16x128xf32> -> vector<16x128xf32>
    %272 = arith.truncf %261 : vector<16x128xf32> to vector<16x128xbf16>
    %cst_149 = arith.constant dense<0.000000e+00> : vector<16x128xf32>
    %273 = tpu.matmul %272, %0, %cst_149 {dimension_numbers = #tpu.dot_dimension_numbers<[1], [0], [0], [1], [0, 0, 1, 1], [], []>} : vector<16x128xbf16>, vector<128x128xbf16>, vector<16x128xf32> -> vector<16x128xf32>
    %274 = arith.truncf %267 : vector<16x128xf32> to vector<16x128xbf16>
    %cst_150 = arith.constant dense<0.000000e+00> : vector<16x128xf32>
    %275 = tpu.matmul %274, %0, %cst_150 {dimension_numbers = #tpu.dot_dimension_numbers<[1], [0], [0], [1], [0, 0, 1, 1], [], []>} : vector<16x128xbf16>, vector<128x128xbf16>, vector<16x128xf32> -> vector<16x128xf32>
    %276 = arith.cmpf ogt, %269, %185 : vector<16x128xf32>
    %277 = arith.select %276, %269, %185 : vector<16x128xi1>, vector<16x128xf32>
    %278 = arith.select %276, %271, %186 : vector<16x128xi1>, vector<16x128xf32>
    %279 = arith.select %276, %273, %187 : vector<16x128xi1>, vector<16x128xf32>
    %280 = arith.select %276, %275, %188 : vector<16x128xi1>, vector<16x128xf32>
    %c3_i32 = arith.constant 3 : i32
    %cst_151 = arith.constant 0.000000e+00 : f32
    %281 = vector.broadcast %cst_151 : f32 to vector<16x128xf32>
    %cst_152 = arith.constant 0.000000e+00 : f32
    %282 = vector.broadcast %cst_152 : f32 to vector<16x128xf32>
    %cst_153 = arith.constant 0.000000e+00 : f32
    %283 = vector.broadcast %cst_153 : f32 to vector<16x128xf32>
    %cst_154 = arith.constant 0.000000e+00 : f32
    %284 = vector.broadcast %cst_154 : f32 to vector<16x128xf32>
    %c0_155 = arith.constant 0 : index
    %c0_156 = arith.constant 0 : index
    %285 = vector.load %arg2[%c0_155, %c0_156] : memref<64x128xi8, #tpu.memory_space<vmem>>, vector<16x128xi8>
    %286 = arith.extsi %285 : vector<16x128xi8> to vector<16x128xi32>
    %287 = vector.broadcast %c3_i32 : i32 to vector<16x128xi32>
    %288 = arith.cmpi eq, %286, %287 : vector<16x128xi32>
    %289 = arith.extui %288 : vector<16x128xi1> to vector<16x128xi32>
    %290 = arith.sitofp %289 : vector<16x128xi32> to vector<16x128xf32>
    %291 = arith.addf %281, %290 : vector<16x128xf32>
    %c0_157 = arith.constant 0 : index
    %c0_158 = arith.constant 0 : index
    %c0_159 = arith.constant 0 : index
    %292 = vector.load %arg1[%c0_157, %c0_158, %c0_159] : memref<3x64x128xbf16, #tpu.memory_space<vmem>>, vector<1x16x128xbf16>
    %293 = vector.shape_cast %292 : vector<1x16x128xbf16> to vector<16x128xbf16>
    %294 = arith.extf %293 : vector<16x128xbf16> to vector<16x128xf32>
    %cst_160 = arith.constant 0.000000e+00 : f32
    %295 = vector.broadcast %cst_160 : f32 to vector<16x128xf32>
    %296 = arith.select %288, %294, %295 : vector<16x128xi1>, vector<16x128xf32>
    %297 = arith.addf %282, %296 : vector<16x128xf32>
    %c1_161 = arith.constant 1 : index
    %c0_162 = arith.constant 0 : index
    %c0_163 = arith.constant 0 : index
    %298 = vector.load %arg1[%c1_161, %c0_162, %c0_163] : memref<3x64x128xbf16, #tpu.memory_space<vmem>>, vector<1x16x128xbf16>
    %299 = vector.shape_cast %298 : vector<1x16x128xbf16> to vector<16x128xbf16>
    %300 = arith.extf %299 : vector<16x128xbf16> to vector<16x128xf32>
    %cst_164 = arith.constant 0.000000e+00 : f32
    %301 = vector.broadcast %cst_164 : f32 to vector<16x128xf32>
    %302 = arith.select %288, %300, %301 : vector<16x128xi1>, vector<16x128xf32>
    %303 = arith.addf %283, %302 : vector<16x128xf32>
    %c2_165 = arith.constant 2 : index
    %c0_166 = arith.constant 0 : index
    %c0_167 = arith.constant 0 : index
    %304 = vector.load %arg1[%c2_165, %c0_166, %c0_167] : memref<3x64x128xbf16, #tpu.memory_space<vmem>>, vector<1x16x128xbf16>
    %305 = vector.shape_cast %304 : vector<1x16x128xbf16> to vector<16x128xbf16>
    %306 = arith.extf %305 : vector<16x128xbf16> to vector<16x128xf32>
    %cst_168 = arith.constant 0.000000e+00 : f32
    %307 = vector.broadcast %cst_168 : f32 to vector<16x128xf32>
    %308 = arith.select %288, %306, %307 : vector<16x128xi1>, vector<16x128xf32>
    %309 = arith.addf %284, %308 : vector<16x128xf32>
    %c32_169 = arith.constant 32 : index
    %c0_170 = arith.constant 0 : index
    %310 = vector.load %arg2[%c32_169, %c0_170] : memref<64x128xi8, #tpu.memory_space<vmem>>, vector<16x128xi8>
    %311 = arith.extsi %310 : vector<16x128xi8> to vector<16x128xi32>
    %312 = vector.broadcast %c3_i32 : i32 to vector<16x128xi32>
    %313 = arith.cmpi eq, %311, %312 : vector<16x128xi32>
    %314 = arith.extui %313 : vector<16x128xi1> to vector<16x128xi32>
    %315 = arith.sitofp %314 : vector<16x128xi32> to vector<16x128xf32>
    %316 = arith.addf %291, %315 : vector<16x128xf32>
    %c0_171 = arith.constant 0 : index
    %c32_172 = arith.constant 32 : index
    %c0_173 = arith.constant 0 : index
    %317 = vector.load %arg1[%c0_171, %c32_172, %c0_173] : memref<3x64x128xbf16, #tpu.memory_space<vmem>>, vector<1x16x128xbf16>
    %318 = vector.shape_cast %317 : vector<1x16x128xbf16> to vector<16x128xbf16>
    %319 = arith.extf %318 : vector<16x128xbf16> to vector<16x128xf32>
    %cst_174 = arith.constant 0.000000e+00 : f32
    %320 = vector.broadcast %cst_174 : f32 to vector<16x128xf32>
    %321 = arith.select %313, %319, %320 : vector<16x128xi1>, vector<16x128xf32>
    %322 = arith.addf %297, %321 : vector<16x128xf32>
    %c1_175 = arith.constant 1 : index
    %c32_176 = arith.constant 32 : index
    %c0_177 = arith.constant 0 : index
    %323 = vector.load %arg1[%c1_175, %c32_176, %c0_177] : memref<3x64x128xbf16, #tpu.memory_space<vmem>>, vector<1x16x128xbf16>
    %324 = vector.shape_cast %323 : vector<1x16x128xbf16> to vector<16x128xbf16>
    %325 = arith.extf %324 : vector<16x128xbf16> to vector<16x128xf32>
    %cst_178 = arith.constant 0.000000e+00 : f32
    %326 = vector.broadcast %cst_178 : f32 to vector<16x128xf32>
    %327 = arith.select %313, %325, %326 : vector<16x128xi1>, vector<16x128xf32>
    %328 = arith.addf %303, %327 : vector<16x128xf32>
    %c2_179 = arith.constant 2 : index
    %c32_180 = arith.constant 32 : index
    %c0_181 = arith.constant 0 : index
    %329 = vector.load %arg1[%c2_179, %c32_180, %c0_181] : memref<3x64x128xbf16, #tpu.memory_space<vmem>>, vector<1x16x128xbf16>
    %330 = vector.shape_cast %329 : vector<1x16x128xbf16> to vector<16x128xbf16>
    %331 = arith.extf %330 : vector<16x128xbf16> to vector<16x128xf32>
    %cst_182 = arith.constant 0.000000e+00 : f32
    %332 = vector.broadcast %cst_182 : f32 to vector<16x128xf32>
    %333 = arith.select %313, %331, %332 : vector<16x128xi1>, vector<16x128xf32>
    %334 = arith.addf %309, %333 : vector<16x128xf32>
    %c1_183 = arith.constant 1 : index
    %c0_184 = arith.constant 0 : index
    %335 = vector.load %arg2[%c1_183, %c0_184] : memref<64x128xi8, #tpu.memory_space<vmem>>, vector<16x128xi8>
    %336 = arith.extsi %335 : vector<16x128xi8> to vector<16x128xi32>
    %337 = vector.broadcast %c3_i32 : i32 to vector<16x128xi32>
    %338 = arith.cmpi eq, %336, %337 : vector<16x128xi32>
    %339 = arith.extui %338 : vector<16x128xi1> to vector<16x128xi32>
    %340 = arith.sitofp %339 : vector<16x128xi32> to vector<16x128xf32>
    %341 = arith.addf %316, %340 : vector<16x128xf32>
    %c0_185 = arith.constant 0 : index
    %c1_186 = arith.constant 1 : index
    %c0_187 = arith.constant 0 : index
    %342 = vector.load %arg1[%c0_185, %c1_186, %c0_187] : memref<3x64x128xbf16, #tpu.memory_space<vmem>>, vector<1x16x128xbf16>
    %343 = vector.shape_cast %342 : vector<1x16x128xbf16> to vector<16x128xbf16>
    %344 = arith.extf %343 : vector<16x128xbf16> to vector<16x128xf32>
    %cst_188 = arith.constant 0.000000e+00 : f32
    %345 = vector.broadcast %cst_188 : f32 to vector<16x128xf32>
    %346 = arith.select %338, %344, %345 : vector<16x128xi1>, vector<16x128xf32>
    %347 = arith.addf %322, %346 : vector<16x128xf32>
    %c1_189 = arith.constant 1 : index
    %c1_190 = arith.constant 1 : index
    %c0_191 = arith.constant 0 : index
    %348 = vector.load %arg1[%c1_189, %c1_190, %c0_191] : memref<3x64x128xbf16, #tpu.memory_space<vmem>>, vector<1x16x128xbf16>
    %349 = vector.shape_cast %348 : vector<1x16x128xbf16> to vector<16x128xbf16>
    %350 = arith.extf %349 : vector<16x128xbf16> to vector<16x128xf32>
    %cst_192 = arith.constant 0.000000e+00 : f32
    %351 = vector.broadcast %cst_192 : f32 to vector<16x128xf32>
    %352 = arith.select %338, %350, %351 : vector<16x128xi1>, vector<16x128xf32>
    %353 = arith.addf %328, %352 : vector<16x128xf32>
    %c2_193 = arith.constant 2 : index
    %c1_194 = arith.constant 1 : index
    %c0_195 = arith.constant 0 : index
    %354 = vector.load %arg1[%c2_193, %c1_194, %c0_195] : memref<3x64x128xbf16, #tpu.memory_space<vmem>>, vector<1x16x128xbf16>
    %355 = vector.shape_cast %354 : vector<1x16x128xbf16> to vector<16x128xbf16>
    %356 = arith.extf %355 : vector<16x128xbf16> to vector<16x128xf32>
    %cst_196 = arith.constant 0.000000e+00 : f32
    %357 = vector.broadcast %cst_196 : f32 to vector<16x128xf32>
    %358 = arith.select %338, %356, %357 : vector<16x128xi1>, vector<16x128xf32>
    %359 = arith.addf %334, %358 : vector<16x128xf32>
    %360 = arith.truncf %341 : vector<16x128xf32> to vector<16x128xbf16>
    %cst_197 = arith.constant dense<0.000000e+00> : vector<16x128xf32>
    %361 = tpu.matmul %360, %0, %cst_197 {dimension_numbers = #tpu.dot_dimension_numbers<[1], [0], [0], [1], [0, 0, 1, 1], [], []>} : vector<16x128xbf16>, vector<128x128xbf16>, vector<16x128xf32> -> vector<16x128xf32>
    %362 = arith.truncf %347 : vector<16x128xf32> to vector<16x128xbf16>
    %cst_198 = arith.constant dense<0.000000e+00> : vector<16x128xf32>
    %363 = tpu.matmul %362, %0, %cst_198 {dimension_numbers = #tpu.dot_dimension_numbers<[1], [0], [0], [1], [0, 0, 1, 1], [], []>} : vector<16x128xbf16>, vector<128x128xbf16>, vector<16x128xf32> -> vector<16x128xf32>
    %364 = arith.truncf %353 : vector<16x128xf32> to vector<16x128xbf16>
    %cst_199 = arith.constant dense<0.000000e+00> : vector<16x128xf32>
    %365 = tpu.matmul %364, %0, %cst_199 {dimension_numbers = #tpu.dot_dimension_numbers<[1], [0], [0], [1], [0, 0, 1, 1], [], []>} : vector<16x128xbf16>, vector<128x128xbf16>, vector<16x128xf32> -> vector<16x128xf32>
    %366 = arith.truncf %359 : vector<16x128xf32> to vector<16x128xbf16>
    %cst_200 = arith.constant dense<0.000000e+00> : vector<16x128xf32>
    %367 = tpu.matmul %366, %0, %cst_200 {dimension_numbers = #tpu.dot_dimension_numbers<[1], [0], [0], [1], [0, 0, 1, 1], [], []>} : vector<16x128xbf16>, vector<128x128xbf16>, vector<16x128xf32> -> vector<16x128xf32>
    %368 = arith.cmpf ogt, %361, %277 : vector<16x128xf32>
    %369 = arith.select %368, %361, %277 : vector<16x128xi1>, vector<16x128xf32>
    %370 = arith.select %368, %363, %278 : vector<16x128xi1>, vector<16x128xf32>
    %371 = arith.select %368, %365, %279 : vector<16x128xi1>, vector<16x128xf32>
    %372 = arith.select %368, %367, %280 : vector<16x128xi1>, vector<16x128xf32>
    %c4_i32 = arith.constant 4 : i32
    %cst_201 = arith.constant 0.000000e+00 : f32
    %373 = vector.broadcast %cst_201 : f32 to vector<16x128xf32>
    %cst_202 = arith.constant 0.000000e+00 : f32
    %374 = vector.broadcast %cst_202 : f32 to vector<16x128xf32>
    %cst_203 = arith.constant 0.000000e+00 : f32
    %375 = vector.broadcast %cst_203 : f32 to vector<16x128xf32>
    %cst_204 = arith.constant 0.000000e+00 : f32
    %376 = vector.broadcast %cst_204 : f32 to vector<16x128xf32>
    %c0_205 = arith.constant 0 : index
    %c0_206 = arith.constant 0 : index
    %377 = vector.load %arg2[%c0_205, %c0_206] : memref<64x128xi8, #tpu.memory_space<vmem>>, vector<16x128xi8>
    %378 = arith.extsi %377 : vector<16x128xi8> to vector<16x128xi32>
    %379 = vector.broadcast %c4_i32 : i32 to vector<16x128xi32>
    %380 = arith.cmpi eq, %378, %379 : vector<16x128xi32>
    %381 = arith.extui %380 : vector<16x128xi1> to vector<16x128xi32>
    %382 = arith.sitofp %381 : vector<16x128xi32> to vector<16x128xf32>
    %383 = arith.addf %373, %382 : vector<16x128xf32>
    %c0_207 = arith.constant 0 : index
    %c0_208 = arith.constant 0 : index
    %c0_209 = arith.constant 0 : index
    %384 = vector.load %arg1[%c0_207, %c0_208, %c0_209] : memref<3x64x128xbf16, #tpu.memory_space<vmem>>, vector<1x16x128xbf16>
    %385 = vector.shape_cast %384 : vector<1x16x128xbf16> to vector<16x128xbf16>
    %386 = arith.extf %385 : vector<16x128xbf16> to vector<16x128xf32>
    %cst_210 = arith.constant 0.000000e+00 : f32
    %387 = vector.broadcast %cst_210 : f32 to vector<16x128xf32>
    %388 = arith.select %380, %386, %387 : vector<16x128xi1>, vector<16x128xf32>
    %389 = arith.addf %374, %388 : vector<16x128xf32>
    %c1_211 = arith.constant 1 : index
    %c0_212 = arith.constant 0 : index
    %c0_213 = arith.constant 0 : index
    %390 = vector.load %arg1[%c1_211, %c0_212, %c0_213] : memref<3x64x128xbf16, #tpu.memory_space<vmem>>, vector<1x16x128xbf16>
    %391 = vector.shape_cast %390 : vector<1x16x128xbf16> to vector<16x128xbf16>
    %392 = arith.extf %391 : vector<16x128xbf16> to vector<16x128xf32>
    %cst_214 = arith.constant 0.000000e+00 : f32
    %393 = vector.broadcast %cst_214 : f32 to vector<16x128xf32>
    %394 = arith.select %380, %392, %393 : vector<16x128xi1>, vector<16x128xf32>
    %395 = arith.addf %375, %394 : vector<16x128xf32>
    %c2_215 = arith.constant 2 : index
    %c0_216 = arith.constant 0 : index
    %c0_217 = arith.constant 0 : index
    %396 = vector.load %arg1[%c2_215, %c0_216, %c0_217] : memref<3x64x128xbf16, #tpu.memory_space<vmem>>, vector<1x16x128xbf16>
    %397 = vector.shape_cast %396 : vector<1x16x128xbf16> to vector<16x128xbf16>
    %398 = arith.extf %397 : vector<16x128xbf16> to vector<16x128xf32>
    %cst_218 = arith.constant 0.000000e+00 : f32
    %399 = vector.broadcast %cst_218 : f32 to vector<16x128xf32>
    %400 = arith.select %380, %398, %399 : vector<16x128xi1>, vector<16x128xf32>
    %401 = arith.addf %376, %400 : vector<16x128xf32>
    %c32_219 = arith.constant 32 : index
    %c0_220 = arith.constant 0 : index
    %402 = vector.load %arg2[%c32_219, %c0_220] : memref<64x128xi8, #tpu.memory_space<vmem>>, vector<16x128xi8>
    %403 = arith.extsi %402 : vector<16x128xi8> to vector<16x128xi32>
    %404 = vector.broadcast %c4_i32 : i32 to vector<16x128xi32>
    %405 = arith.cmpi eq, %403, %404 : vector<16x128xi32>
    %406 = arith.extui %405 : vector<16x128xi1> to vector<16x128xi32>
    %407 = arith.sitofp %406 : vector<16x128xi32> to vector<16x128xf32>
    %408 = arith.addf %383, %407 : vector<16x128xf32>
    %c0_221 = arith.constant 0 : index
    %c32_222 = arith.constant 32 : index
    %c0_223 = arith.constant 0 : index
    %409 = vector.load %arg1[%c0_221, %c32_222, %c0_223] : memref<3x64x128xbf16, #tpu.memory_space<vmem>>, vector<1x16x128xbf16>
    %410 = vector.shape_cast %409 : vector<1x16x128xbf16> to vector<16x128xbf16>
    %411 = arith.extf %410 : vector<16x128xbf16> to vector<16x128xf32>
    %cst_224 = arith.constant 0.000000e+00 : f32
    %412 = vector.broadcast %cst_224 : f32 to vector<16x128xf32>
    %413 = arith.select %405, %411, %412 : vector<16x128xi1>, vector<16x128xf32>
    %414 = arith.addf %389, %413 : vector<16x128xf32>
    %c1_225 = arith.constant 1 : index
    %c32_226 = arith.constant 32 : index
    %c0_227 = arith.constant 0 : index
    %415 = vector.load %arg1[%c1_225, %c32_226, %c0_227] : memref<3x64x128xbf16, #tpu.memory_space<vmem>>, vector<1x16x128xbf16>
    %416 = vector.shape_cast %415 : vector<1x16x128xbf16> to vector<16x128xbf16>
    %417 = arith.extf %416 : vector<16x128xbf16> to vector<16x128xf32>
    %cst_228 = arith.constant 0.000000e+00 : f32
    %418 = vector.broadcast %cst_228 : f32 to vector<16x128xf32>
    %419 = arith.select %405, %417, %418 : vector<16x128xi1>, vector<16x128xf32>
    %420 = arith.addf %395, %419 : vector<16x128xf32>
    %c2_229 = arith.constant 2 : index
    %c32_230 = arith.constant 32 : index
    %c0_231 = arith.constant 0 : index
    %421 = vector.load %arg1[%c2_229, %c32_230, %c0_231] : memref<3x64x128xbf16, #tpu.memory_space<vmem>>, vector<1x16x128xbf16>
    %422 = vector.shape_cast %421 : vector<1x16x128xbf16> to vector<16x128xbf16>
    %423 = arith.extf %422 : vector<16x128xbf16> to vector<16x128xf32>
    %cst_232 = arith.constant 0.000000e+00 : f32
    %424 = vector.broadcast %cst_232 : f32 to vector<16x128xf32>
    %425 = arith.select %405, %423, %424 : vector<16x128xi1>, vector<16x128xf32>
    %426 = arith.addf %401, %425 : vector<16x128xf32>
    %c1_233 = arith.constant 1 : index
    %c0_234 = arith.constant 0 : index
    %427 = vector.load %arg2[%c1_233, %c0_234] : memref<64x128xi8, #tpu.memory_space<vmem>>, vector<16x128xi8>
    %428 = arith.extsi %427 : vector<16x128xi8> to vector<16x128xi32>
    %429 = vector.broadcast %c4_i32 : i32 to vector<16x128xi32>
    %430 = arith.cmpi eq, %428, %429 : vector<16x128xi32>
    %431 = arith.extui %430 : vector<16x128xi1> to vector<16x128xi32>
    %432 = arith.sitofp %431 : vector<16x128xi32> to vector<16x128xf32>
    %433 = arith.addf %408, %432 : vector<16x128xf32>
    %c0_235 = arith.constant 0 : index
    %c1_236 = arith.constant 1 : index
    %c0_237 = arith.constant 0 : index
    %434 = vector.load %arg1[%c0_235, %c1_236, %c0_237] : memref<3x64x128xbf16, #tpu.memory_space<vmem>>, vector<1x16x128xbf16>
    %435 = vector.shape_cast %434 : vector<1x16x128xbf16> to vector<16x128xbf16>
    %436 = arith.extf %435 : vector<16x128xbf16> to vector<16x128xf32>
    %cst_238 = arith.constant 0.000000e+00 : f32
    %437 = vector.broadcast %cst_238 : f32 to vector<16x128xf32>
    %438 = arith.select %430, %436, %437 : vector<16x128xi1>, vector<16x128xf32>
    %439 = arith.addf %414, %438 : vector<16x128xf32>
    %c1_239 = arith.constant 1 : index
    %c1_240 = arith.constant 1 : index
    %c0_241 = arith.constant 0 : index
    %440 = vector.load %arg1[%c1_239, %c1_240, %c0_241] : memref<3x64x128xbf16, #tpu.memory_space<vmem>>, vector<1x16x128xbf16>
    %441 = vector.shape_cast %440 : vector<1x16x128xbf16> to vector<16x128xbf16>
    %442 = arith.extf %441 : vector<16x128xbf16> to vector<16x128xf32>
    %cst_242 = arith.constant 0.000000e+00 : f32
    %443 = vector.broadcast %cst_242 : f32 to vector<16x128xf32>
    %444 = arith.select %430, %442, %443 : vector<16x128xi1>, vector<16x128xf32>
    %445 = arith.addf %420, %444 : vector<16x128xf32>
    %c2_243 = arith.constant 2 : index
    %c1_244 = arith.constant 1 : index
    %c0_245 = arith.constant 0 : index
    %446 = vector.load %arg1[%c2_243, %c1_244, %c0_245] : memref<3x64x128xbf16, #tpu.memory_space<vmem>>, vector<1x16x128xbf16>
    %447 = vector.shape_cast %446 : vector<1x16x128xbf16> to vector<16x128xbf16>
    %448 = arith.extf %447 : vector<16x128xbf16> to vector<16x128xf32>
    %cst_246 = arith.constant 0.000000e+00 : f32
    %449 = vector.broadcast %cst_246 : f32 to vector<16x128xf32>
    %450 = arith.select %430, %448, %449 : vector<16x128xi1>, vector<16x128xf32>
    %451 = arith.addf %426, %450 : vector<16x128xf32>
    %452 = arith.truncf %433 : vector<16x128xf32> to vector<16x128xbf16>
    %cst_247 = arith.constant dense<0.000000e+00> : vector<16x128xf32>
    %453 = tpu.matmul %452, %0, %cst_247 {dimension_numbers = #tpu.dot_dimension_numbers<[1], [0], [0], [1], [0, 0, 1, 1], [], []>} : vector<16x128xbf16>, vector<128x128xbf16>, vector<16x128xf32> -> vector<16x128xf32>
    %454 = arith.truncf %439 : vector<16x128xf32> to vector<16x128xbf16>
    %cst_248 = arith.constant dense<0.000000e+00> : vector<16x128xf32>
    %455 = tpu.matmul %454, %0, %cst_248 {dimension_numbers = #tpu.dot_dimension_numbers<[1], [0], [0], [1], [0, 0, 1, 1], [], []>} : vector<16x128xbf16>, vector<128x128xbf16>, vector<16x128xf32> -> vector<16x128xf32>
    %456 = arith.truncf %445 : vector<16x128xf32> to vector<16x128xbf16>
    %cst_249 = arith.constant dense<0.000000e+00> : vector<16x128xf32>
    %457 = tpu.matmul %456, %0, %cst_249 {dimension_numbers = #tpu.dot_dimension_numbers<[1], [0], [0], [1], [0, 0, 1, 1], [], []>} : vector<16x128xbf16>, vector<128x128xbf16>, vector<16x128xf32> -> vector<16x128xf32>
    %458 = arith.truncf %451 : vector<16x128xf32> to vector<16x128xbf16>
    %cst_250 = arith.constant dense<0.000000e+00> : vector<16x128xf32>
    %459 = tpu.matmul %458, %0, %cst_250 {dimension_numbers = #tpu.dot_dimension_numbers<[1], [0], [0], [1], [0, 0, 1, 1], [], []>} : vector<16x128xbf16>, vector<128x128xbf16>, vector<16x128xf32> -> vector<16x128xf32>
    %460 = arith.cmpf ogt, %453, %369 : vector<16x128xf32>
    %461 = arith.select %460, %453, %369 : vector<16x128xi1>, vector<16x128xf32>
    %462 = arith.select %460, %455, %370 : vector<16x128xi1>, vector<16x128xf32>
    %463 = arith.select %460, %457, %371 : vector<16x128xi1>, vector<16x128xf32>
    %464 = arith.select %460, %459, %372 : vector<16x128xi1>, vector<16x128xf32>
    %c5_i32 = arith.constant 5 : i32
    %cst_251 = arith.constant 0.000000e+00 : f32
    %465 = vector.broadcast %cst_251 : f32 to vector<16x128xf32>
    %cst_252 = arith.constant 0.000000e+00 : f32
    %466 = vector.broadcast %cst_252 : f32 to vector<16x128xf32>
    %cst_253 = arith.constant 0.000000e+00 : f32
    %467 = vector.broadcast %cst_253 : f32 to vector<16x128xf32>
    %cst_254 = arith.constant 0.000000e+00 : f32
    %468 = vector.broadcast %cst_254 : f32 to vector<16x128xf32>
    %c0_255 = arith.constant 0 : index
    %c0_256 = arith.constant 0 : index
    %469 = vector.load %arg2[%c0_255, %c0_256] : memref<64x128xi8, #tpu.memory_space<vmem>>, vector<16x128xi8>
    %470 = arith.extsi %469 : vector<16x128xi8> to vector<16x128xi32>
    %471 = vector.broadcast %c5_i32 : i32 to vector<16x128xi32>
    %472 = arith.cmpi eq, %470, %471 : vector<16x128xi32>
    %473 = arith.extui %472 : vector<16x128xi1> to vector<16x128xi32>
    %474 = arith.sitofp %473 : vector<16x128xi32> to vector<16x128xf32>
    %475 = arith.addf %465, %474 : vector<16x128xf32>
    %c0_257 = arith.constant 0 : index
    %c0_258 = arith.constant 0 : index
    %c0_259 = arith.constant 0 : index
    %476 = vector.load %arg1[%c0_257, %c0_258, %c0_259] : memref<3x64x128xbf16, #tpu.memory_space<vmem>>, vector<1x16x128xbf16>
    %477 = vector.shape_cast %476 : vector<1x16x128xbf16> to vector<16x128xbf16>
    %478 = arith.extf %477 : vector<16x128xbf16> to vector<16x128xf32>
    %cst_260 = arith.constant 0.000000e+00 : f32
    %479 = vector.broadcast %cst_260 : f32 to vector<16x128xf32>
    %480 = arith.select %472, %478, %479 : vector<16x128xi1>, vector<16x128xf32>
    %481 = arith.addf %466, %480 : vector<16x128xf32>
    %c1_261 = arith.constant 1 : index
    %c0_262 = arith.constant 0 : index
    %c0_263 = arith.constant 0 : index
    %482 = vector.load %arg1[%c1_261, %c0_262, %c0_263] : memref<3x64x128xbf16, #tpu.memory_space<vmem>>, vector<1x16x128xbf16>
    %483 = vector.shape_cast %482 : vector<1x16x128xbf16> to vector<16x128xbf16>
    %484 = arith.extf %483 : vector<16x128xbf16> to vector<16x128xf32>
    %cst_264 = arith.constant 0.000000e+00 : f32
    %485 = vector.broadcast %cst_264 : f32 to vector<16x128xf32>
    %486 = arith.select %472, %484, %485 : vector<16x128xi1>, vector<16x128xf32>
    %487 = arith.addf %467, %486 : vector<16x128xf32>
    %c2_265 = arith.constant 2 : index
    %c0_266 = arith.constant 0 : index
    %c0_267 = arith.constant 0 : index
    %488 = vector.load %arg1[%c2_265, %c0_266, %c0_267] : memref<3x64x128xbf16, #tpu.memory_space<vmem>>, vector<1x16x128xbf16>
    %489 = vector.shape_cast %488 : vector<1x16x128xbf16> to vector<16x128xbf16>
    %490 = arith.extf %489 : vector<16x128xbf16> to vector<16x128xf32>
    %cst_268 = arith.constant 0.000000e+00 : f32
    %491 = vector.broadcast %cst_268 : f32 to vector<16x128xf32>
    %492 = arith.select %472, %490, %491 : vector<16x128xi1>, vector<16x128xf32>
    %493 = arith.addf %468, %492 : vector<16x128xf32>
    %c32_269 = arith.constant 32 : index
    %c0_270 = arith.constant 0 : index
    %494 = vector.load %arg2[%c32_269, %c0_270] : memref<64x128xi8, #tpu.memory_space<vmem>>, vector<16x128xi8>
    %495 = arith.extsi %494 : vector<16x128xi8> to vector<16x128xi32>
    %496 = vector.broadcast %c5_i32 : i32 to vector<16x128xi32>
    %497 = arith.cmpi eq, %495, %496 : vector<16x128xi32>
    %498 = arith.extui %497 : vector<16x128xi1> to vector<16x128xi32>
    %499 = arith.sitofp %498 : vector<16x128xi32> to vector<16x128xf32>
    %500 = arith.addf %475, %499 : vector<16x128xf32>
    %c0_271 = arith.constant 0 : index
    %c32_272 = arith.constant 32 : index
    %c0_273 = arith.constant 0 : index
    %501 = vector.load %arg1[%c0_271, %c32_272, %c0_273] : memref<3x64x128xbf16, #tpu.memory_space<vmem>>, vector<1x16x128xbf16>
    %502 = vector.shape_cast %501 : vector<1x16x128xbf16> to vector<16x128xbf16>
    %503 = arith.extf %502 : vector<16x128xbf16> to vector<16x128xf32>
    %cst_274 = arith.constant 0.000000e+00 : f32
    %504 = vector.broadcast %cst_274 : f32 to vector<16x128xf32>
    %505 = arith.select %497, %503, %504 : vector<16x128xi1>, vector<16x128xf32>
    %506 = arith.addf %481, %505 : vector<16x128xf32>
    %c1_275 = arith.constant 1 : index
    %c32_276 = arith.constant 32 : index
    %c0_277 = arith.constant 0 : index
    %507 = vector.load %arg1[%c1_275, %c32_276, %c0_277] : memref<3x64x128xbf16, #tpu.memory_space<vmem>>, vector<1x16x128xbf16>
    %508 = vector.shape_cast %507 : vector<1x16x128xbf16> to vector<16x128xbf16>
    %509 = arith.extf %508 : vector<16x128xbf16> to vector<16x128xf32>
    %cst_278 = arith.constant 0.000000e+00 : f32
    %510 = vector.broadcast %cst_278 : f32 to vector<16x128xf32>
    %511 = arith.select %497, %509, %510 : vector<16x128xi1>, vector<16x128xf32>
    %512 = arith.addf %487, %511 : vector<16x128xf32>
    %c2_279 = arith.constant 2 : index
    %c32_280 = arith.constant 32 : index
    %c0_281 = arith.constant 0 : index
    %513 = vector.load %arg1[%c2_279, %c32_280, %c0_281] : memref<3x64x128xbf16, #tpu.memory_space<vmem>>, vector<1x16x128xbf16>
    %514 = vector.shape_cast %513 : vector<1x16x128xbf16> to vector<16x128xbf16>
    %515 = arith.extf %514 : vector<16x128xbf16> to vector<16x128xf32>
    %cst_282 = arith.constant 0.000000e+00 : f32
    %516 = vector.broadcast %cst_282 : f32 to vector<16x128xf32>
    %517 = arith.select %497, %515, %516 : vector<16x128xi1>, vector<16x128xf32>
    %518 = arith.addf %493, %517 : vector<16x128xf32>
    %c1_283 = arith.constant 1 : index
    %c0_284 = arith.constant 0 : index
    %519 = vector.load %arg2[%c1_283, %c0_284] : memref<64x128xi8, #tpu.memory_space<vmem>>, vector<16x128xi8>
    %520 = arith.extsi %519 : vector<16x128xi8> to vector<16x128xi32>
    %521 = vector.broadcast %c5_i32 : i32 to vector<16x128xi32>
    %522 = arith.cmpi eq, %520, %521 : vector<16x128xi32>
    %523 = arith.extui %522 : vector<16x128xi1> to vector<16x128xi32>
    %524 = arith.sitofp %523 : vector<16x128xi32> to vector<16x128xf32>
    %525 = arith.addf %500, %524 : vector<16x128xf32>
    %c0_285 = arith.constant 0 : index
    %c1_286 = arith.constant 1 : index
    %c0_287 = arith.constant 0 : index
    %526 = vector.load %arg1[%c0_285, %c1_286, %c0_287] : memref<3x64x128xbf16, #tpu.memory_space<vmem>>, vector<1x16x128xbf16>
    %527 = vector.shape_cast %526 : vector<1x16x128xbf16> to vector<16x128xbf16>
    %528 = arith.extf %527 : vector<16x128xbf16> to vector<16x128xf32>
    %cst_288 = arith.constant 0.000000e+00 : f32
    %529 = vector.broadcast %cst_288 : f32 to vector<16x128xf32>
    %530 = arith.select %522, %528, %529 : vector<16x128xi1>, vector<16x128xf32>
    %531 = arith.addf %506, %530 : vector<16x128xf32>
    %c1_289 = arith.constant 1 : index
    %c1_290 = arith.constant 1 : index
    %c0_291 = arith.constant 0 : index
    %532 = vector.load %arg1[%c1_289, %c1_290, %c0_291] : memref<3x64x128xbf16, #tpu.memory_space<vmem>>, vector<1x16x128xbf16>
    %533 = vector.shape_cast %532 : vector<1x16x128xbf16> to vector<16x128xbf16>
    %534 = arith.extf %533 : vector<16x128xbf16> to vector<16x128xf32>
    %cst_292 = arith.constant 0.000000e+00 : f32
    %535 = vector.broadcast %cst_292 : f32 to vector<16x128xf32>
    %536 = arith.select %522, %534, %535 : vector<16x128xi1>, vector<16x128xf32>
    %537 = arith.addf %512, %536 : vector<16x128xf32>
    %c2_293 = arith.constant 2 : index
    %c1_294 = arith.constant 1 : index
    %c0_295 = arith.constant 0 : index
    %538 = vector.load %arg1[%c2_293, %c1_294, %c0_295] : memref<3x64x128xbf16, #tpu.memory_space<vmem>>, vector<1x16x128xbf16>
    %539 = vector.shape_cast %538 : vector<1x16x128xbf16> to vector<16x128xbf16>
    %540 = arith.extf %539 : vector<16x128xbf16> to vector<16x128xf32>
    %cst_296 = arith.constant 0.000000e+00 : f32
    %541 = vector.broadcast %cst_296 : f32 to vector<16x128xf32>
    %542 = arith.select %522, %540, %541 : vector<16x128xi1>, vector<16x128xf32>
    %543 = arith.addf %518, %542 : vector<16x128xf32>
    %544 = arith.truncf %525 : vector<16x128xf32> to vector<16x128xbf16>
    %cst_297 = arith.constant dense<0.000000e+00> : vector<16x128xf32>
    %545 = tpu.matmul %544, %0, %cst_297 {dimension_numbers = #tpu.dot_dimension_numbers<[1], [0], [0], [1], [0, 0, 1, 1], [], []>} : vector<16x128xbf16>, vector<128x128xbf16>, vector<16x128xf32> -> vector<16x128xf32>
    %546 = arith.truncf %531 : vector<16x128xf32> to vector<16x128xbf16>
    %cst_298 = arith.constant dense<0.000000e+00> : vector<16x128xf32>
    %547 = tpu.matmul %546, %0, %cst_298 {dimension_numbers = #tpu.dot_dimension_numbers<[1], [0], [0], [1], [0, 0, 1, 1], [], []>} : vector<16x128xbf16>, vector<128x128xbf16>, vector<16x128xf32> -> vector<16x128xf32>
    %548 = arith.truncf %537 : vector<16x128xf32> to vector<16x128xbf16>
    %cst_299 = arith.constant dense<0.000000e+00> : vector<16x128xf32>
    %549 = tpu.matmul %548, %0, %cst_299 {dimension_numbers = #tpu.dot_dimension_numbers<[1], [0], [0], [1], [0, 0, 1, 1], [], []>} : vector<16x128xbf16>, vector<128x128xbf16>, vector<16x128xf32> -> vector<16x128xf32>
    %550 = arith.truncf %543 : vector<16x128xf32> to vector<16x128xbf16>
    %cst_300 = arith.constant dense<0.000000e+00> : vector<16x128xf32>
    %551 = tpu.matmul %550, %0, %cst_300 {dimension_numbers = #tpu.dot_dimension_numbers<[1], [0], [0], [1], [0, 0, 1, 1], [], []>} : vector<16x128xbf16>, vector<128x128xbf16>, vector<16x128xf32> -> vector<16x128xf32>
    %552 = arith.cmpf ogt, %545, %461 : vector<16x128xf32>
    %553 = arith.select %552, %545, %461 : vector<16x128xi1>, vector<16x128xf32>
    %554 = arith.select %552, %547, %462 : vector<16x128xi1>, vector<16x128xf32>
    %555 = arith.select %552, %549, %463 : vector<16x128xi1>, vector<16x128xf32>
    %556 = arith.select %552, %551, %464 : vector<16x128xi1>, vector<16x128xf32>
    %c6_i32 = arith.constant 6 : i32
    %cst_301 = arith.constant 0.000000e+00 : f32
    %557 = vector.broadcast %cst_301 : f32 to vector<16x128xf32>
    %cst_302 = arith.constant 0.000000e+00 : f32
    %558 = vector.broadcast %cst_302 : f32 to vector<16x128xf32>
    %cst_303 = arith.constant 0.000000e+00 : f32
    %559 = vector.broadcast %cst_303 : f32 to vector<16x128xf32>
    %cst_304 = arith.constant 0.000000e+00 : f32
    %560 = vector.broadcast %cst_304 : f32 to vector<16x128xf32>
    %c0_305 = arith.constant 0 : index
    %c0_306 = arith.constant 0 : index
    %561 = vector.load %arg2[%c0_305, %c0_306] : memref<64x128xi8, #tpu.memory_space<vmem>>, vector<16x128xi8>
    %562 = arith.extsi %561 : vector<16x128xi8> to vector<16x128xi32>
    %563 = vector.broadcast %c6_i32 : i32 to vector<16x128xi32>
    %564 = arith.cmpi eq, %562, %563 : vector<16x128xi32>
    %565 = arith.extui %564 : vector<16x128xi1> to vector<16x128xi32>
    %566 = arith.sitofp %565 : vector<16x128xi32> to vector<16x128xf32>
    %567 = arith.addf %557, %566 : vector<16x128xf32>
    %c0_307 = arith.constant 0 : index
    %c0_308 = arith.constant 0 : index
    %c0_309 = arith.constant 0 : index
    %568 = vector.load %arg1[%c0_307, %c0_308, %c0_309] : memref<3x64x128xbf16, #tpu.memory_space<vmem>>, vector<1x16x128xbf16>
    %569 = vector.shape_cast %568 : vector<1x16x128xbf16> to vector<16x128xbf16>
    %570 = arith.extf %569 : vector<16x128xbf16> to vector<16x128xf32>
    %cst_310 = arith.constant 0.000000e+00 : f32
    %571 = vector.broadcast %cst_310 : f32 to vector<16x128xf32>
    %572 = arith.select %564, %570, %571 : vector<16x128xi1>, vector<16x128xf32>
    %573 = arith.addf %558, %572 : vector<16x128xf32>
    %c1_311 = arith.constant 1 : index
    %c0_312 = arith.constant 0 : index
    %c0_313 = arith.constant 0 : index
    %574 = vector.load %arg1[%c1_311, %c0_312, %c0_313] : memref<3x64x128xbf16, #tpu.memory_space<vmem>>, vector<1x16x128xbf16>
    %575 = vector.shape_cast %574 : vector<1x16x128xbf16> to vector<16x128xbf16>
    %576 = arith.extf %575 : vector<16x128xbf16> to vector<16x128xf32>
    %cst_314 = arith.constant 0.000000e+00 : f32
    %577 = vector.broadcast %cst_314 : f32 to vector<16x128xf32>
    %578 = arith.select %564, %576, %577 : vector<16x128xi1>, vector<16x128xf32>
    %579 = arith.addf %559, %578 : vector<16x128xf32>
    %c2_315 = arith.constant 2 : index
    %c0_316 = arith.constant 0 : index
    %c0_317 = arith.constant 0 : index
    %580 = vector.load %arg1[%c2_315, %c0_316, %c0_317] : memref<3x64x128xbf16, #tpu.memory_space<vmem>>, vector<1x16x128xbf16>
    %581 = vector.shape_cast %580 : vector<1x16x128xbf16> to vector<16x128xbf16>
    %582 = arith.extf %581 : vector<16x128xbf16> to vector<16x128xf32>
    %cst_318 = arith.constant 0.000000e+00 : f32
    %583 = vector.broadcast %cst_318 : f32 to vector<16x128xf32>
    %584 = arith.select %564, %582, %583 : vector<16x128xi1>, vector<16x128xf32>
    %585 = arith.addf %560, %584 : vector<16x128xf32>
    %c32_319 = arith.constant 32 : index
    %c0_320 = arith.constant 0 : index
    %586 = vector.load %arg2[%c32_319, %c0_320] : memref<64x128xi8, #tpu.memory_space<vmem>>, vector<16x128xi8>
    %587 = arith.extsi %586 : vector<16x128xi8> to vector<16x128xi32>
    %588 = vector.broadcast %c6_i32 : i32 to vector<16x128xi32>
    %589 = arith.cmpi eq, %587, %588 : vector<16x128xi32>
    %590 = arith.extui %589 : vector<16x128xi1> to vector<16x128xi32>
    %591 = arith.sitofp %590 : vector<16x128xi32> to vector<16x128xf32>
    %592 = arith.addf %567, %591 : vector<16x128xf32>
    %c0_321 = arith.constant 0 : index
    %c32_322 = arith.constant 32 : index
    %c0_323 = arith.constant 0 : index
    %593 = vector.load %arg1[%c0_321, %c32_322, %c0_323] : memref<3x64x128xbf16, #tpu.memory_space<vmem>>, vector<1x16x128xbf16>
    %594 = vector.shape_cast %593 : vector<1x16x128xbf16> to vector<16x128xbf16>
    %595 = arith.extf %594 : vector<16x128xbf16> to vector<16x128xf32>
    %cst_324 = arith.constant 0.000000e+00 : f32
    %596 = vector.broadcast %cst_324 : f32 to vector<16x128xf32>
    %597 = arith.select %589, %595, %596 : vector<16x128xi1>, vector<16x128xf32>
    %598 = arith.addf %573, %597 : vector<16x128xf32>
    %c1_325 = arith.constant 1 : index
    %c32_326 = arith.constant 32 : index
    %c0_327 = arith.constant 0 : index
    %599 = vector.load %arg1[%c1_325, %c32_326, %c0_327] : memref<3x64x128xbf16, #tpu.memory_space<vmem>>, vector<1x16x128xbf16>
    %600 = vector.shape_cast %599 : vector<1x16x128xbf16> to vector<16x128xbf16>
    %601 = arith.extf %600 : vector<16x128xbf16> to vector<16x128xf32>
    %cst_328 = arith.constant 0.000000e+00 : f32
    %602 = vector.broadcast %cst_328 : f32 to vector<16x128xf32>
    %603 = arith.select %589, %601, %602 : vector<16x128xi1>, vector<16x128xf32>
    %604 = arith.addf %579, %603 : vector<16x128xf32>
    %c2_329 = arith.constant 2 : index
    %c32_330 = arith.constant 32 : index
    %c0_331 = arith.constant 0 : index
    %605 = vector.load %arg1[%c2_329, %c32_330, %c0_331] : memref<3x64x128xbf16, #tpu.memory_space<vmem>>, vector<1x16x128xbf16>
    %606 = vector.shape_cast %605 : vector<1x16x128xbf16> to vector<16x128xbf16>
    %607 = arith.extf %606 : vector<16x128xbf16> to vector<16x128xf32>
    %cst_332 = arith.constant 0.000000e+00 : f32
    %608 = vector.broadcast %cst_332 : f32 to vector<16x128xf32>
    %609 = arith.select %589, %607, %608 : vector<16x128xi1>, vector<16x128xf32>
    %610 = arith.addf %585, %609 : vector<16x128xf32>
    %c1_333 = arith.constant 1 : index
    %c0_334 = arith.constant 0 : index
    %611 = vector.load %arg2[%c1_333, %c0_334] : memref<64x128xi8, #tpu.memory_space<vmem>>, vector<16x128xi8>
    %612 = arith.extsi %611 : vector<16x128xi8> to vector<16x128xi32>
    %613 = vector.broadcast %c6_i32 : i32 to vector<16x128xi32>
    %614 = arith.cmpi eq, %612, %613 : vector<16x128xi32>
    %615 = arith.extui %614 : vector<16x128xi1> to vector<16x128xi32>
    %616 = arith.sitofp %615 : vector<16x128xi32> to vector<16x128xf32>
    %617 = arith.addf %592, %616 : vector<16x128xf32>
    %c0_335 = arith.constant 0 : index
    %c1_336 = arith.constant 1 : index
    %c0_337 = arith.constant 0 : index
    %618 = vector.load %arg1[%c0_335, %c1_336, %c0_337] : memref<3x64x128xbf16, #tpu.memory_space<vmem>>, vector<1x16x128xbf16>
    %619 = vector.shape_cast %618 : vector<1x16x128xbf16> to vector<16x128xbf16>
    %620 = arith.extf %619 : vector<16x128xbf16> to vector<16x128xf32>
    %cst_338 = arith.constant 0.000000e+00 : f32
    %621 = vector.broadcast %cst_338 : f32 to vector<16x128xf32>
    %622 = arith.select %614, %620, %621 : vector<16x128xi1>, vector<16x128xf32>
    %623 = arith.addf %598, %622 : vector<16x128xf32>
    %c1_339 = arith.constant 1 : index
    %c1_340 = arith.constant 1 : index
    %c0_341 = arith.constant 0 : index
    %624 = vector.load %arg1[%c1_339, %c1_340, %c0_341] : memref<3x64x128xbf16, #tpu.memory_space<vmem>>, vector<1x16x128xbf16>
    %625 = vector.shape_cast %624 : vector<1x16x128xbf16> to vector<16x128xbf16>
    %626 = arith.extf %625 : vector<16x128xbf16> to vector<16x128xf32>
    %cst_342 = arith.constant 0.000000e+00 : f32
    %627 = vector.broadcast %cst_342 : f32 to vector<16x128xf32>
    %628 = arith.select %614, %626, %627 : vector<16x128xi1>, vector<16x128xf32>
    %629 = arith.addf %604, %628 : vector<16x128xf32>
    %c2_343 = arith.constant 2 : index
    %c1_344 = arith.constant 1 : index
    %c0_345 = arith.constant 0 : index
    %630 = vector.load %arg1[%c2_343, %c1_344, %c0_345] : memref<3x64x128xbf16, #tpu.memory_space<vmem>>, vector<1x16x128xbf16>
    %631 = vector.shape_cast %630 : vector<1x16x128xbf16> to vector<16x128xbf16>
    %632 = arith.extf %631 : vector<16x128xbf16> to vector<16x128xf32>
    %cst_346 = arith.constant 0.000000e+00 : f32
    %633 = vector.broadcast %cst_346 : f32 to vector<16x128xf32>
    %634 = arith.select %614, %632, %633 : vector<16x128xi1>, vector<16x128xf32>
    %635 = arith.addf %610, %634 : vector<16x128xf32>
    %636 = arith.truncf %617 : vector<16x128xf32> to vector<16x128xbf16>
    %cst_347 = arith.constant dense<0.000000e+00> : vector<16x128xf32>
    %637 = tpu.matmul %636, %0, %cst_347 {dimension_numbers = #tpu.dot_dimension_numbers<[1], [0], [0], [1], [0, 0, 1, 1], [], []>} : vector<16x128xbf16>, vector<128x128xbf16>, vector<16x128xf32> -> vector<16x128xf32>
    %638 = arith.truncf %623 : vector<16x128xf32> to vector<16x128xbf16>
    %cst_348 = arith.constant dense<0.000000e+00> : vector<16x128xf32>
    %639 = tpu.matmul %638, %0, %cst_348 {dimension_numbers = #tpu.dot_dimension_numbers<[1], [0], [0], [1], [0, 0, 1, 1], [], []>} : vector<16x128xbf16>, vector<128x128xbf16>, vector<16x128xf32> -> vector<16x128xf32>
    %640 = arith.truncf %629 : vector<16x128xf32> to vector<16x128xbf16>
    %cst_349 = arith.constant dense<0.000000e+00> : vector<16x128xf32>
    %641 = tpu.matmul %640, %0, %cst_349 {dimension_numbers = #tpu.dot_dimension_numbers<[1], [0], [0], [1], [0, 0, 1, 1], [], []>} : vector<16x128xbf16>, vector<128x128xbf16>, vector<16x128xf32> -> vector<16x128xf32>
    %642 = arith.truncf %635 : vector<16x128xf32> to vector<16x128xbf16>
    %cst_350 = arith.constant dense<0.000000e+00> : vector<16x128xf32>
    %643 = tpu.matmul %642, %0, %cst_350 {dimension_numbers = #tpu.dot_dimension_numbers<[1], [0], [0], [1], [0, 0, 1, 1], [], []>} : vector<16x128xbf16>, vector<128x128xbf16>, vector<16x128xf32> -> vector<16x128xf32>
    %644 = arith.cmpf ogt, %637, %553 : vector<16x128xf32>
    %645 = arith.select %644, %637, %553 : vector<16x128xi1>, vector<16x128xf32>
    %646 = arith.select %644, %639, %554 : vector<16x128xi1>, vector<16x128xf32>
    %647 = arith.select %644, %641, %555 : vector<16x128xi1>, vector<16x128xf32>
    %648 = arith.select %644, %643, %556 : vector<16x128xi1>, vector<16x128xf32>
    %c7_i32 = arith.constant 7 : i32
    %cst_351 = arith.constant 0.000000e+00 : f32
    %649 = vector.broadcast %cst_351 : f32 to vector<16x128xf32>
    %cst_352 = arith.constant 0.000000e+00 : f32
    %650 = vector.broadcast %cst_352 : f32 to vector<16x128xf32>
    %cst_353 = arith.constant 0.000000e+00 : f32
    %651 = vector.broadcast %cst_353 : f32 to vector<16x128xf32>
    %cst_354 = arith.constant 0.000000e+00 : f32
    %652 = vector.broadcast %cst_354 : f32 to vector<16x128xf32>
    %c0_355 = arith.constant 0 : index
    %c0_356 = arith.constant 0 : index
    %653 = vector.load %arg2[%c0_355, %c0_356] : memref<64x128xi8, #tpu.memory_space<vmem>>, vector<16x128xi8>
    %654 = arith.extsi %653 : vector<16x128xi8> to vector<16x128xi32>
    %655 = vector.broadcast %c7_i32 : i32 to vector<16x128xi32>
    %656 = arith.cmpi eq, %654, %655 : vector<16x128xi32>
    %657 = arith.extui %656 : vector<16x128xi1> to vector<16x128xi32>
    %658 = arith.sitofp %657 : vector<16x128xi32> to vector<16x128xf32>
    %659 = arith.addf %649, %658 : vector<16x128xf32>
    %c0_357 = arith.constant 0 : index
    %c0_358 = arith.constant 0 : index
    %c0_359 = arith.constant 0 : index
    %660 = vector.load %arg1[%c0_357, %c0_358, %c0_359] : memref<3x64x128xbf16, #tpu.memory_space<vmem>>, vector<1x16x128xbf16>
    %661 = vector.shape_cast %660 : vector<1x16x128xbf16> to vector<16x128xbf16>
    %662 = arith.extf %661 : vector<16x128xbf16> to vector<16x128xf32>
    %cst_360 = arith.constant 0.000000e+00 : f32
    %663 = vector.broadcast %cst_360 : f32 to vector<16x128xf32>
    %664 = arith.select %656, %662, %663 : vector<16x128xi1>, vector<16x128xf32>
    %665 = arith.addf %650, %664 : vector<16x128xf32>
    %c1_361 = arith.constant 1 : index
    %c0_362 = arith.constant 0 : index
    %c0_363 = arith.constant 0 : index
    %666 = vector.load %arg1[%c1_361, %c0_362, %c0_363] : memref<3x64x128xbf16, #tpu.memory_space<vmem>>, vector<1x16x128xbf16>
    %667 = vector.shape_cast %666 : vector<1x16x128xbf16> to vector<16x128xbf16>
    %668 = arith.extf %667 : vector<16x128xbf16> to vector<16x128xf32>
    %cst_364 = arith.constant 0.000000e+00 : f32
    %669 = vector.broadcast %cst_364 : f32 to vector<16x128xf32>
    %670 = arith.select %656, %668, %669 : vector<16x128xi1>, vector<16x128xf32>
    %671 = arith.addf %651, %670 : vector<16x128xf32>
    %c2_365 = arith.constant 2 : index
    %c0_366 = arith.constant 0 : index
    %c0_367 = arith.constant 0 : index
    %672 = vector.load %arg1[%c2_365, %c0_366, %c0_367] : memref<3x64x128xbf16, #tpu.memory_space<vmem>>, vector<1x16x128xbf16>
    %673 = vector.shape_cast %672 : vector<1x16x128xbf16> to vector<16x128xbf16>
    %674 = arith.extf %673 : vector<16x128xbf16> to vector<16x128xf32>
    %cst_368 = arith.constant 0.000000e+00 : f32
    %675 = vector.broadcast %cst_368 : f32 to vector<16x128xf32>
    %676 = arith.select %656, %674, %675 : vector<16x128xi1>, vector<16x128xf32>
    %677 = arith.addf %652, %676 : vector<16x128xf32>
    %c32_369 = arith.constant 32 : index
    %c0_370 = arith.constant 0 : index
    %678 = vector.load %arg2[%c32_369, %c0_370] : memref<64x128xi8, #tpu.memory_space<vmem>>, vector<16x128xi8>
    %679 = arith.extsi %678 : vector<16x128xi8> to vector<16x128xi32>
    %680 = vector.broadcast %c7_i32 : i32 to vector<16x128xi32>
    %681 = arith.cmpi eq, %679, %680 : vector<16x128xi32>
    %682 = arith.extui %681 : vector<16x128xi1> to vector<16x128xi32>
    %683 = arith.sitofp %682 : vector<16x128xi32> to vector<16x128xf32>
    %684 = arith.addf %659, %683 : vector<16x128xf32>
    %c0_371 = arith.constant 0 : index
    %c32_372 = arith.constant 32 : index
    %c0_373 = arith.constant 0 : index
    %685 = vector.load %arg1[%c0_371, %c32_372, %c0_373] : memref<3x64x128xbf16, #tpu.memory_space<vmem>>, vector<1x16x128xbf16>
    %686 = vector.shape_cast %685 : vector<1x16x128xbf16> to vector<16x128xbf16>
    %687 = arith.extf %686 : vector<16x128xbf16> to vector<16x128xf32>
    %cst_374 = arith.constant 0.000000e+00 : f32
    %688 = vector.broadcast %cst_374 : f32 to vector<16x128xf32>
    %689 = arith.select %681, %687, %688 : vector<16x128xi1>, vector<16x128xf32>
    %690 = arith.addf %665, %689 : vector<16x128xf32>
    %c1_375 = arith.constant 1 : index
    %c32_376 = arith.constant 32 : index
    %c0_377 = arith.constant 0 : index
    %691 = vector.load %arg1[%c1_375, %c32_376, %c0_377] : memref<3x64x128xbf16, #tpu.memory_space<vmem>>, vector<1x16x128xbf16>
    %692 = vector.shape_cast %691 : vector<1x16x128xbf16> to vector<16x128xbf16>
    %693 = arith.extf %692 : vector<16x128xbf16> to vector<16x128xf32>
    %cst_378 = arith.constant 0.000000e+00 : f32
    %694 = vector.broadcast %cst_378 : f32 to vector<16x128xf32>
    %695 = arith.select %681, %693, %694 : vector<16x128xi1>, vector<16x128xf32>
    %696 = arith.addf %671, %695 : vector<16x128xf32>
    %c2_379 = arith.constant 2 : index
    %c32_380 = arith.constant 32 : index
    %c0_381 = arith.constant 0 : index
    %697 = vector.load %arg1[%c2_379, %c32_380, %c0_381] : memref<3x64x128xbf16, #tpu.memory_space<vmem>>, vector<1x16x128xbf16>
    %698 = vector.shape_cast %697 : vector<1x16x128xbf16> to vector<16x128xbf16>
    %699 = arith.extf %698 : vector<16x128xbf16> to vector<16x128xf32>
    %cst_382 = arith.constant 0.000000e+00 : f32
    %700 = vector.broadcast %cst_382 : f32 to vector<16x128xf32>
    %701 = arith.select %681, %699, %700 : vector<16x128xi1>, vector<16x128xf32>
    %702 = arith.addf %677, %701 : vector<16x128xf32>
    %c1_383 = arith.constant 1 : index
    %c0_384 = arith.constant 0 : index
    %703 = vector.load %arg2[%c1_383, %c0_384] : memref<64x128xi8, #tpu.memory_space<vmem>>, vector<16x128xi8>
    %704 = arith.extsi %703 : vector<16x128xi8> to vector<16x128xi32>
    %705 = vector.broadcast %c7_i32 : i32 to vector<16x128xi32>
    %706 = arith.cmpi eq, %704, %705 : vector<16x128xi32>
    %707 = arith.extui %706 : vector<16x128xi1> to vector<16x128xi32>
    %708 = arith.sitofp %707 : vector<16x128xi32> to vector<16x128xf32>
    %709 = arith.addf %684, %708 : vector<16x128xf32>
    %c0_385 = arith.constant 0 : index
    %c1_386 = arith.constant 1 : index
    %c0_387 = arith.constant 0 : index
    %710 = vector.load %arg1[%c0_385, %c1_386, %c0_387] : memref<3x64x128xbf16, #tpu.memory_space<vmem>>, vector<1x16x128xbf16>
    %711 = vector.shape_cast %710 : vector<1x16x128xbf16> to vector<16x128xbf16>
    %712 = arith.extf %711 : vector<16x128xbf16> to vector<16x128xf32>
    %cst_388 = arith.constant 0.000000e+00 : f32
    %713 = vector.broadcast %cst_388 : f32 to vector<16x128xf32>
    %714 = arith.select %706, %712, %713 : vector<16x128xi1>, vector<16x128xf32>
    %715 = arith.addf %690, %714 : vector<16x128xf32>
    %c1_389 = arith.constant 1 : index
    %c1_390 = arith.constant 1 : index
    %c0_391 = arith.constant 0 : index
    %716 = vector.load %arg1[%c1_389, %c1_390, %c0_391] : memref<3x64x128xbf16, #tpu.memory_space<vmem>>, vector<1x16x128xbf16>
    %717 = vector.shape_cast %716 : vector<1x16x128xbf16> to vector<16x128xbf16>
    %718 = arith.extf %717 : vector<16x128xbf16> to vector<16x128xf32>
    %cst_392 = arith.constant 0.000000e+00 : f32
    %719 = vector.broadcast %cst_392 : f32 to vector<16x128xf32>
    %720 = arith.select %706, %718, %719 : vector<16x128xi1>, vector<16x128xf32>
    %721 = arith.addf %696, %720 : vector<16x128xf32>
    %c2_393 = arith.constant 2 : index
    %c1_394 = arith.constant 1 : index
    %c0_395 = arith.constant 0 : index
    %722 = vector.load %arg1[%c2_393, %c1_394, %c0_395] : memref<3x64x128xbf16, #tpu.memory_space<vmem>>, vector<1x16x128xbf16>
    %723 = vector.shape_cast %722 : vector<1x16x128xbf16> to vector<16x128xbf16>
    %724 = arith.extf %723 : vector<16x128xbf16> to vector<16x128xf32>
    %cst_396 = arith.constant 0.000000e+00 : f32
    %725 = vector.broadcast %cst_396 : f32 to vector<16x128xf32>
    %726 = arith.select %706, %724, %725 : vector<16x128xi1>, vector<16x128xf32>
    %727 = arith.addf %702, %726 : vector<16x128xf32>
    %728 = arith.truncf %709 : vector<16x128xf32> to vector<16x128xbf16>
    %cst_397 = arith.constant dense<0.000000e+00> : vector<16x128xf32>
    %729 = tpu.matmul %728, %0, %cst_397 {dimension_numbers = #tpu.dot_dimension_numbers<[1], [0], [0], [1], [0, 0, 1, 1], [], []>} : vector<16x128xbf16>, vector<128x128xbf16>, vector<16x128xf32> -> vector<16x128xf32>
    %730 = arith.truncf %715 : vector<16x128xf32> to vector<16x128xbf16>
    %cst_398 = arith.constant dense<0.000000e+00> : vector<16x128xf32>
    %731 = tpu.matmul %730, %0, %cst_398 {dimension_numbers = #tpu.dot_dimension_numbers<[1], [0], [0], [1], [0, 0, 1, 1], [], []>} : vector<16x128xbf16>, vector<128x128xbf16>, vector<16x128xf32> -> vector<16x128xf32>
    %732 = arith.truncf %721 : vector<16x128xf32> to vector<16x128xbf16>
    %cst_399 = arith.constant dense<0.000000e+00> : vector<16x128xf32>
    %733 = tpu.matmul %732, %0, %cst_399 {dimension_numbers = #tpu.dot_dimension_numbers<[1], [0], [0], [1], [0, 0, 1, 1], [], []>} : vector<16x128xbf16>, vector<128x128xbf16>, vector<16x128xf32> -> vector<16x128xf32>
    %734 = arith.truncf %727 : vector<16x128xf32> to vector<16x128xbf16>
    %cst_400 = arith.constant dense<0.000000e+00> : vector<16x128xf32>
    %735 = tpu.matmul %734, %0, %cst_400 {dimension_numbers = #tpu.dot_dimension_numbers<[1], [0], [0], [1], [0, 0, 1, 1], [], []>} : vector<16x128xbf16>, vector<128x128xbf16>, vector<16x128xf32> -> vector<16x128xf32>
    %736 = arith.cmpf ogt, %729, %645 : vector<16x128xf32>
    %737 = arith.select %736, %729, %645 : vector<16x128xi1>, vector<16x128xf32>
    %738 = arith.select %736, %731, %646 : vector<16x128xi1>, vector<16x128xf32>
    %739 = arith.select %736, %733, %647 : vector<16x128xi1>, vector<16x128xf32>
    %740 = arith.select %736, %735, %648 : vector<16x128xi1>, vector<16x128xf32>
    %c8_i32 = arith.constant 8 : i32
    %cst_401 = arith.constant 1.000000e+00 : f32
    %741 = vector.broadcast %cst_401 : f32 to vector<16x128xf32>
    %742 = arith.maximumf %737, %741 : vector<16x128xf32>
    %743 = tpu.reciprocal %742 {approx = true} : vector<16x128xf32> -> vector<16x128xf32>
    %744 = arith.mulf %738, %743 : vector<16x128xf32>
    %745 = arith.truncf %744 : vector<16x128xf32> to vector<16x128xbf16>
    %c0_402 = arith.constant 0 : index
    %c0_403 = arith.constant 0 : index
    %c0_404 = arith.constant 0 : index
    %746 = vector.load %arg4[%c0_402, %c0_403, %c0_404] : memref<3x16x128xbf16, #tpu.memory_space<vmem>>, vector<1x16x128xbf16>
    %747 = vector.shape_cast %746 : vector<1x16x128xbf16> to vector<16x128xbf16>
    %748 = vector.shape_cast %745 : vector<16x128xbf16> to vector<1x16x128xbf16>
    tpu.vector_store %arg4[%c0_402, %c0_403, %c0_404], %748 {strides = array<i32>} : memref<3x16x128xbf16, #tpu.memory_space<vmem>>, vector<1x16x128xbf16>,
    %749 = arith.mulf %739, %743 : vector<16x128xf32>
    %750 = arith.truncf %749 : vector<16x128xf32> to vector<16x128xbf16>
    %c1_405 = arith.constant 1 : index
    %c0_406 = arith.constant 0 : index
    %c0_407 = arith.constant 0 : index
    %751 = vector.load %arg4[%c1_405, %c0_406, %c0_407] : memref<3x16x128xbf16, #tpu.memory_space<vmem>>, vector<1x16x128xbf16>
    %752 = vector.shape_cast %751 : vector<1x16x128xbf16> to vector<16x128xbf16>
    %753 = vector.shape_cast %750 : vector<16x128xbf16> to vector<1x16x128xbf16>
    tpu.vector_store %arg4[%c1_405, %c0_406, %c0_407], %753 {strides = array<i32>} : memref<3x16x128xbf16, #tpu.memory_space<vmem>>, vector<1x16x128xbf16>,
    %754 = arith.mulf %740, %743 : vector<16x128xf32>
    %755 = arith.truncf %754 : vector<16x128xf32> to vector<16x128xbf16>
    %c2_408 = arith.constant 2 : index
    %c0_409 = arith.constant 0 : index
    %c0_410 = arith.constant 0 : index
    %756 = vector.load %arg4[%c2_408, %c0_409, %c0_410] : memref<3x16x128xbf16, #tpu.memory_space<vmem>>, vector<1x16x128xbf16>
    %757 = vector.shape_cast %756 : vector<1x16x128xbf16> to vector<16x128xbf16>
    %758 = vector.shape_cast %755 : vector<16x128xbf16> to vector<1x16x128xbf16>
    tpu.vector_store %arg4[%c2_408, %c0_409, %c0_410], %758 {strides = array<i32>} : memref<3x16x128xbf16, #tpu.memory_space<vmem>>, vector<1x16x128xbf16>,
    return
  }
  func.func @transform_0(%arg0: i32) -> (i32, i32, i32) {
    %c0_i32 = arith.constant 0 : i32
    %c0_i32_0 = arith.constant 0 : i32
    %c0_i32_1 = arith.constant 0 : i32
    return %c0_i32, %arg0, %c0_i32_0 : i32, i32, i32
  }
  func.func @transform_1(%arg0: i32) -> (i32, i32) {
    %c0_i32 = arith.constant 0 : i32
    %c0_i32_0 = arith.constant 0 : i32
    return %arg0, %c0_i32 : i32, i32
  }
  func.func @transform_2(%arg0: i32) -> (i32, i32) {
    %c0_i32 = arith.constant 0 : i32
    %c0_i32_0 = arith.constant 0 : i32
    %c0_i32_1 = arith.constant 0 : i32
    return %c0_i32, %c0_i32_0 : i32, i32
  }
  func.func @transform_3(%arg0: i32) -> (i32, i32, i32) {
    %c0_i32 = arith.constant 0 : i32
    %c0_i32_0 = arith.constant 0 : i32
    %c0_i32_1 = arith.constant 0 : i32
    return %c0_i32, %arg0, %c0_i32_0 : i32, i32, i32
  }
}

</mosaic_0001>

<llo_original>
// kernel: tpu_custom_call.1
$region0: #{tpu_custom_call.1}
  #allocation0 [shape = 'u32[]', space=smem, size = 0x4, offset = 0x4, fixed_abs, tag = 'smem constant byte address 0x4 - core index']
  #allocation1 [shape = 'u32[144,128]{1,0:T(1,128)}', space=vmem, size = 0x12000, scoped, tag = 'internal scratch']
  %s0 = inlined_call_operand.hbm [shape: bf16[3,64,128], index: 0, kind: input, shape index: {}]
  %s1 = inlined_call_operand.hbm [shape: s8[64,128], index: 1, kind: input, shape index: {}]
  %s2 = inlined_call_operand.hbm [shape: bf16[128,128], index: 2, kind: input, shape index: {}]
  %s3 = inlined_call_operand.hbm [shape: bf16[3,16,128], index: 3, kind: output, shape index: {}]
  %s4 = sld [smem:[#allocation0]]
  $region34: #{tpu_custom_call.1} parent=0
    _
  %s6 = ssub.s32 1, %s4
  %s7 = scalar_select 0, %s6, %s4
  $region1: #{tpu_custom_call.1} parent=0
    #allocation2 [shape = 'u8[49152]{0}', space=vmem, size = 0xc000, scoped, tag = 'input window, operand 0, single buffered']
    #allocation3 [shape = 's32[1]{0}', space=sflag, size = 0x4, scoped, tag = 'scoped memory for tpu_custom_call.1']
    #allocation4 [shape = 's32[1]{0}', space=sflag, size = 0x4, scoped, tag = 'scoped memory for tpu_custom_call.1']
    #allocation5 [shape = 'u8[8192]{0}', space=vmem, size = 0x2000, scoped, tag = 'input window, operand 1, single buffered']
    #allocation6 [shape = 's32[1]{0}', space=sflag, size = 0x4, scoped, tag = 'scoped memory for tpu_custom_call.1']
    #allocation7 [shape = 'u8[32768]{0}', space=vmem, size = 0x8000, scoped, tag = 'input window, operand 2, single buffered']
    #allocation8 [shape = 'u8[12288]{0}', space=vmem, size = 0x3000, scoped, tag = 'output window, operand 0, single buffered']
    %8 = vsyncpa [#allocation3], 0
    %9 = vsyncpa [#allocation6], 0
    %10 = vsyncpa [#allocation4], 0
    // Predicated region
    $region2: #{tpu_custom_call.1} parent=1 // pred_check
      _
    $region3: #{tpu_custom_call.1} parent=1 // pred_check_branch
      %12 = sbr.rel (0) target = $region5
    $region4: #{tpu_custom_call.1} parent=1 // pred_region
      %s14 = ssub.s32 1536, 1536
      %15 = vsyncadd [#allocation3], %s14
      %s16 = sshll.u32 [#allocation2], 4
      %s17 = int_to_ptr.vmem [resolvable:$true] %s16
      %22 = dma.hbm_to_vmem [thread:$0]  %s0, 1536, %s17, [#allocation3], 64, 64, 4
    $region5: #{tpu_custom_call.1} parent=1 // pred_fallthru
      _
    // Predicated region
    $region6: #{tpu_custom_call.1} parent=1 // pred_check
      _
    $region7: #{tpu_custom_call.1} parent=1 // pred_check_branch
      %24 = sbr.rel (0) target = $region9
    $region8: #{tpu_custom_call.1} parent=1 // pred_region
      %s26 = ssub.s32 256, 256
      %27 = vsyncadd [#allocation6], %s26
      %s28 = sshll.u32 [#allocation5], 4
      %s29 = int_to_ptr.vmem [resolvable:$true] %s28
      %34 = dma.hbm_to_vmem [thread:$0]  %s1, 256, %s29, [#allocation6], 128, 128, 8
    $region9: #{tpu_custom_call.1} parent=1 // pred_fallthru
      _
    // Predicated region
    $region10: #{tpu_custom_call.1} parent=1 // pred_check
      _
    $region11: #{tpu_custom_call.1} parent=1 // pred_check_branch
      %36 = sbr.rel (0) target = $region13
    $region12: #{tpu_custom_call.1} parent=1 // pred_region
      %s38 = ssub.s32 1024, 1024
      %39 = vsyncadd [#allocation6], %s38
      %s40 = sshll.u32 [#allocation7], 4
      %s41 = int_to_ptr.vmem [resolvable:$true] %s40
      %46 = dma.hbm_to_vmem [thread:$0]  %s2, 1024, %s41, [#allocation6], 64, 64, 4
    $region13: #{tpu_custom_call.1} parent=1 // pred_fallthru
      _
    // Predicated region
    $region14: #{tpu_custom_call.1} parent=1 // pred_check
      _
    $region15: #{tpu_custom_call.1} parent=1 // pred_check_branch
      %48 = sbr.rel (0) target = $region17
    $region16: #{tpu_custom_call.1} parent=1 // pred_region
      %49 = dma.done [#allocation3], 1536
    $region17: #{tpu_custom_call.1} parent=1 // pred_fallthru
      _
    // Predicated region
    $region18: #{tpu_custom_call.1} parent=1 // pred_check
      _
    $region19: #{tpu_custom_call.1} parent=1 // pred_check_branch
      %51 = sbr.rel (0) target = $region21
    $region20: #{tpu_custom_call.1} parent=1 // pred_region
      %52 = dma.done [#allocation6], 256
    $region21: #{tpu_custom_call.1} parent=1 // pred_fallthru
      _
    // Predicated region
    $region22: #{tpu_custom_call.1} parent=1 // pred_check
      _
    $region23: #{tpu_custom_call.1} parent=1 // pred_check_branch
      %54 = sbr.rel (0) target = $region25
    $region24: #{tpu_custom_call.1} parent=1 // pred_region
      %55 = dma.done [#allocation6], 1024
    $region25: #{tpu_custom_call.1} parent=1 // pred_fallthru
      _
    %v57 = vld [vmem:[#allocation7] sm:$0xf]
    %v58 = vld [vmem:[#allocation7 + $0x4] sm:$0xf]
    %v59 = vld [vmem:[#allocation7 + $0x8] sm:$0xf]
    %v60 = vld [vmem:[#allocation7 + $0xc] sm:$0xf]
    %v61 = vld [vmem:[#allocation7 + $0x10] sm:$0xf]
    %v62 = vld [vmem:[#allocation7 + $0x14] sm:$0xf]
    %v63 = vld [vmem:[#allocation7 + $0x18] sm:$0xf]
    %v64 = vld [vmem:[#allocation7 + $0x1c] sm:$0xf]
    %v65 = vld [vmem:[#allocation7 + $0x20] sm:$0xf]
    %v66 = vld [vmem:[#allocation7 + $0x24] sm:$0xf]
    %v67 = vld [vmem:[#allocation7 + $0x28] sm:$0xf]
    %v68 = vld [vmem:[#allocation7 + $0x2c] sm:$0xf]
    %v69 = vld [vmem:[#allocation7 + $0x30] sm:$0xf]
    %v70 = vld [vmem:[#allocation7 + $0x34] sm:$0xf]
    %v71 = vld [vmem:[#allocation7 + $0x38] sm:$0xf]
    %v72 = vld [vmem:[#allocation7 + $0x3c] sm:$0xf]
    %v73 = vld [vmem:[#allocation5] sm:$0xf]
    %v74 = vunpack.c.0.s8 %v73
    %v75 = vunpack.c.1.s8 %v73
    %vm76 = vcmp.eq.s32.totalorder %v74, 0
    %vm77 = vcmp.eq.s32.totalorder %v75, 0
    %v78 = vsel %vm76, 1, 0
    %v79 = vsel %vm77, 1, 0
    %v80 = vcvt.s32.f32 %v78
    %v81 = vcvt.s32.f32 %v79
    %v82 = vadd.f32 %v80, 0.0
    %v83 = vadd.f32 %v81, 0.0
    %v84 = vld [vmem:[#allocation2] sm:$0xf]
    %v85 = vld [vmem:[#allocation2 + $0x4] sm:$0xf]
    %v86 = vunpack.c.l.bf16 %v84
    %v87 = vunpack.c.l.bf16 %v85
    %v88 = vsel %vm76, %v86, 0.0
    %v89 = vsel %vm77, %v87, 0.0
    %v90 = vadd.f32 %v88, 0.0
    %v91 = vadd.f32 %v89, 0.0
    %s92 = scalar_lea.vmem [#allocation2], 32
    %v93 = vld [vmem:[%s92] sm:$0xf]
    %v94 = vld [vmem:[%s92 + $0x4] sm:$0xf]
    %v95 = vunpack.c.l.bf16 %v93
    %v96 = vunpack.c.l.bf16 %v94
    %v97 = vsel %vm76, %v95, 0.0
    %v98 = vsel %vm77, %v96, 0.0
    %v99 = vadd.f32 %v97, 0.0
    %v100 = vadd.f32 %v98, 0.0
    %s101 = scalar_lea.vmem [#allocation2], 64
    %v102 = vld [vmem:[%s101] sm:$0xf]
    %v103 = vld [vmem:[%s101 + $0x4] sm:$0xf]
    %v104 = vunpack.c.l.bf16 %v102
    %v105 = vunpack.c.l.bf16 %v103
    %v106 = vsel %vm76, %v104, 0.0
    %v107 = vsel %vm77, %v105, 0.0
    %v108 = vadd.f32 %v106, 0.0
    %v109 = vadd.f32 %v107, 0.0
    %v110 = vld [vmem:[#allocation5 + $0x8] sm:$0xf]
    %v111 = vunpack.c.0.s8 %v110
    %v112 = vunpack.c.1.s8 %v110
    %vm113 = vcmp.eq.s32.totalorder %v111, 0
    %vm114 = vcmp.eq.s32.totalorder %v112, 0
    %v115 = vsel %vm113, 1, 0
    %v116 = vsel %vm114, 1, 0
    %v117 = vcvt.s32.f32 %v115
    %v118 = vcvt.s32.f32 %v116
    %v119 = vadd.f32 %v82, %v117
    %v120 = vadd.f32 %v83, %v118
    %v121 = vld [vmem:[#allocation2 + $0x10] sm:$0xf]
    %v122 = vld [vmem:[#allocation2 + $0x14] sm:$0xf]
    %v123 = vunpack.c.l.bf16 %v121
    %v124 = vunpack.c.l.bf16 %v122
    %v125 = vsel %vm113, %v123, 0.0
    %v126 = vsel %vm114, %v124, 0.0
    %v127 = vadd.f32 %v90, %v125
    %v128 = vadd.f32 %v91, %v126
    %v129 = vld [vmem:[%s92 + $0x10] sm:$0xf]
    %v130 = vld [vmem:[%s92 + $0x14] sm:$0xf]
    %v131 = vunpack.c.l.bf16 %v129
    %v132 = vunpack.c.l.bf16 %v130
    %v133 = vsel %vm113, %v131, 0.0
    %v134 = vsel %vm114, %v132, 0.0
    %v135 = vadd.f32 %v99, %v133
    %v136 = vadd.f32 %v100, %v134
    %v137 = vld [vmem:[%s101 + $0x10] sm:$0xf]
    %v138 = vld [vmem:[%s101 + $0x14] sm:$0xf]
    %v139 = vunpack.c.l.bf16 %v137
    %v140 = vunpack.c.l.bf16 %v138
    %v141 = vsel %vm113, %v139, 0.0
    %v142 = vsel %vm114, %v140, 0.0
    %v143 = vadd.f32 %v108, %v141
    %v144 = vadd.f32 %v109, %v142
    %v145 = vld [vmem:[#allocation5] sm:$0x1f]
    %v146 = vunpack.c.0.s8 %v145
    %v147 = vunpack.c.1.s8 %v145
    %v148 = vunpack.c.2.s8 %v145
    %vm149 = vcmp.eq.s32.totalorder %v146, 0
    %vm150 = vcmp.eq.s32.totalorder %v147, 0
    %vm151 = vcmp.eq.s32.totalorder %v148, 0
    %v152 = vsel %vm149, 1, 0
    %v153 = vsel %vm150, 1, 0
    %v154 = vsel %vm151, 1, 0
    %v155 = vcvt.s32.f32 %v152
    %v156 = vcvt.s32.f32 %v153
    %v157 = vcvt.s32.f32 %v154
    %vm161 = vcmask 1046528
    %v162 = vrot.slane %v155, 1
    %v163 = vrot.slane %v156, 1
    %v164 = vsel %vm161, %v162, %v163
    %v165 = vrot.slane %v157, 1
    %v166 = vsel %vm161, %v163, %v165
    %v169 = vadd.f32 %v119, %v164
    %v170 = vadd.f32 %v120, %v166
    %v171 = vld [vmem:[#allocation2 + $0x8] sm:$0x1]
    %v172 = vunpack.c.l.bf16 %v171
    %v173 = vsel %vm149, %v86, 0.0
    %v174 = vsel %vm150, %v87, 0.0
    %v175 = vsel %vm151, %v172, 0.0
    %v179 = vrot.slane %v173, 1
    %v180 = vrot.slane %v174, 1
    %v181 = vsel %vm161, %v179, %v180
    %v182 = vrot.slane %v175, 1
    %v183 = vsel %vm161, %v180, %v182
    %v186 = vadd.f32 %v127, %v181
    %v187 = vadd.f32 %v128, %v183
    %v188 = vld [vmem:[%s92 + $0x8] sm:$0x1]
    %v189 = vunpack.c.l.bf16 %v188
    %v190 = vsel %vm149, %v95, 0.0
    %v191 = vsel %vm150, %v96, 0.0
    %v192 = vsel %vm151, %v189, 0.0
    %v196 = vrot.slane %v190, 1
    %v197 = vrot.slane %v191, 1
    %v198 = vsel %vm161, %v196, %v197
    %v199 = vrot.slane %v192, 1
    %v200 = vsel %vm161, %v197, %v199
    %v203 = vadd.f32 %v135, %v198
    %v204 = vadd.f32 %v136, %v200
    %v205 = vld [vmem:[%s101 + $0x8] sm:$0x1]
    %v206 = vunpack.c.l.bf16 %v205
    %v207 = vsel %vm149, %v104, 0.0
    %v208 = vsel %vm150, %v105, 0.0
    %v209 = vsel %vm151, %v206, 0.0
    %v213 = vrot.slane %v207, 1
    %v214 = vrot.slane %v208, 1
    %v215 = vsel %vm161, %v213, %v214
    %v216 = vrot.slane %v209, 1
    %v217 = vsel %vm161, %v214, %v216
    %v220 = vadd.f32 %v143, %v215
    %v221 = vadd.f32 %v144, %v217
    %v222 = vpack.c.bf16 %v170, %v169
    %v239 = vunpack.c.l.b16 %v57
    %v240 = vunpack.c.l.b16 %v58
    %v241 = vunpack.c.l.b16 %v59
    %v242 = vunpack.c.l.b16 %v60
    %v243 = vunpack.c.l.b16 %v61
    %v244 = vunpack.c.l.b16 %v62
    %v245 = vunpack.c.l.b16 %v63
    %v246 = vunpack.c.l.b16 %v64
    %v247 = vunpack.c.l.b16 %v65
    %v248 = vunpack.c.l.b16 %v66
    %v249 = vunpack.c.l.b16 %v67
    %v250 = vunpack.c.l.b16 %v68
    %v251 = vunpack.c.l.b16 %v69
    %v252 = vunpack.c.l.b16 %v70
    %v253 = vunpack.c.l.b16 %v71
    %v254 = vunpack.c.l.b16 %v72
    %v255 = vpack.c.b16 %v240, %v239
    %v256 = vpack.c.b16 %v242, %v241
    %v257 = vpack.c.b16 %v244, %v243
    %v258 = vpack.c.b16 %v246, %v245
    %v259 = vpack.c.b16 %v248, %v247
    %v260 = vpack.c.b16 %v250, %v249
    %v261 = vpack.c.b16 %v252, %v251
    %v262 = vpack.c.b16 %v254, %v253
    %271 = vmatprep.subr.bf16.mxu0 0
    %272 = vmatpush1.bf16.msra.mxu0 %v255
    %273 = vmatprep.subr.bf16.mxu0 0
    %274 = vmatpush1.bf16.msra.mxu0 %v256
    %275 = vmatprep.subr.bf16.mxu0 0
    %276 = vmatpush1.bf16.msra.mxu0 %v257
    %277 = vmatprep.subr.bf16.mxu0 0
    %278 = vmatpush1.bf16.msra.mxu0 %v258
    %279 = vmatprep.subr.bf16.mxu0 0
    %280 = vmatpush1.bf16.msra.mxu0 %v259
    %281 = vmatprep.subr.bf16.mxu0 0
    %282 = vmatpush1.bf16.msra.mxu0 %v260
    %283 = vmatprep.subr.bf16.mxu0 0
    %284 = vmatpush1.bf16.msra.mxu0 %v261
    %285 = vmatprep.subr.bf16.mxu0 0
    %286 = vmatpush1.bf16.msra.mxu0 %v262
    %287 = vmatprep.subr.bf16.mxu0 0
    %288 = vmatpush1.bf16.msra.mxu0 0
    %289 = vmatprep.subr.bf16.mxu0 0
    %290 = vmatpush1.bf16.msra.mxu0 0
    %291 = vmatprep.subr.bf16.mxu0 0
    %292 = vmatpush1.bf16.msra.mxu0 0
    %293 = vmatprep.subr.bf16.mxu0 0
    %294 = vmatpush1.bf16.msra.mxu0 0
    %295 = vmatprep.subr.bf16.mxu0 0
    %296 = vmatpush1.bf16.msra.mxu0 0
    %297 = vmatprep.subr.bf16.mxu0 0
    %298 = vmatpush1.bf16.msra.mxu0 0
    %299 = vmatprep.subr.bf16.mxu0 0
    %300 = vmatpush1.bf16.msra.mxu0 0
    %301 = vmatprep.subr.bf16.mxu0 0
    %302 = vmatpush1.bf16.msra.mxu0 0
    %303 = vmatprep.mubr.bf16.mxu0 0
    %304 = vmatmul.mubr.bf16.gmra.mrb[0].mxu0 %v222
    %v305 = vpop.f32.mrb[0].mxu0
    %v306 = vadd.f32 0.0, %v305
    %v307 = vpop.f32.mrb[0].mxu0
    %v308 = vpop.f32.mrb[0].mxu0
    %v309 = vadd.f32 0.0, %v308
    %v310 = vpop.f32.mrb[0].mxu0
    %311 = vdwg.mxu0
    %v312 = vpack.c.bf16 %v187, %v186
    %313 = vmatprep.subr.bf16.mxu0 0
    %314 = vmatpush1.bf16.msra.mxu0 %v255
    %315 = vmatprep.subr.bf16.mxu0 0
    %316 = vmatpush1.bf16.msra.mxu0 %v256
    %317 = vmatprep.subr.bf16.mxu0 0
    %318 = vmatpush1.bf16.msra.mxu0 %v257
    %319 = vmatprep.subr.bf16.mxu0 0
    %320 = vmatpush1.bf16.msra.mxu0 %v258
    %321 = vmatprep.subr.bf16.mxu0 0
    %322 = vmatpush1.bf16.msra.mxu0 %v259
    %323 = vmatprep.subr.bf16.mxu0 0
    %324 = vmatpush1.bf16.msra.mxu0 %v260
    %325 = vmatprep.subr.bf16.mxu0 0
    %326 = vmatpush1.bf16.msra.mxu0 %v261
    %327 = vmatprep.subr.bf16.mxu0 0
    %328 = vmatpush1.bf16.msra.mxu0 %v262
    %329 = vmatprep.subr.bf16.mxu0 0
    %330 = vmatpush1.bf16.msra.mxu0 0
    %331 = vmatprep.subr.bf16.mxu0 0
    %332 = vmatpush1.bf16.msra.mxu0 0
    %333 = vmatprep.subr.bf16.mxu0 0
    %334 = vmatpush1.bf16.msra.mxu0 0
    %335 = vmatprep.subr.bf16.mxu0 0
    %336 = vmatpush1.bf16.msra.mxu0 0
    %337 = vmatprep.subr.bf16.mxu0 0
    %338 = vmatpush1.bf16.msra.mxu0 0
    %339 = vmatprep.subr.bf16.mxu0 0
    %340 = vmatpush1.bf16.msra.mxu0 0
    %341 = vmatprep.subr.bf16.mxu0 0
    %342 = vmatpush1.bf16.msra.mxu0 0
    %343 = vmatprep.subr.bf16.mxu0 0
    %344 = vmatpush1.bf16.msra.mxu0 0
    %345 = vmatprep.mubr.bf16.mxu0 0
    %346 = vmatmul.mubr.bf16.gmra.mrb[0].mxu0 %v312
    %v347 = vpop.f32.mrb[0].mxu0
    %v348 = vadd.f32 0.0, %v347
    %v349 = vpop.f32.mrb[0].mxu0
    %v350 = vpop.f32.mrb[0].mxu0
    %v351 = vadd.f32 0.0, %v350
    %v352 = vpop.f32.mrb[0].mxu0
    %353 = vdwg.mxu0
    %v354 = vpack.c.bf16 %v204, %v203
    %355 = vmatprep.subr.bf16.mxu0 0
    %356 = vmatpush1.bf16.msra.mxu0 %v255
    %357 = vmatprep.subr.bf16.mxu0 0
    %358 = vmatpush1.bf16.msra.mxu0 %v256
    %359 = vmatprep.subr.bf16.mxu0 0
    %360 = vmatpush1.bf16.msra.mxu0 %v257
    %361 = vmatprep.subr.bf16.mxu0 0
    %362 = vmatpush1.bf16.msra.mxu0 %v258
    %363 = vmatprep.subr.bf16.mxu0 0
    %364 = vmatpush1.bf16.msra.mxu0 %v259
    %365 = vmatprep.subr.bf16.mxu0 0
    %366 = vmatpush1.bf16.msra.mxu0 %v260
    %367 = vmatprep.subr.bf16.mxu0 0
    %368 = vmatpush1.bf16.msra.mxu0 %v261
    %369 = vmatprep.subr.bf16.mxu0 0
    %370 = vmatpush1.bf16.msra.mxu0 %v262
    %371 = vmatprep.subr.bf16.mxu0 0
    %372 = vmatpush1.bf16.msra.mxu0 0
    %373 = vmatprep.subr.bf16.mxu0 0
    %374 = vmatpush1.bf16.msra.mxu0 0
    %375 = vmatprep.subr.bf16.mxu0 0
    %376 = vmatpush1.bf16.msra.mxu0 0
    %377 = vmatprep.subr.bf16.mxu0 0
    %378 = vmatpush1.bf16.msra.mxu0 0
    %379 = vmatprep.subr.bf16.mxu0 0
    %380 = vmatpush1.bf16.msra.mxu0 0
    %381 = vmatprep.subr.bf16.mxu0 0
    %382 = vmatpush1.bf16.msra.mxu0 0
    %383 = vmatprep.subr.bf16.mxu0 0
    %384 = vmatpush1.bf16.msra.mxu0 0
    %385 = vmatprep.subr.bf16.mxu0 0
    %386 = vmatpush1.bf16.msra.mxu0 0
    %387 = vmatprep.mubr.bf16.mxu0 0
    %388 = vmatmul.mubr.bf16.gmra.mrb[0].mxu0 %v354
    %v389 = vpop.f32.mrb[0].mxu0
    %v390 = vadd.f32 0.0, %v389
    %v391 = vpop.f32.mrb[0].mxu0
    %v392 = vpop.f32.mrb[0].mxu0
    %v393 = vadd.f32 0.0, %v392
    %v394 = vpop.f32.mrb[0].mxu0
    %395 = vdwg.mxu0
    %v396 = vpack.c.bf16 %v221, %v220
    %397 = vmatprep.subr.bf16.mxu0 0
    %398 = vmatpush1.bf16.msra.mxu0 %v255
    %399 = vmatprep.subr.bf16.mxu0 0
    %400 = vmatpush1.bf16.msra.mxu0 %v256
    %401 = vmatprep.subr.bf16.mxu0 0
    %402 = vmatpush1.bf16.msra.mxu0 %v257
    %403 = vmatprep.subr.bf16.mxu0 0
    %404 = vmatpush1.bf16.msra.mxu0 %v258
    %405 = vmatprep.subr.bf16.mxu0 0
    %406 = vmatpush1.bf16.msra.mxu0 %v259
    %407 = vmatprep.subr.bf16.mxu0 0
    %408 = vmatpush1.bf16.msra.mxu0 %v260
    %409 = vmatprep.subr.bf16.mxu0 0
    %410 = vmatpush1.bf16.msra.mxu0 %v261
    %411 = vmatprep.subr.bf16.mxu0 0
    %412 = vmatpush1.bf16.msra.mxu0 %v262
    %413 = vmatprep.subr.bf16.mxu0 0
    %414 = vmatpush1.bf16.msra.mxu0 0
    %415 = vmatprep.subr.bf16.mxu0 0
    %416 = vmatpush1.bf16.msra.mxu0 0
    %417 = vmatprep.subr.bf16.mxu0 0
    %418 = vmatpush1.bf16.msra.mxu0 0
    %419 = vmatprep.subr.bf16.mxu0 0
    %420 = vmatpush1.bf16.msra.mxu0 0
    %421 = vmatprep.subr.bf16.mxu0 0
    %422 = vmatpush1.bf16.msra.mxu0 0
    %423 = vmatprep.subr.bf16.mxu0 0
    %424 = vmatpush1.bf16.msra.mxu0 0
    %425 = vmatprep.subr.bf16.mxu0 0
    %426 = vmatpush1.bf16.msra.mxu0 0
    %427 = vmatprep.subr.bf16.mxu0 0
    %428 = vmatpush1.bf16.msra.mxu0 0
    %429 = vmatprep.mubr.bf16.mxu0 0
    %430 = vmatmul.mubr.bf16.gmra.mrb[0].mxu0 %v396
    %v431 = vpop.f32.mrb[0].mxu0
    %v432 = vadd.f32 0.0, %v431
    %v433 = vpop.f32.mrb[0].mxu0
    %v434 = vpop.f32.mrb[0].mxu0
    %v435 = vadd.f32 0.0, %v434
    %v436 = vpop.f32.mrb[0].mxu0
    %437 = vdwg.mxu0
    %vm438 = vcmp.gt.f32.partialorder %v306, -1.0
    %vm439 = vcmp.gt.f32.partialorder %v309, -1.0
    %v440 = vsel %vm438, %v306, -1.0
    %v441 = vsel %vm439, %v309, -1.0
    %v442 = vsel %vm438, %v348, 0.0
    %v443 = vsel %vm439, %v351, 0.0
    %v444 = vsel %vm438, %v390, 0.0
    %v445 = vsel %vm439, %v393, 0.0
    %v446 = vsel %vm438, %v432, 0.0
    %v447 = vsel %vm439, %v435, 0.0
    %vm448 = vcmp.eq.s32.totalorder %v74, 1
    %vm449 = vcmp.eq.s32.totalorder %v75, 1
    %v450 = vsel %vm448, 1, 0
    %v451 = vsel %vm449, 1, 0
    %v452 = vcvt.s32.f32 %v450
    %v453 = vcvt.s32.f32 %v451
    %v454 = vadd.f32 %v452, 0.0
    %v455 = vadd.f32 %v453, 0.0
    %v456 = vsel %vm448, %v86, 0.0
    %v457 = vsel %vm449, %v87, 0.0
    %v458 = vadd.f32 %v456, 0.0
    %v459 = vadd.f32 %v457, 0.0
    %v460 = vsel %vm448, %v95, 0.0
    %v461 = vsel %vm449, %v96, 0.0
    %v462 = vadd.f32 %v460, 0.0
    %v463 = vadd.f32 %v461, 0.0
    %v464 = vsel %vm448, %v104, 0.0
    %v465 = vsel %vm449, %v105, 0.0
    %v466 = vadd.f32 %v464, 0.0
    %v467 = vadd.f32 %v465, 0.0
    %vm468 = vcmp.eq.s32.totalorder %v111, 1
    %vm469 = vcmp.eq.s32.totalorder %v112, 1
    %v470 = vsel %vm468, 1, 0
    %v471 = vsel %vm469, 1, 0
    %v472 = vcvt.s32.f32 %v470
    %v473 = vcvt.s32.f32 %v471
    %v474 = vadd.f32 %v454, %v472
    %v475 = vadd.f32 %v455, %v473
    %v476 = vsel %vm468, %v123, 0.0
    %v477 = vsel %vm469, %v124, 0.0
    %v478 = vadd.f32 %v458, %v476
    %v479 = vadd.f32 %v459, %v477
    %v480 = vsel %vm468, %v131, 0.0
    %v481 = vsel %vm469, %v132, 0.0
    %v482 = vadd.f32 %v462, %v480
    %v483 = vadd.f32 %v463, %v481
    %v484 = vsel %vm468, %v139, 0.0
    %v485 = vsel %vm469, %v140, 0.0
    %v486 = vadd.f32 %v466, %v484
    %v487 = vadd.f32 %v467, %v485
    %vm488 = vcmp.eq.s32.totalorder %v146, 1
    %vm489 = vcmp.eq.s32.totalorder %v147, 1
    %vm490 = vcmp.eq.s32.totalorder %v148, 1
    %v491 = vsel %vm488, 1, 0
    %v492 = vsel %vm489, 1, 0
    %v493 = vsel %vm490, 1, 0
    %v494 = vcvt.s32.f32 %v491
    %v495 = vcvt.s32.f32 %v492
    %v496 = vcvt.s32.f32 %v493
    %v500 = vrot.slane %v494, 1
    %v501 = vrot.slane %v495, 1
    %v502 = vsel %vm161, %v500, %v501
    %v503 = vrot.slane %v496, 1
    %v504 = vsel %vm161, %v501, %v503
    %v507 = vadd.f32 %v474, %v502
    %v508 = vadd.f32 %v475, %v504
    %v509 = vsel %vm488, %v86, 0.0
    %v510 = vsel %vm489, %v87, 0.0
    %v511 = vsel %vm490, %v172, 0.0
    %v515 = vrot.slane %v509, 1
    %v516 = vrot.slane %v510, 1
    %v517 = vsel %vm161, %v515, %v516
    %v518 = vrot.slane %v511, 1
    %v519 = vsel %vm161, %v516, %v518
    %v522 = vadd.f32 %v478, %v517
    %v523 = vadd.f32 %v479, %v519
    %v524 = vsel %vm488, %v95, 0.0
    %v525 = vsel %vm489, %v96, 0.0
    %v526 = vsel %vm490, %v189, 0.0
    %v530 = vrot.slane %v524, 1
    %v531 = vrot.slane %v525, 1
    %v532 = vsel %vm161, %v530, %v531
    %v533 = vrot.slane %v526, 1
    %v534 = vsel %vm161, %v531, %v533
    %v537 = vadd.f32 %v482, %v532
    %v538 = vadd.f32 %v483, %v534
    %v539 = vsel %vm488, %v104, 0.0
    %v540 = vsel %vm489, %v105, 0.0
    %v541 = vsel %vm490, %v206, 0.0
    %v545 = vrot.slane %v539, 1
    %v546 = vrot.slane %v540, 1
    %v547 = vsel %vm161, %v545, %v546
    %v548 = vrot.slane %v541, 1
    %v549 = vsel %vm161, %v546, %v548
    %v552 = vadd.f32 %v486, %v547
    %v553 = vadd.f32 %v487, %v549
    %v554 = vpack.c.bf16 %v508, %v507
    %555 = vmatprep.subr.bf16.mxu0 0
    %556 = vmatpush1.bf16.msra.mxu0 %v255
    %557 = vmatprep.subr.bf16.mxu0 0
    %558 = vmatpush1.bf16.msra.mxu0 %v256
    %559 = vmatprep.subr.bf16.mxu0 0
    %560 = vmatpush1.bf16.msra.mxu0 %v257
    %561 = vmatprep.subr.bf16.mxu0 0
    %562 = vmatpush1.bf16.msra.mxu0 %v258
    %563 = vmatprep.subr.bf16.mxu0 0
    %564 = vmatpush1.bf16.msra.mxu0 %v259
    %565 = vmatprep.subr.bf16.mxu0 0
    %566 = vmatpush1.bf16.msra.mxu0 %v260
    %567 = vmatprep.subr.bf16.mxu0 0
    %568 = vmatpush1.bf16.msra.mxu0 %v261
    %569 = vmatprep.subr.bf16.mxu0 0
    %570 = vmatpush1.bf16.msra.mxu0 %v262
    %571 = vmatprep.subr.bf16.mxu0 0
    %572 = vmatpush1.bf16.msra.mxu0 0
    %573 = vmatprep.subr.bf16.mxu0 0
    %574 = vmatpush1.bf16.msra.mxu0 0
    %575 = vmatprep.subr.bf16.mxu0 0
    %576 = vmatpush1.bf16.msra.mxu0 0
    %577 = vmatprep.subr.bf16.mxu0 0
    %578 = vmatpush1.bf16.msra.mxu0 0
    %579 = vmatprep.subr.bf16.mxu0 0
    %580 = vmatpush1.bf16.msra.mxu0 0
    %581 = vmatprep.subr.bf16.mxu0 0
    %582 = vmatpush1.bf16.msra.mxu0 0
    %583 = vmatprep.subr.bf16.mxu0 0
    %584 = vmatpush1.bf16.msra.mxu0 0
    %585 = vmatprep.subr.bf16.mxu0 0
    %586 = vmatpush1.bf16.msra.mxu0 0
    %587 = vmatprep.mubr.bf16.mxu0 0
    %588 = vmatmul.mubr.bf16.gmra.mrb[0].mxu0 %v554
    %v589 = vpop.f32.mrb[0].mxu0
    %v590 = vadd.f32 0.0, %v589
    %v591 = vpop.f32.mrb[0].mxu0
    %v592 = vpop.f32.mrb[0].mxu0
    %v593 = vadd.f32 0.0, %v592
    %v594 = vpop.f32.mrb[0].mxu0
    %595 = vdwg.mxu0
    %v596 = vpack.c.bf16 %v523, %v522
    %597 = vmatprep.subr.bf16.mxu0 0
    %598 = vmatpush1.bf16.msra.mxu0 %v255
    %599 = vmatprep.subr.bf16.mxu0 0
    %600 = vmatpush1.bf16.msra.mxu0 %v256
    %601 = vmatprep.subr.bf16.mxu0 0
    %602 = vmatpush1.bf16.msra.mxu0 %v257
    %603 = vmatprep.subr.bf16.mxu0 0
    %604 = vmatpush1.bf16.msra.mxu0 %v258
    %605 = vmatprep.subr.bf16.mxu0 0
    %606 = vmatpush1.bf16.msra.mxu0 %v259
    %607 = vmatprep.subr.bf16.mxu0 0
    %608 = vmatpush1.bf16.msra.mxu0 %v260
    %609 = vmatprep.subr.bf16.mxu0 0
    %610 = vmatpush1.bf16.msra.mxu0 %v261
    %611 = vmatprep.subr.bf16.mxu0 0
    %612 = vmatpush1.bf16.msra.mxu0 %v262
    %613 = vmatprep.subr.bf16.mxu0 0
    %614 = vmatpush1.bf16.msra.mxu0 0
    %615 = vmatprep.subr.bf16.mxu0 0
    %616 = vmatpush1.bf16.msra.mxu0 0
    %617 = vmatprep.subr.bf16.mxu0 0
    %618 = vmatpush1.bf16.msra.mxu0 0
    %619 = vmatprep.subr.bf16.mxu0 0
    %620 = vmatpush1.bf16.msra.mxu0 0
    %621 = vmatprep.subr.bf16.mxu0 0
    %622 = vmatpush1.bf16.msra.mxu0 0
    %623 = vmatprep.subr.bf16.mxu0 0
    %624 = vmatpush1.bf16.msra.mxu0 0
    %625 = vmatprep.subr.bf16.mxu0 0
    %626 = vmatpush1.bf16.msra.mxu0 0
    %627 = vmatprep.subr.bf16.mxu0 0
    %628 = vmatpush1.bf16.msra.mxu0 0
    %629 = vmatprep.mubr.bf16.mxu0 0
    %630 = vmatmul.mubr.bf16.gmra.mrb[0].mxu0 %v596
    %v631 = vpop.f32.mrb[0].mxu0
    %v632 = vadd.f32 0.0, %v631
    %v633 = vpop.f32.mrb[0].mxu0
    %v634 = vpop.f32.mrb[0].mxu0
    %v635 = vadd.f32 0.0, %v634
    %v636 = vpop.f32.mrb[0].mxu0
    %637 = vdwg.mxu0
    %v638 = vpack.c.bf16 %v538, %v537
    %639 = vmatprep.subr.bf16.mxu0 0
    %640 = vmatpush1.bf16.msra.mxu0 %v255
    %641 = vmatprep.subr.bf16.mxu0 0
    %642 = vmatpush1.bf16.msra.mxu0 %v256
    %643 = vmatprep.subr.bf16.mxu0 0
    %644 = vmatpush1.bf16.msra.mxu0 %v257
    %645 = vmatprep.subr.bf16.mxu0 0
    %646 = vmatpush1.bf16.msra.mxu0 %v258
    %647 = vmatprep.subr.bf16.mxu0 0
    %648 = vmatpush1.bf16.msra.mxu0 %v259
    %649 = vmatprep.subr.bf16.mxu0 0
    %650 = vmatpush1.bf16.msra.mxu0 %v260
    %651 = vmatprep.subr.bf16.mxu0 0
    %652 = vmatpush1.bf16.msra.mxu0 %v261
    %653 = vmatprep.subr.bf16.mxu0 0
    %654 = vmatpush1.bf16.msra.mxu0 %v262
    %655 = vmatprep.subr.bf16.mxu0 0
    %656 = vmatpush1.bf16.msra.mxu0 0
    %657 = vmatprep.subr.bf16.mxu0 0
    %658 = vmatpush1.bf16.msra.mxu0 0
    %659 = vmatprep.subr.bf16.mxu0 0
    %660 = vmatpush1.bf16.msra.mxu0 0
    %661 = vmatprep.subr.bf16.mxu0 0
    %662 = vmatpush1.bf16.msra.mxu0 0
    %663 = vmatprep.subr.bf16.mxu0 0
    %664 = vmatpush1.bf16.msra.mxu0 0
    %665 = vmatprep.subr.bf16.mxu0 0
    %666 = vmatpush1.bf16.msra.mxu0 0
    %667 = vmatprep.subr.bf16.mxu0 0
    %668 = vmatpush1.bf16.msra.mxu0 0
    %669 = vmatprep.subr.bf16.mxu0 0
    %670 = vmatpush1.bf16.msra.mxu0 0
    %671 = vmatprep.mubr.bf16.mxu0 0
    %672 = vmatmul.mubr.bf16.gmra.mrb[0].mxu0 %v638
    %v673 = vpop.f32.mrb[0].mxu0
    %v674 = vadd.f32 0.0, %v673
    %v675 = vpop.f32.mrb[0].mxu0
    %v676 = vpop.f32.mrb[0].mxu0
    %v677 = vadd.f32 0.0, %v676
    %v678 = vpop.f32.mrb[0].mxu0
    %679 = vdwg.mxu0
    %v680 = vpack.c.bf16 %v553, %v552
    %681 = vmatprep.subr.bf16.mxu0 0
    %682 = vmatpush1.bf16.msra.mxu0 %v255
    %683 = vmatprep.subr.bf16.mxu0 0
    %684 = vmatpush1.bf16.msra.mxu0 %v256
    %685 = vmatprep.subr.bf16.mxu0 0
    %686 = vmatpush1.bf16.msra.mxu0 %v257
    %687 = vmatprep.subr.bf16.mxu0 0
    %688 = vmatpush1.bf16.msra.mxu0 %v258
    %689 = vmatprep.subr.bf16.mxu0 0
    %690 = vmatpush1.bf16.msra.mxu0 %v259
    %691 = vmatprep.subr.bf16.mxu0 0
    %692 = vmatpush1.bf16.msra.mxu0 %v260
    %693 = vmatprep.subr.bf16.mxu0 0
    %694 = vmatpush1.bf16.msra.mxu0 %v261
    %695 = vmatprep.subr.bf16.mxu0 0
    %696 = vmatpush1.bf16.msra.mxu0 %v262
    %697 = vmatprep.subr.bf16.mxu0 0
    %698 = vmatpush1.bf16.msra.mxu0 0
    %699 = vmatprep.subr.bf16.mxu0 0
    %700 = vmatpush1.bf16.msra.mxu0 0
    %701 = vmatprep.subr.bf16.mxu0 0
    %702 = vmatpush1.bf16.msra.mxu0 0
    %703 = vmatprep.subr.bf16.mxu0 0
    %704 = vmatpush1.bf16.msra.mxu0 0
    %705 = vmatprep.subr.bf16.mxu0 0
    %706 = vmatpush1.bf16.msra.mxu0 0
    %707 = vmatprep.subr.bf16.mxu0 0
    %708 = vmatpush1.bf16.msra.mxu0 0
    %709 = vmatprep.subr.bf16.mxu0 0
    %710 = vmatpush1.bf16.msra.mxu0 0
    %711 = vmatprep.subr.bf16.mxu0 0
    %712 = vmatpush1.bf16.msra.mxu0 0
    %713 = vmatprep.mubr.bf16.mxu0 0
    %714 = vmatmul.mubr.bf16.gmra.mrb[0].mxu0 %v680
    %v715 = vpop.f32.mrb[0].mxu0
    %v716 = vadd.f32 0.0, %v715
    %v717 = vpop.f32.mrb[0].mxu0
    %v718 = vpop.f32.mrb[0].mxu0
    %v719 = vadd.f32 0.0, %v718
    %v720 = vpop.f32.mrb[0].mxu0
    %721 = vdwg.mxu0
    %vm722 = vcmp.gt.f32.partialorder %v590, %v440
    %vm723 = vcmp.gt.f32.partialorder %v593, %v441
    %v724 = vsel %vm722, %v590, %v440
    %v725 = vsel %vm723, %v593, %v441
    %v726 = vsel %vm722, %v632, %v442
    %v727 = vsel %vm723, %v635, %v443
    %v728 = vsel %vm722, %v674, %v444
    %v729 = vsel %vm723, %v677, %v445
    %v730 = vsel %vm722, %v716, %v446
    %v731 = vsel %vm723, %v719, %v447
    %vm732 = vcmp.eq.s32.totalorder %v74, 2
    %vm733 = vcmp.eq.s32.totalorder %v75, 2
    %v734 = vsel %vm732, 1, 0
    %v735 = vsel %vm733, 1, 0
    %v736 = vcvt.s32.f32 %v734
    %v737 = vcvt.s32.f32 %v735
    %v738 = vadd.f32 %v736, 0.0
    %v739 = vadd.f32 %v737, 0.0
    %v740 = vsel %vm732, %v86, 0.0
    %v741 = vsel %vm733, %v87, 0.0
    %v742 = vadd.f32 %v740, 0.0
    %v743 = vadd.f32 %v741, 0.0
    %v744 = vsel %vm732, %v95, 0.0
    %v745 = vsel %vm733, %v96, 0.0
    %v746 = vadd.f32 %v744, 0.0
    %v747 = vadd.f32 %v745, 0.0
    %v748 = vsel %vm732, %v104, 0.0
    %v749 = vsel %vm733, %v105, 0.0
    %v750 = vadd.f32 %v748, 0.0
    %v751 = vadd.f32 %v749, 0.0
    %vm752 = vcmp.eq.s32.totalorder %v111, 2
    %vm753 = vcmp.eq.s32.totalorder %v112, 2
    %v754 = vsel %vm752, 1, 0
    %v755 = vsel %vm753, 1, 0
    %v756 = vcvt.s32.f32 %v754
    %v757 = vcvt.s32.f32 %v755
    %v758 = vadd.f32 %v738, %v756
    %v759 = vadd.f32 %v739, %v757
    %v760 = vsel %vm752, %v123, 0.0
    %v761 = vsel %vm753, %v124, 0.0
    %v762 = vadd.f32 %v742, %v760
    %v763 = vadd.f32 %v743, %v761
    %v764 = vsel %vm752, %v131, 0.0
    %v765 = vsel %vm753, %v132, 0.0
    %v766 = vadd.f32 %v746, %v764
    %v767 = vadd.f32 %v747, %v765
    %v768 = vsel %vm752, %v139, 0.0
    %v769 = vsel %vm753, %v140, 0.0
    %v770 = vadd.f32 %v750, %v768
    %v771 = vadd.f32 %v751, %v769
    %vm772 = vcmp.eq.s32.totalorder %v146, 2
    %vm773 = vcmp.eq.s32.totalorder %v147, 2
    %vm774 = vcmp.eq.s32.totalorder %v148, 2
    %v775 = vsel %vm772, 1, 0
    %v776 = vsel %vm773, 1, 0
    %v777 = vsel %vm774, 1, 0
    %v778 = vcvt.s32.f32 %v775
    %v779 = vcvt.s32.f32 %v776
    %v780 = vcvt.s32.f32 %v777
    %v784 = vrot.slane %v778, 1
    %v785 = vrot.slane %v779, 1
    %v786 = vsel %vm161, %v784, %v785
    %v787 = vrot.slane %v780, 1
    %v788 = vsel %vm161, %v785, %v787
    %v791 = vadd.f32 %v758, %v786
    %v792 = vadd.f32 %v759, %v788
    %v793 = vsel %vm772, %v86, 0.0
    %v794 = vsel %vm773, %v87, 0.0
    %v795 = vsel %vm774, %v172, 0.0
    %v799 = vrot.slane %v793, 1
    %v800 = vrot.slane %v794, 1
    %v801 = vsel %vm161, %v799, %v800
    %v802 = vrot.slane %v795, 1
    %v803 = vsel %vm161, %v800, %v802
    %v806 = vadd.f32 %v762, %v801
    %v807 = vadd.f32 %v763, %v803
    %v808 = vsel %vm772, %v95, 0.0
    %v809 = vsel %vm773, %v96, 0.0
    %v810 = vsel %vm774, %v189, 0.0
    %v814 = vrot.slane %v808, 1
    %v815 = vrot.slane %v809, 1
    %v816 = vsel %vm161, %v814, %v815
    %v817 = vrot.slane %v810, 1
    %v818 = vsel %vm161, %v815, %v817
    %v821 = vadd.f32 %v766, %v816
    %v822 = vadd.f32 %v767, %v818
    %v823 = vsel %vm772, %v104, 0.0
    %v824 = vsel %vm773, %v105, 0.0
    %v825 = vsel %vm774, %v206, 0.0
    %v829 = vrot.slane %v823, 1
    %v830 = vrot.slane %v824, 1
    %v831 = vsel %vm161, %v829, %v830
    %v832 = vrot.slane %v825, 1
    %v833 = vsel %vm161, %v830, %v832
    %v836 = vadd.f32 %v770, %v831
    %v837 = vadd.f32 %v771, %v833
    %v838 = vpack.c.bf16 %v792, %v791
    %839 = vmatprep.subr.bf16.mxu0 0
    %840 = vmatpush1.bf16.msra.mxu0 %v255
    %841 = vmatprep.subr.bf16.mxu0 0
    %842 = vmatpush1.bf16.msra.mxu0 %v256
    %843 = vmatprep.subr.bf16.mxu0 0
    %844 = vmatpush1.bf16.msra.mxu0 %v257
    %845 = vmatprep.subr.bf16.mxu0 0
    %846 = vmatpush1.bf16.msra.mxu0 %v258
    %847 = vmatprep.subr.bf16.mxu0 0
    %848 = vmatpush1.bf16.msra.mxu0 %v259
    %849 = vmatprep.subr.bf16.mxu0 0
    %850 = vmatpush1.bf16.msra.mxu0 %v260
    %851 = vmatprep.subr.bf16.mxu0 0
    %852 = vmatpush1.bf16.msra.mxu0 %v261
    %853 = vmatprep.subr.bf16.mxu0 0
    %854 = vmatpush1.bf16.msra.mxu0 %v262
    %855 = vmatprep.subr.bf16.mxu0 0
    %856 = vmatpush1.bf16.msra.mxu0 0
    %857 = vmatprep.subr.bf16.mxu0 0
    %858 = vmatpush1.bf16.msra.mxu0 0
    %859 = vmatprep.subr.bf16.mxu0 0
    %860 = vmatpush1.bf16.msra.mxu0 0
    %861 = vmatprep.subr.bf16.mxu0 0
    %862 = vmatpush1.bf16.msra.mxu0 0
    %863 = vmatprep.subr.bf16.mxu0 0
    %864 = vmatpush1.bf16.msra.mxu0 0
    %865 = vmatprep.subr.bf16.mxu0 0
    %866 = vmatpush1.bf16.msra.mxu0 0
    %867 = vmatprep.subr.bf16.mxu0 0
    %868 = vmatpush1.bf16.msra.mxu0 0
    %869 = vmatprep.subr.bf16.mxu0 0
    %870 = vmatpush1.bf16.msra.mxu0 0
    %871 = vmatprep.mubr.bf16.mxu0 0
    %872 = vmatmul.mubr.bf16.gmra.mrb[0].mxu0 %v838
    %v873 = vpop.f32.mrb[0].mxu0
    %v874 = vadd.f32 0.0, %v873
    %v875 = vpop.f32.mrb[0].mxu0
    %v876 = vpop.f32.mrb[0].mxu0
    %v877 = vadd.f32 0.0, %v876
    %v878 = vpop.f32.mrb[0].mxu0
    %879 = vdwg.mxu0
    %v880 = vpack.c.bf16 %v807, %v806
    %881 = vmatprep.subr.bf16.mxu0 0
    %882 = vmatpush1.bf16.msra.mxu0 %v255
    %883 = vmatprep.subr.bf16.mxu0 0
    %884 = vmatpush1.bf16.msra.mxu0 %v256
    %885 = vmatprep.subr.bf16.mxu0 0
    %886 = vmatpush1.bf16.msra.mxu0 %v257
    %887 = vmatprep.subr.bf16.mxu0 0
    %888 = vmatpush1.bf16.msra.mxu0 %v258
    %889 = vmatprep.subr.bf16.mxu0 0
    %890 = vmatpush1.bf16.msra.mxu0 %v259
    %891 = vmatprep.subr.bf16.mxu0 0
    %892 = vmatpush1.bf16.msra.mxu0 %v260
    %893 = vmatprep.subr.bf16.mxu0 0
    %894 = vmatpush1.bf16.msra.mxu0 %v261
    %895 = vmatprep.subr.bf16.mxu0 0
    %896 = vmatpush1.bf16.msra.mxu0 %v262
    %897 = vmatprep.subr.bf16.mxu0 0
    %898 = vmatpush1.bf16.msra.mxu0 0
    %899 = vmatprep.subr.bf16.mxu0 0
    %900 = vmatpush1.bf16.msra.mxu0 0
    %901 = vmatprep.subr.bf16.mxu0 0
    %902 = vmatpush1.bf16.msra.mxu0 0
    %903 = vmatprep.subr.bf16.mxu0 0
    %904 = vmatpush1.bf16.msra.mxu0 0
    %905 = vmatprep.subr.bf16.mxu0 0
    %906 = vmatpush1.bf16.msra.mxu0 0
    %907 = vmatprep.subr.bf16.mxu0 0
    %908 = vmatpush1.bf16.msra.mxu0 0
    %909 = vmatprep.subr.bf16.mxu0 0
    %910 = vmatpush1.bf16.msra.mxu0 0
    %911 = vmatprep.subr.bf16.mxu0 0
    %912 = vmatpush1.bf16.msra.mxu0 0
    %913 = vmatprep.mubr.bf16.mxu0 0
    %914 = vmatmul.mubr.bf16.gmra.mrb[0].mxu0 %v880
    %v915 = vpop.f32.mrb[0].mxu0
    %v916 = vadd.f32 0.0, %v915
    %v917 = vpop.f32.mrb[0].mxu0
    %v918 = vpop.f32.mrb[0].mxu0
    %v919 = vadd.f32 0.0, %v918
    %v920 = vpop.f32.mrb[0].mxu0
    %921 = vdwg.mxu0
    %v922 = vpack.c.bf16 %v822, %v821
    %923 = vmatprep.subr.bf16.mxu0 0
    %924 = vmatpush1.bf16.msra.mxu0 %v255
    %925 = vmatprep.subr.bf16.mxu0 0
    %926 = vmatpush1.bf16.msra.mxu0 %v256
    %927 = vmatprep.subr.bf16.mxu0 0
    %928 = vmatpush1.bf16.msra.mxu0 %v257
    %929 = vmatprep.subr.bf16.mxu0 0
    %930 = vmatpush1.bf16.msra.mxu0 %v258
    %931 = vmatprep.subr.bf16.mxu0 0
    %932 = vmatpush1.bf16.msra.mxu0 %v259
    %933 = vmatprep.subr.bf16.mxu0 0
    %934 = vmatpush1.bf16.msra.mxu0 %v260
    %935 = vmatprep.subr.bf16.mxu0 0
    %936 = vmatpush1.bf16.msra.mxu0 %v261
    %937 = vmatprep.subr.bf16.mxu0 0
    %938 = vmatpush1.bf16.msra.mxu0 %v262
    %939 = vmatprep.subr.bf16.mxu0 0
    %940 = vmatpush1.bf16.msra.mxu0 0
    %941 = vmatprep.subr.bf16.mxu0 0
    %942 = vmatpush1.bf16.msra.mxu0 0
    %943 = vmatprep.subr.bf16.mxu0 0
    %944 = vmatpush1.bf16.msra.mxu0 0
    %945 = vmatprep.subr.bf16.mxu0 0
    %946 = vmatpush1.bf16.msra.mxu0 0
    %947 = vmatprep.subr.bf16.mxu0 0
    %948 = vmatpush1.bf16.msra.mxu0 0
    %949 = vmatprep.subr.bf16.mxu0 0
    %950 = vmatpush1.bf16.msra.mxu0 0
    %951 = vmatprep.subr.bf16.mxu0 0
    %952 = vmatpush1.bf16.msra.mxu0 0
    %953 = vmatprep.subr.bf16.mxu0 0
    %954 = vmatpush1.bf16.msra.mxu0 0
    %955 = vmatprep.mubr.bf16.mxu0 0
    %956 = vmatmul.mubr.bf16.gmra.mrb[0].mxu0 %v922
    %v957 = vpop.f32.mrb[0].mxu0
    %v958 = vadd.f32 0.0, %v957
    %v959 = vpop.f32.mrb[0].mxu0
    %v960 = vpop.f32.mrb[0].mxu0
    %v961 = vadd.f32 0.0, %v960
    %v962 = vpop.f32.mrb[0].mxu0
    %963 = vdwg.mxu0
    %v964 = vpack.c.bf16 %v837, %v836
    %965 = vmatprep.subr.bf16.mxu0 0
    %966 = vmatpush1.bf16.msra.mxu0 %v255
    %967 = vmatprep.subr.bf16.mxu0 0
    %968 = vmatpush1.bf16.msra.mxu0 %v256
    %969 = vmatprep.subr.bf16.mxu0 0
    %970 = vmatpush1.bf16.msra.mxu0 %v257
    %971 = vmatprep.subr.bf16.mxu0 0
    %972 = vmatpush1.bf16.msra.mxu0 %v258
    %973 = vmatprep.subr.bf16.mxu0 0
    %974 = vmatpush1.bf16.msra.mxu0 %v259
    %975 = vmatprep.subr.bf16.mxu0 0
    %976 = vmatpush1.bf16.msra.mxu0 %v260
    %977 = vmatprep.subr.bf16.mxu0 0
    %978 = vmatpush1.bf16.msra.mxu0 %v261
    %979 = vmatprep.subr.bf16.mxu0 0
    %980 = vmatpush1.bf16.msra.mxu0 %v262
    %981 = vmatprep.subr.bf16.mxu0 0
    %982 = vmatpush1.bf16.msra.mxu0 0
    %983 = vmatprep.subr.bf16.mxu0 0
    %984 = vmatpush1.bf16.msra.mxu0 0
    %985 = vmatprep.subr.bf16.mxu0 0
    %986 = vmatpush1.bf16.msra.mxu0 0
    %987 = vmatprep.subr.bf16.mxu0 0
    %988 = vmatpush1.bf16.msra.mxu0 0
    %989 = vmatprep.subr.bf16.mxu0 0
    %990 = vmatpush1.bf16.msra.mxu0 0
    %991 = vmatprep.subr.bf16.mxu0 0
    %992 = vmatpush1.bf16.msra.mxu0 0
    %993 = vmatprep.subr.bf16.mxu0 0
    %994 = vmatpush1.bf16.msra.mxu0 0
    %995 = vmatprep.subr.bf16.mxu0 0
    %996 = vmatpush1.bf16.msra.mxu0 0
    %997 = vmatprep.mubr.bf16.mxu0 0
    %998 = vmatmul.mubr.bf16.gmra.mrb[0].mxu0 %v964
    %v999 = vpop.f32.mrb[0].mxu0
    %v1000 = vadd.f32 0.0, %v999
    %v1001 = vpop.f32.mrb[0].mxu0
    %v1002 = vpop.f32.mrb[0].mxu0
    %v1003 = vadd.f32 0.0, %v1002
    %v1004 = vpop.f32.mrb[0].mxu0
    %1005 = vdwg.mxu0
    %vm1006 = vcmp.gt.f32.partialorder %v874, %v724
    %vm1007 = vcmp.gt.f32.partialorder %v877, %v725
    %v1008 = vsel %vm1006, %v874, %v724
    %v1009 = vsel %vm1007, %v877, %v725
    %v1010 = vsel %vm1006, %v916, %v726
    %v1011 = vsel %vm1007, %v919, %v727
    %v1012 = vsel %vm1006, %v958, %v728
    %v1013 = vsel %vm1007, %v961, %v729
    %v1014 = vsel %vm1006, %v1000, %v730
    %v1015 = vsel %vm1007, %v1003, %v731
    %vm1016 = vcmp.eq.s32.totalorder %v74, 3
    %vm1017 = vcmp.eq.s32.totalorder %v75, 3
    %v1018 = vsel %vm1016, 1, 0
    %v1019 = vsel %vm1017, 1, 0
    %v1020 = vcvt.s32.f32 %v1018
    %v1021 = vcvt.s32.f32 %v1019
    %v1022 = vadd.f32 %v1020, 0.0
    %v1023 = vadd.f32 %v1021, 0.0
    %v1024 = vsel %vm1016, %v86, 0.0
    %v1025 = vsel %vm1017, %v87, 0.0
    %v1026 = vadd.f32 %v1024, 0.0
    %v1027 = vadd.f32 %v1025, 0.0
    %v1028 = vsel %vm1016, %v95, 0.0
    %v1029 = vsel %vm1017, %v96, 0.0
    %v1030 = vadd.f32 %v1028, 0.0
    %v1031 = vadd.f32 %v1029, 0.0
    %v1032 = vsel %vm1016, %v104, 0.0
    %v1033 = vsel %vm1017, %v105, 0.0
    %v1034 = vadd.f32 %v1032, 0.0
    %v1035 = vadd.f32 %v1033, 0.0
    %vm1036 = vcmp.eq.s32.totalorder %v111, 3
    %vm1037 = vcmp.eq.s32.totalorder %v112, 3
    %v1038 = vsel %vm1036, 1, 0
    %v1039 = vsel %vm1037, 1, 0
    %v1040 = vcvt.s32.f32 %v1038
    %v1041 = vcvt.s32.f32 %v1039
    %v1042 = vadd.f32 %v1022, %v1040
    %v1043 = vadd.f32 %v1023, %v1041
    %v1044 = vsel %vm1036, %v123, 0.0
    %v1045 = vsel %vm1037, %v124, 0.0
    %v1046 = vadd.f32 %v1026, %v1044
    %v1047 = vadd.f32 %v1027, %v1045
    %v1048 = vsel %vm1036, %v131, 0.0
    %v1049 = vsel %vm1037, %v132, 0.0
    %v1050 = vadd.f32 %v1030, %v1048
    %v1051 = vadd.f32 %v1031, %v1049
    %v1052 = vsel %vm1036, %v139, 0.0
    %v1053 = vsel %vm1037, %v140, 0.0
    %v1054 = vadd.f32 %v1034, %v1052
    %v1055 = vadd.f32 %v1035, %v1053
    %vm1056 = vcmp.eq.s32.totalorder %v146, 3
    %vm1057 = vcmp.eq.s32.totalorder %v147, 3
    %vm1058 = vcmp.eq.s32.totalorder %v148, 3
    %v1059 = vsel %vm1056, 1, 0
    %v1060 = vsel %vm1057, 1, 0
    %v1061 = vsel %vm1058, 1, 0
    %v1062 = vcvt.s32.f32 %v1059
    %v1063 = vcvt.s32.f32 %v1060
    %v1064 = vcvt.s32.f32 %v1061
    %v1068 = vrot.slane %v1062, 1
    %v1069 = vrot.slane %v1063, 1
    %v1070 = vsel %vm161, %v1068, %v1069
    %v1071 = vrot.slane %v1064, 1
    %v1072 = vsel %vm161, %v1069, %v1071
    %v1075 = vadd.f32 %v1042, %v1070
    %v1076 = vadd.f32 %v1043, %v1072
    %v1077 = vsel %vm1056, %v86, 0.0
    %v1078 = vsel %vm1057, %v87, 0.0
    %v1079 = vsel %vm1058, %v172, 0.0
    %v1083 = vrot.slane %v1077, 1
    %v1084 = vrot.slane %v1078, 1
    %v1085 = vsel %vm161, %v1083, %v1084
    %v1086 = vrot.slane %v1079, 1
    %v1087 = vsel %vm161, %v1084, %v1086
    %v1090 = vadd.f32 %v1046, %v1085
    %v1091 = vadd.f32 %v1047, %v1087
    %v1092 = vsel %vm1056, %v95, 0.0
    %v1093 = vsel %vm1057, %v96, 0.0
    %v1094 = vsel %vm1058, %v189, 0.0
    %v1098 = vrot.slane %v1092, 1
    %v1099 = vrot.slane %v1093, 1
    %v1100 = vsel %vm161, %v1098, %v1099
    %v1101 = vrot.slane %v1094, 1
    %v1102 = vsel %vm161, %v1099, %v1101
    %v1105 = vadd.f32 %v1050, %v1100
    %v1106 = vadd.f32 %v1051, %v1102
    %v1107 = vsel %vm1056, %v104, 0.0
    %v1108 = vsel %vm1057, %v105, 0.0
    %v1109 = vsel %vm1058, %v206, 0.0
    %v1113 = vrot.slane %v1107, 1
    %v1114 = vrot.slane %v1108, 1
    %v1115 = vsel %vm161, %v1113, %v1114
    %v1116 = vrot.slane %v1109, 1
    %v1117 = vsel %vm161, %v1114, %v1116
    %v1120 = vadd.f32 %v1054, %v1115
    %v1121 = vadd.f32 %v1055, %v1117
    %v1122 = vpack.c.bf16 %v1076, %v1075
    %1123 = vmatprep.subr.bf16.mxu0 0
    %1124 = vmatpush1.bf16.msra.mxu0 %v255
    %1125 = vmatprep.subr.bf16.mxu0 0
    %1126 = vmatpush1.bf16.msra.mxu0 %v256
    %1127 = vmatprep.subr.bf16.mxu0 0
    %1128 = vmatpush1.bf16.msra.mxu0 %v257
    %1129 = vmatprep.subr.bf16.mxu0 0
    %1130 = vmatpush1.bf16.msra.mxu0 %v258
    %1131 = vmatprep.subr.bf16.mxu0 0
    %1132 = vmatpush1.bf16.msra.mxu0 %v259
    %1133 = vmatprep.subr.bf16.mxu0 0
    %1134 = vmatpush1.bf16.msra.mxu0 %v260
    %1135 = vmatprep.subr.bf16.mxu0 0
    %1136 = vmatpush1.bf16.msra.mxu0 %v261
    %1137 = vmatprep.subr.bf16.mxu0 0
    %1138 = vmatpush1.bf16.msra.mxu0 %v262
    %1139 = vmatprep.subr.bf16.mxu0 0
    %1140 = vmatpush1.bf16.msra.mxu0 0
    %1141 = vmatprep.subr.bf16.mxu0 0
    %1142 = vmatpush1.bf16.msra.mxu0 0
    %1143 = vmatprep.subr.bf16.mxu0 0
    %1144 = vmatpush1.bf16.msra.mxu0 0
    %1145 = vmatprep.subr.bf16.mxu0 0
    %1146 = vmatpush1.bf16.msra.mxu0 0
    %1147 = vmatprep.subr.bf16.mxu0 0
    %1148 = vmatpush1.bf16.msra.mxu0 0
    %1149 = vmatprep.subr.bf16.mxu0 0
    %1150 = vmatpush1.bf16.msra.mxu0 0
    %1151 = vmatprep.subr.bf16.mxu0 0
    %1152 = vmatpush1.bf16.msra.mxu0 0
    %1153 = vmatprep.subr.bf16.mxu0 0
    %1154 = vmatpush1.bf16.msra.mxu0 0
    %1155 = vmatprep.mubr.bf16.mxu0 0
    %1156 = vmatmul.mubr.bf16.gmra.mrb[0].mxu0 %v1122
    %v1157 = vpop.f32.mrb[0].mxu0
    %v1158 = vadd.f32 0.0, %v1157
    %v1159 = vpop.f32.mrb[0].mxu0
    %v1160 = vpop.f32.mrb[0].mxu0
    %v1161 = vadd.f32 0.0, %v1160
    %v1162 = vpop.f32.mrb[0].mxu0
    %1163 = vdwg.mxu0
    %v1164 = vpack.c.bf16 %v1091, %v1090
    %1165 = vmatprep.subr.bf16.mxu0 0
    %1166 = vmatpush1.bf16.msra.mxu0 %v255
    %1167 = vmatprep.subr.bf16.mxu0 0
    %1168 = vmatpush1.bf16.msra.mxu0 %v256
    %1169 = vmatprep.subr.bf16.mxu0 0
    %1170 = vmatpush1.bf16.msra.mxu0 %v257
    %1171 = vmatprep.subr.bf16.mxu0 0
    %1172 = vmatpush1.bf16.msra.mxu0 %v258
    %1173 = vmatprep.subr.bf16.mxu0 0
    %1174 = vmatpush1.bf16.msra.mxu0 %v259
    %1175 = vmatprep.subr.bf16.mxu0 0
    %1176 = vmatpush1.bf16.msra.mxu0 %v260
    %1177 = vmatprep.subr.bf16.mxu0 0
    %1178 = vmatpush1.bf16.msra.mxu0 %v261
    %1179 = vmatprep.subr.bf16.mxu0 0
    %1180 = vmatpush1.bf16.msra.mxu0 %v262
    %1181 = vmatprep.subr.bf16.mxu0 0
    %1182 = vmatpush1.bf16.msra.mxu0 0
    %1183 = vmatprep.subr.bf16.mxu0 0
    %1184 = vmatpush1.bf16.msra.mxu0 0
    %1185 = vmatprep.subr.bf16.mxu0 0
    %1186 = vmatpush1.bf16.msra.mxu0 0
    %1187 = vmatprep.subr.bf16.mxu0 0
    %1188 = vmatpush1.bf16.msra.mxu0 0
    %1189 = vmatprep.subr.bf16.mxu0 0
    %1190 = vmatpush1.bf16.msra.mxu0 0
    %1191 = vmatprep.subr.bf16.mxu0 0
    %1192 = vmatpush1.bf16.msra.mxu0 0
    %1193 = vmatprep.subr.bf16.mxu0 0
    %1194 = vmatpush1.bf16.msra.mxu0 0
    %1195 = vmatprep.subr.bf16.mxu0 0
    %1196 = vmatpush1.bf16.msra.mxu0 0
    %1197 = vmatprep.mubr.bf16.mxu0 0
    %1198 = vmatmul.mubr.bf16.gmra.mrb[0].mxu0 %v1164
    %v1199 = vpop.f32.mrb[0].mxu0
    %v1200 = vadd.f32 0.0, %v1199
    %v1201 = vpop.f32.mrb[0].mxu0
    %v1202 = vpop.f32.mrb[0].mxu0
    %v1203 = vadd.f32 0.0, %v1202
    %v1204 = vpop.f32.mrb[0].mxu0
    %1205 = vdwg.mxu0
    %v1206 = vpack.c.bf16 %v1106, %v1105
    %1207 = vmatprep.subr.bf16.mxu0 0
    %1208 = vmatpush1.bf16.msra.mxu0 %v255
    %1209 = vmatprep.subr.bf16.mxu0 0
    %1210 = vmatpush1.bf16.msra.mxu0 %v256
    %1211 = vmatprep.subr.bf16.mxu0 0
    %1212 = vmatpush1.bf16.msra.mxu0 %v257
    %1213 = vmatprep.subr.bf16.mxu0 0
    %1214 = vmatpush1.bf16.msra.mxu0 %v258
    %1215 = vmatprep.subr.bf16.mxu0 0
    %1216 = vmatpush1.bf16.msra.mxu0 %v259
    %1217 = vmatprep.subr.bf16.mxu0 0
    %1218 = vmatpush1.bf16.msra.mxu0 %v260
    %1219 = vmatprep.subr.bf16.mxu0 0
    %1220 = vmatpush1.bf16.msra.mxu0 %v261
    %1221 = vmatprep.subr.bf16.mxu0 0
    %1222 = vmatpush1.bf16.msra.mxu0 %v262
    %1223 = vmatprep.subr.bf16.mxu0 0
    %1224 = vmatpush1.bf16.msra.mxu0 0
    %1225 = vmatprep.subr.bf16.mxu0 0
    %1226 = vmatpush1.bf16.msra.mxu0 0
    %1227 = vmatprep.subr.bf16.mxu0 0
    %1228 = vmatpush1.bf16.msra.mxu0 0
    %1229 = vmatprep.subr.bf16.mxu0 0
    %1230 = vmatpush1.bf16.msra.mxu0 0
    %1231 = vmatprep.subr.bf16.mxu0 0
    %1232 = vmatpush1.bf16.msra.mxu0 0
    %1233 = vmatprep.subr.bf16.mxu0 0
    %1234 = vmatpush1.bf16.msra.mxu0 0
    %1235 = vmatprep.subr.bf16.mxu0 0
    %1236 = vmatpush1.bf16.msra.mxu0 0
    %1237 = vmatprep.subr.bf16.mxu0 0
    %1238 = vmatpush1.bf16.msra.mxu0 0
    %1239 = vmatprep.mubr.bf16.mxu0 0
    %1240 = vmatmul.mubr.bf16.gmra.mrb[0].mxu0 %v1206
    %v1241 = vpop.f32.mrb[0].mxu0
    %v1242 = vadd.f32 0.0, %v1241
    %v1243 = vpop.f32.mrb[0].mxu0
    %v1244 = vpop.f32.mrb[0].mxu0
    %v1245 = vadd.f32 0.0, %v1244
    %v1246 = vpop.f32.mrb[0].mxu0
    %1247 = vdwg.mxu0
    %v1248 = vpack.c.bf16 %v1121, %v1120
    %1249 = vmatprep.subr.bf16.mxu0 0
    %1250 = vmatpush1.bf16.msra.mxu0 %v255
    %1251 = vmatprep.subr.bf16.mxu0 0
    %1252 = vmatpush1.bf16.msra.mxu0 %v256
    %1253 = vmatprep.subr.bf16.mxu0 0
    %1254 = vmatpush1.bf16.msra.mxu0 %v257
    %1255 = vmatprep.subr.bf16.mxu0 0
    %1256 = vmatpush1.bf16.msra.mxu0 %v258
    %1257 = vmatprep.subr.bf16.mxu0 0
    %1258 = vmatpush1.bf16.msra.mxu0 %v259
    %1259 = vmatprep.subr.bf16.mxu0 0
    %1260 = vmatpush1.bf16.msra.mxu0 %v260
    %1261 = vmatprep.subr.bf16.mxu0 0
    %1262 = vmatpush1.bf16.msra.mxu0 %v261
    %1263 = vmatprep.subr.bf16.mxu0 0
    %1264 = vmatpush1.bf16.msra.mxu0 %v262
    %1265 = vmatprep.subr.bf16.mxu0 0
    %1266 = vmatpush1.bf16.msra.mxu0 0
    %1267 = vmatprep.subr.bf16.mxu0 0
    %1268 = vmatpush1.bf16.msra.mxu0 0
    %1269 = vmatprep.subr.bf16.mxu0 0
    %1270 = vmatpush1.bf16.msra.mxu0 0
    %1271 = vmatprep.subr.bf16.mxu0 0
    %1272 = vmatpush1.bf16.msra.mxu0 0
    %1273 = vmatprep.subr.bf16.mxu0 0
    %1274 = vmatpush1.bf16.msra.mxu0 0
    %1275 = vmatprep.subr.bf16.mxu0 0
    %1276 = vmatpush1.bf16.msra.mxu0 0
    %1277 = vmatprep.subr.bf16.mxu0 0
    %1278 = vmatpush1.bf16.msra.mxu0 0
    %1279 = vmatprep.subr.bf16.mxu0 0
    %1280 = vmatpush1.bf16.msra.mxu0 0
    %1281 = vmatprep.mubr.bf16.mxu0 0
    %1282 = vmatmul.mubr.bf16.gmra.mrb[0].mxu0 %v1248
    %v1283 = vpop.f32.mrb[0].mxu0
    %v1284 = vadd.f32 0.0, %v1283
    %v1285 = vpop.f32.mrb[0].mxu0
    %v1286 = vpop.f32.mrb[0].mxu0
    %v1287 = vadd.f32 0.0, %v1286
    %v1288 = vpop.f32.mrb[0].mxu0
    %1289 = vdwg.mxu0
    %vm1290 = vcmp.gt.f32.partialorder %v1158, %v1008
    %vm1291 = vcmp.gt.f32.partialorder %v1161, %v1009
    %v1292 = vsel %vm1290, %v1158, %v1008
    %v1293 = vsel %vm1291, %v1161, %v1009
    %v1294 = vsel %vm1290, %v1200, %v1010
    %v1295 = vsel %vm1291, %v1203, %v1011
    %v1296 = vsel %vm1290, %v1242, %v1012
    %v1297 = vsel %vm1291, %v1245, %v1013
    %v1298 = vsel %vm1290, %v1284, %v1014
    %v1299 = vsel %vm1291, %v1287, %v1015
    %vm1300 = vcmp.eq.s32.totalorder %v74, 4
    %vm1301 = vcmp.eq.s32.totalorder %v75, 4
    %v1302 = vsel %vm1300, 1, 0
    %v1303 = vsel %vm1301, 1, 0
    %v1304 = vcvt.s32.f32 %v1302
    %v1305 = vcvt.s32.f32 %v1303
    %v1306 = vadd.f32 %v1304, 0.0
    %v1307 = vadd.f32 %v1305, 0.0
    %v1308 = vsel %vm1300, %v86, 0.0
    %v1309 = vsel %vm1301, %v87, 0.0
    %v1310 = vadd.f32 %v1308, 0.0
    %v1311 = vadd.f32 %v1309, 0.0
    %v1312 = vsel %vm1300, %v95, 0.0
    %v1313 = vsel %vm1301, %v96, 0.0
    %v1314 = vadd.f32 %v1312, 0.0
    %v1315 = vadd.f32 %v1313, 0.0
    %v1316 = vsel %vm1300, %v104, 0.0
    %v1317 = vsel %vm1301, %v105, 0.0
    %v1318 = vadd.f32 %v1316, 0.0
    %v1319 = vadd.f32 %v1317, 0.0
    %vm1320 = vcmp.eq.s32.totalorder %v111, 4
    %vm1321 = vcmp.eq.s32.totalorder %v112, 4
    %v1322 = vsel %vm1320, 1, 0
    %v1323 = vsel %vm1321, 1, 0
    %v1324 = vcvt.s32.f32 %v1322
    %v1325 = vcvt.s32.f32 %v1323
    %v1326 = vadd.f32 %v1306, %v1324
    %v1327 = vadd.f32 %v1307, %v1325
    %v1328 = vsel %vm1320, %v123, 0.0
    %v1329 = vsel %vm1321, %v124, 0.0
    %v1330 = vadd.f32 %v1310, %v1328
    %v1331 = vadd.f32 %v1311, %v1329
    %v1332 = vsel %vm1320, %v131, 0.0
    %v1333 = vsel %vm1321, %v132, 0.0
    %v1334 = vadd.f32 %v1314, %v1332
    %v1335 = vadd.f32 %v1315, %v1333
    %v1336 = vsel %vm1320, %v139, 0.0
    %v1337 = vsel %vm1321, %v140, 0.0
    %v1338 = vadd.f32 %v1318, %v1336
    %v1339 = vadd.f32 %v1319, %v1337
    %vm1340 = vcmp.eq.s32.totalorder %v146, 4
    %vm1341 = vcmp.eq.s32.totalorder %v147, 4
    %vm1342 = vcmp.eq.s32.totalorder %v148, 4
    %v1343 = vsel %vm1340, 1, 0
    %v1344 = vsel %vm1341, 1, 0
    %v1345 = vsel %vm1342, 1, 0
    %v1346 = vcvt.s32.f32 %v1343
    %v1347 = vcvt.s32.f32 %v1344
    %v1348 = vcvt.s32.f32 %v1345
    %v1352 = vrot.slane %v1346, 1
    %v1353 = vrot.slane %v1347, 1
    %v1354 = vsel %vm161, %v1352, %v1353
    %v1355 = vrot.slane %v1348, 1
    %v1356 = vsel %vm161, %v1353, %v1355
    %v1359 = vadd.f32 %v1326, %v1354
    %v1360 = vadd.f32 %v1327, %v1356
    %v1361 = vsel %vm1340, %v86, 0.0
    %v1362 = vsel %vm1341, %v87, 0.0
    %v1363 = vsel %vm1342, %v172, 0.0
    %v1367 = vrot.slane %v1361, 1
    %v1368 = vrot.slane %v1362, 1
    %v1369 = vsel %vm161, %v1367, %v1368
    %v1370 = vrot.slane %v1363, 1
    %v1371 = vsel %vm161, %v1368, %v1370
    %v1374 = vadd.f32 %v1330, %v1369
    %v1375 = vadd.f32 %v1331, %v1371
    %v1376 = vsel %vm1340, %v95, 0.0
    %v1377 = vsel %vm1341, %v96, 0.0
    %v1378 = vsel %vm1342, %v189, 0.0
    %v1382 = vrot.slane %v1376, 1
    %v1383 = vrot.slane %v1377, 1
    %v1384 = vsel %vm161, %v1382, %v1383
    %v1385 = vrot.slane %v1378, 1
    %v1386 = vsel %vm161, %v1383, %v1385
    %v1389 = vadd.f32 %v1334, %v1384
    %v1390 = vadd.f32 %v1335, %v1386
    %v1391 = vsel %vm1340, %v104, 0.0
    %v1392 = vsel %vm1341, %v105, 0.0
    %v1393 = vsel %vm1342, %v206, 0.0
    %v1397 = vrot.slane %v1391, 1
    %v1398 = vrot.slane %v1392, 1
    %v1399 = vsel %vm161, %v1397, %v1398
    %v1400 = vrot.slane %v1393, 1
    %v1401 = vsel %vm161, %v1398, %v1400
    %v1404 = vadd.f32 %v1338, %v1399
    %v1405 = vadd.f32 %v1339, %v1401
    %v1406 = vpack.c.bf16 %v1360, %v1359
    %1407 = vmatprep.subr.bf16.mxu0 0
    %1408 = vmatpush1.bf16.msra.mxu0 %v255
    %1409 = vmatprep.subr.bf16.mxu0 0
    %1410 = vmatpush1.bf16.msra.mxu0 %v256
    %1411 = vmatprep.subr.bf16.mxu0 0
    %1412 = vmatpush1.bf16.msra.mxu0 %v257
    %1413 = vmatprep.subr.bf16.mxu0 0
    %1414 = vmatpush1.bf16.msra.mxu0 %v258
    %1415 = vmatprep.subr.bf16.mxu0 0
    %1416 = vmatpush1.bf16.msra.mxu0 %v259
    %1417 = vmatprep.subr.bf16.mxu0 0
    %1418 = vmatpush1.bf16.msra.mxu0 %v260
    %1419 = vmatprep.subr.bf16.mxu0 0
    %1420 = vmatpush1.bf16.msra.mxu0 %v261
    %1421 = vmatprep.subr.bf16.mxu0 0
    %1422 = vmatpush1.bf16.msra.mxu0 %v262
    %1423 = vmatprep.subr.bf16.mxu0 0
    %1424 = vmatpush1.bf16.msra.mxu0 0
    %1425 = vmatprep.subr.bf16.mxu0 0
    %1426 = vmatpush1.bf16.msra.mxu0 0
    %1427 = vmatprep.subr.bf16.mxu0 0
    %1428 = vmatpush1.bf16.msra.mxu0 0
    %1429 = vmatprep.subr.bf16.mxu0 0
    %1430 = vmatpush1.bf16.msra.mxu0 0
    %1431 = vmatprep.subr.bf16.mxu0 0
    %1432 = vmatpush1.bf16.msra.mxu0 0
    %1433 = vmatprep.subr.bf16.mxu0 0
    %1434 = vmatpush1.bf16.msra.mxu0 0
    %1435 = vmatprep.subr.bf16.mxu0 0
    %1436 = vmatpush1.bf16.msra.mxu0 0
    %1437 = vmatprep.subr.bf16.mxu0 0
    %1438 = vmatpush1.bf16.msra.mxu0 0
    %1439 = vmatprep.mubr.bf16.mxu0 0
    %1440 = vmatmul.mubr.bf16.gmra.mrb[0].mxu0 %v1406
    %v1441 = vpop.f32.mrb[0].mxu0
    %v1442 = vadd.f32 0.0, %v1441
    %v1443 = vpop.f32.mrb[0].mxu0
    %v1444 = vpop.f32.mrb[0].mxu0
    %v1445 = vadd.f32 0.0, %v1444
    %v1446 = vpop.f32.mrb[0].mxu0
    %1447 = vdwg.mxu0
    %v1448 = vpack.c.bf16 %v1375, %v1374
    %1449 = vmatprep.subr.bf16.mxu0 0
    %1450 = vmatpush1.bf16.msra.mxu0 %v255
    %1451 = vmatprep.subr.bf16.mxu0 0
    %1452 = vmatpush1.bf16.msra.mxu0 %v256
    %1453 = vmatprep.subr.bf16.mxu0 0
    %1454 = vmatpush1.bf16.msra.mxu0 %v257
    %1455 = vmatprep.subr.bf16.mxu0 0
    %1456 = vmatpush1.bf16.msra.mxu0 %v258
    %1457 = vmatprep.subr.bf16.mxu0 0
    %1458 = vmatpush1.bf16.msra.mxu0 %v259
    %1459 = vmatprep.subr.bf16.mxu0 0
    %1460 = vmatpush1.bf16.msra.mxu0 %v260
    %1461 = vmatprep.subr.bf16.mxu0 0
    %1462 = vmatpush1.bf16.msra.mxu0 %v261
    %1463 = vmatprep.subr.bf16.mxu0 0
    %1464 = vmatpush1.bf16.msra.mxu0 %v262
    %1465 = vmatprep.subr.bf16.mxu0 0
    %1466 = vmatpush1.bf16.msra.mxu0 0
    %1467 = vmatprep.subr.bf16.mxu0 0
    %1468 = vmatpush1.bf16.msra.mxu0 0
    %1469 = vmatprep.subr.bf16.mxu0 0
    %1470 = vmatpush1.bf16.msra.mxu0 0
    %1471 = vmatprep.subr.bf16.mxu0 0
    %1472 = vmatpush1.bf16.msra.mxu0 0
    %1473 = vmatprep.subr.bf16.mxu0 0
    %1474 = vmatpush1.bf16.msra.mxu0 0
    %1475 = vmatprep.subr.bf16.mxu0 0
    %1476 = vmatpush1.bf16.msra.mxu0 0
    %1477 = vmatprep.subr.bf16.mxu0 0
    %1478 = vmatpush1.bf16.msra.mxu0 0
    %1479 = vmatprep.subr.bf16.mxu0 0
    %1480 = vmatpush1.bf16.msra.mxu0 0
    %1481 = vmatprep.mubr.bf16.mxu0 0
    %1482 = vmatmul.mubr.bf16.gmra.mrb[0].mxu0 %v1448
    %v1483 = vpop.f32.mrb[0].mxu0
    %v1484 = vadd.f32 0.0, %v1483
    %v1485 = vpop.f32.mrb[0].mxu0
    %v1486 = vpop.f32.mrb[0].mxu0
    %v1487 = vadd.f32 0.0, %v1486
    %v1488 = vpop.f32.mrb[0].mxu0
    %1489 = vdwg.mxu0
    %v1490 = vpack.c.bf16 %v1390, %v1389
    %1491 = vmatprep.subr.bf16.mxu0 0
    %1492 = vmatpush1.bf16.msra.mxu0 %v255
    %1493 = vmatprep.subr.bf16.mxu0 0
    %1494 = vmatpush1.bf16.msra.mxu0 %v256
    %1495 = vmatprep.subr.bf16.mxu0 0
    %1496 = vmatpush1.bf16.msra.mxu0 %v257
    %1497 = vmatprep.subr.bf16.mxu0 0
    %1498 = vmatpush1.bf16.msra.mxu0 %v258
    %1499 = vmatprep.subr.bf16.mxu0 0
    %1500 = vmatpush1.bf16.msra.mxu0 %v259
    %1501 = vmatprep.subr.bf16.mxu0 0
    %1502 = vmatpush1.bf16.msra.mxu0 %v260
    %1503 = vmatprep.subr.bf16.mxu0 0
    %1504 = vmatpush1.bf16.msra.mxu0 %v261
    %1505 = vmatprep.subr.bf16.mxu0 0
    %1506 = vmatpush1.bf16.msra.mxu0 %v262
    %1507 = vmatprep.subr.bf16.mxu0 0
    %1508 = vmatpush1.bf16.msra.mxu0 0
    %1509 = vmatprep.subr.bf16.mxu0 0
    %1510 = vmatpush1.bf16.msra.mxu0 0
    %1511 = vmatprep.subr.bf16.mxu0 0
    %1512 = vmatpush1.bf16.msra.mxu0 0
    %1513 = vmatprep.subr.bf16.mxu0 0
    %1514 = vmatpush1.bf16.msra.mxu0 0
    %1515 = vmatprep.subr.bf16.mxu0 0
    %1516 = vmatpush1.bf16.msra.mxu0 0
    %1517 = vmatprep.subr.bf16.mxu0 0
    %1518 = vmatpush1.bf16.msra.mxu0 0
    %1519 = vmatprep.subr.bf16.mxu0 0
    %1520 = vmatpush1.bf16.msra.mxu0 0
    %1521 = vmatprep.subr.bf16.mxu0 0
    %1522 = vmatpush1.bf16.msra.mxu0 0
    %1523 = vmatprep.mubr.bf16.mxu0 0
    %1524 = vmatmul.mubr.bf16.gmra.mrb[0].mxu0 %v1490
    %v1525 = vpop.f32.mrb[0].mxu0
    %v1526 = vadd.f32 0.0, %v1525
    %v1527 = vpop.f32.mrb[0].mxu0
    %v1528 = vpop.f32.mrb[0].mxu0
    %v1529 = vadd.f32 0.0, %v1528
    %v1530 = vpop.f32.mrb[0].mxu0
    %1531 = vdwg.mxu0
    %v1532 = vpack.c.bf16 %v1405, %v1404
    %1533 = vmatprep.subr.bf16.mxu0 0
    %1534 = vmatpush1.bf16.msra.mxu0 %v255
    %1535 = vmatprep.subr.bf16.mxu0 0
    %1536 = vmatpush1.bf16.msra.mxu0 %v256
    %1537 = vmatprep.subr.bf16.mxu0 0
    %1538 = vmatpush1.bf16.msra.mxu0 %v257
    %1539 = vmatprep.subr.bf16.mxu0 0
    %1540 = vmatpush1.bf16.msra.mxu0 %v258
    %1541 = vmatprep.subr.bf16.mxu0 0
    %1542 = vmatpush1.bf16.msra.mxu0 %v259
    %1543 = vmatprep.subr.bf16.mxu0 0
    %1544 = vmatpush1.bf16.msra.mxu0 %v260
    %1545 = vmatprep.subr.bf16.mxu0 0
    %1546 = vmatpush1.bf16.msra.mxu0 %v261
    %1547 = vmatprep.subr.bf16.mxu0 0
    %1548 = vmatpush1.bf16.msra.mxu0 %v262
    %1549 = vmatprep.subr.bf16.mxu0 0
    %1550 = vmatpush1.bf16.msra.mxu0 0
    %1551 = vmatprep.subr.bf16.mxu0 0
    %1552 = vmatpush1.bf16.msra.mxu0 0
    %1553 = vmatprep.subr.bf16.mxu0 0
    %1554 = vmatpush1.bf16.msra.mxu0 0
    %1555 = vmatprep.subr.bf16.mxu0 0
    %1556 = vmatpush1.bf16.msra.mxu0 0
    %1557 = vmatprep.subr.bf16.mxu0 0
    %1558 = vmatpush1.bf16.msra.mxu0 0
    %1559 = vmatprep.subr.bf16.mxu0 0
    %1560 = vmatpush1.bf16.msra.mxu0 0
    %1561 = vmatprep.subr.bf16.mxu0 0
    %1562 = vmatpush1.bf16.msra.mxu0 0
    %1563 = vmatprep.subr.bf16.mxu0 0
    %1564 = vmatpush1.bf16.msra.mxu0 0
    %1565 = vmatprep.mubr.bf16.mxu0 0
    %1566 = vmatmul.mubr.bf16.gmra.mrb[0].mxu0 %v1532
    %v1567 = vpop.f32.mrb[0].mxu0
    %v1568 = vadd.f32 0.0, %v1567
    %v1569 = vpop.f32.mrb[0].mxu0
    %v1570 = vpop.f32.mrb[0].mxu0
    %v1571 = vadd.f32 0.0, %v1570
    %v1572 = vpop.f32.mrb[0].mxu0
    %1573 = vdwg.mxu0
    %vm1574 = vcmp.gt.f32.partialorder %v1442, %v1292
    %vm1575 = vcmp.gt.f32.partialorder %v1445, %v1293
    %v1576 = vsel %vm1574, %v1442, %v1292
    %v1577 = vsel %vm1575, %v1445, %v1293
    %v1578 = vsel %vm1574, %v1484, %v1294
    %v1579 = vsel %vm1575, %v1487, %v1295
    %v1580 = vsel %vm1574, %v1526, %v1296
    %v1581 = vsel %vm1575, %v1529, %v1297
    %v1582 = vsel %vm1574, %v1568, %v1298
    %v1583 = vsel %vm1575, %v1571, %v1299
    %vm1584 = vcmp.eq.s32.totalorder %v74, 5
    %vm1585 = vcmp.eq.s32.totalorder %v75, 5
    %v1586 = vsel %vm1584, 1, 0
    %v1587 = vsel %vm1585, 1, 0
    %v1588 = vcvt.s32.f32 %v1586
    %v1589 = vcvt.s32.f32 %v1587
    %v1590 = vadd.f32 %v1588, 0.0
    %v1591 = vadd.f32 %v1589, 0.0
    %v1592 = vsel %vm1584, %v86, 0.0
    %v1593 = vsel %vm1585, %v87, 0.0
    %v1594 = vadd.f32 %v1592, 0.0
    %v1595 = vadd.f32 %v1593, 0.0
    %v1596 = vsel %vm1584, %v95, 0.0
    %v1597 = vsel %vm1585, %v96, 0.0
    %v1598 = vadd.f32 %v1596, 0.0
    %v1599 = vadd.f32 %v1597, 0.0
    %v1600 = vsel %vm1584, %v104, 0.0
    %v1601 = vsel %vm1585, %v105, 0.0
    %v1602 = vadd.f32 %v1600, 0.0
    %v1603 = vadd.f32 %v1601, 0.0
    %vm1604 = vcmp.eq.s32.totalorder %v111, 5
    %vm1605 = vcmp.eq.s32.totalorder %v112, 5
    %v1606 = vsel %vm1604, 1, 0
    %v1607 = vsel %vm1605, 1, 0
    %v1608 = vcvt.s32.f32 %v1606
    %v1609 = vcvt.s32.f32 %v1607
    %v1610 = vadd.f32 %v1590, %v1608
    %v1611 = vadd.f32 %v1591, %v1609
    %v1612 = vsel %vm1604, %v123, 0.0
    %v1613 = vsel %vm1605, %v124, 0.0
    %v1614 = vadd.f32 %v1594, %v1612
    %v1615 = vadd.f32 %v1595, %v1613
    %v1616 = vsel %vm1604, %v131, 0.0
    %v1617 = vsel %vm1605, %v132, 0.0
    %v1618 = vadd.f32 %v1598, %v1616
    %v1619 = vadd.f32 %v1599, %v1617
    %v1620 = vsel %vm1604, %v139, 0.0
    %v1621 = vsel %vm1605, %v140, 0.0
    %v1622 = vadd.f32 %v1602, %v1620
    %v1623 = vadd.f32 %v1603, %v1621
    %vm1624 = vcmp.eq.s32.totalorder %v146, 5
    %vm1625 = vcmp.eq.s32.totalorder %v147, 5
    %vm1626 = vcmp.eq.s32.totalorder %v148, 5
    %v1627 = vsel %vm1624, 1, 0
    %v1628 = vsel %vm1625, 1, 0
    %v1629 = vsel %vm1626, 1, 0
    %v1630 = vcvt.s32.f32 %v1627
    %v1631 = vcvt.s32.f32 %v1628
    %v1632 = vcvt.s32.f32 %v1629
    %v1636 = vrot.slane %v1630, 1
    %v1637 = vrot.slane %v1631, 1
    %v1638 = vsel %vm161, %v1636, %v1637
    %v1639 = vrot.slane %v1632, 1
    %v1640 = vsel %vm161, %v1637, %v1639
    %v1643 = vadd.f32 %v1610, %v1638
    %v1644 = vadd.f32 %v1611, %v1640
    %v1645 = vsel %vm1624, %v86, 0.0
    %v1646 = vsel %vm1625, %v87, 0.0
    %v1647 = vsel %vm1626, %v172, 0.0
    %v1651 = vrot.slane %v1645, 1
    %v1652 = vrot.slane %v1646, 1
    %v1653 = vsel %vm161, %v1651, %v1652
    %v1654 = vrot.slane %v1647, 1
    %v1655 = vsel %vm161, %v1652, %v1654
    %v1658 = vadd.f32 %v1614, %v1653
    %v1659 = vadd.f32 %v1615, %v1655
    %v1660 = vsel %vm1624, %v95, 0.0
    %v1661 = vsel %vm1625, %v96, 0.0
    %v1662 = vsel %vm1626, %v189, 0.0
    %v1666 = vrot.slane %v1660, 1
    %v1667 = vrot.slane %v1661, 1
    %v1668 = vsel %vm161, %v1666, %v1667
    %v1669 = vrot.slane %v1662, 1
    %v1670 = vsel %vm161, %v1667, %v1669
    %v1673 = vadd.f32 %v1618, %v1668
    %v1674 = vadd.f32 %v1619, %v1670
    %v1675 = vsel %vm1624, %v104, 0.0
    %v1676 = vsel %vm1625, %v105, 0.0
    %v1677 = vsel %vm1626, %v206, 0.0
    %v1681 = vrot.slane %v1675, 1
    %v1682 = vrot.slane %v1676, 1
    %v1683 = vsel %vm161, %v1681, %v1682
    %v1684 = vrot.slane %v1677, 1
    %v1685 = vsel %vm161, %v1682, %v1684
    %v1688 = vadd.f32 %v1622, %v1683
    %v1689 = vadd.f32 %v1623, %v1685
    %v1690 = vpack.c.bf16 %v1644, %v1643
    %1691 = vmatprep.subr.bf16.mxu0 0
    %1692 = vmatpush1.bf16.msra.mxu0 %v255
    %1693 = vmatprep.subr.bf16.mxu0 0
    %1694 = vmatpush1.bf16.msra.mxu0 %v256
    %1695 = vmatprep.subr.bf16.mxu0 0
    %1696 = vmatpush1.bf16.msra.mxu0 %v257
    %1697 = vmatprep.subr.bf16.mxu0 0
    %1698 = vmatpush1.bf16.msra.mxu0 %v258
    %1699 = vmatprep.subr.bf16.mxu0 0
    %1700 = vmatpush1.bf16.msra.mxu0 %v259
    %1701 = vmatprep.subr.bf16.mxu0 0
    %1702 = vmatpush1.bf16.msra.mxu0 %v260
    %1703 = vmatprep.subr.bf16.mxu0 0
    %1704 = vmatpush1.bf16.msra.mxu0 %v261
    %1705 = vmatprep.subr.bf16.mxu0 0
    %1706 = vmatpush1.bf16.msra.mxu0 %v262
    %1707 = vmatprep.subr.bf16.mxu0 0
    %1708 = vmatpush1.bf16.msra.mxu0 0
    %1709 = vmatprep.subr.bf16.mxu0 0
    %1710 = vmatpush1.bf16.msra.mxu0 0
    %1711 = vmatprep.subr.bf16.mxu0 0
    %1712 = vmatpush1.bf16.msra.mxu0 0
    %1713 = vmatprep.subr.bf16.mxu0 0
    %1714 = vmatpush1.bf16.msra.mxu0 0
    %1715 = vmatprep.subr.bf16.mxu0 0
    %1716 = vmatpush1.bf16.msra.mxu0 0
    %1717 = vmatprep.subr.bf16.mxu0 0
    %1718 = vmatpush1.bf16.msra.mxu0 0
    %1719 = vmatprep.subr.bf16.mxu0 0
    %1720 = vmatpush1.bf16.msra.mxu0 0
    %1721 = vmatprep.subr.bf16.mxu0 0
    %1722 = vmatpush1.bf16.msra.mxu0 0
    %1723 = vmatprep.mubr.bf16.mxu0 0
    %1724 = vmatmul.mubr.bf16.gmra.mrb[0].mxu0 %v1690
    %v1725 = vpop.f32.mrb[0].mxu0
    %v1726 = vadd.f32 0.0, %v1725
    %v1727 = vpop.f32.mrb[0].mxu0
    %v1728 = vpop.f32.mrb[0].mxu0
    %v1729 = vadd.f32 0.0, %v1728
    %v1730 = vpop.f32.mrb[0].mxu0
    %1731 = vdwg.mxu0
    %v1732 = vpack.c.bf16 %v1659, %v1658
    %1733 = vmatprep.subr.bf16.mxu0 0
    %1734 = vmatpush1.bf16.msra.mxu0 %v255
    %1735 = vmatprep.subr.bf16.mxu0 0
    %1736 = vmatpush1.bf16.msra.mxu0 %v256
    %1737 = vmatprep.subr.bf16.mxu0 0
    %1738 = vmatpush1.bf16.msra.mxu0 %v257
    %1739 = vmatprep.subr.bf16.mxu0 0
    %1740 = vmatpush1.bf16.msra.mxu0 %v258
    %1741 = vmatprep.subr.bf16.mxu0 0
    %1742 = vmatpush1.bf16.msra.mxu0 %v259
    %1743 = vmatprep.subr.bf16.mxu0 0
    %1744 = vmatpush1.bf16.msra.mxu0 %v260
    %1745 = vmatprep.subr.bf16.mxu0 0
    %1746 = vmatpush1.bf16.msra.mxu0 %v261
    %1747 = vmatprep.subr.bf16.mxu0 0
    %1748 = vmatpush1.bf16.msra.mxu0 %v262
    %1749 = vmatprep.subr.bf16.mxu0 0
    %1750 = vmatpush1.bf16.msra.mxu0 0
    %1751 = vmatprep.subr.bf16.mxu0 0
    %1752 = vmatpush1.bf16.msra.mxu0 0
    %1753 = vmatprep.subr.bf16.mxu0 0
    %1754 = vmatpush1.bf16.msra.mxu0 0
    %1755 = vmatprep.subr.bf16.mxu0 0
    %1756 = vmatpush1.bf16.msra.mxu0 0
    %1757 = vmatprep.subr.bf16.mxu0 0
    %1758 = vmatpush1.bf16.msra.mxu0 0
    %1759 = vmatprep.subr.bf16.mxu0 0
    %1760 = vmatpush1.bf16.msra.mxu0 0
    %1761 = vmatprep.subr.bf16.mxu0 0
    %1762 = vmatpush1.bf16.msra.mxu0 0
    %1763 = vmatprep.subr.bf16.mxu0 0
    %1764 = vmatpush1.bf16.msra.mxu0 0
    %1765 = vmatprep.mubr.bf16.mxu0 0
    %1766 = vmatmul.mubr.bf16.gmra.mrb[0].mxu0 %v1732
    %v1767 = vpop.f32.mrb[0].mxu0
    %v1768 = vadd.f32 0.0, %v1767
    %v1769 = vpop.f32.mrb[0].mxu0
    %v1770 = vpop.f32.mrb[0].mxu0
    %v1771 = vadd.f32 0.0, %v1770
    %v1772 = vpop.f32.mrb[0].mxu0
    %1773 = vdwg.mxu0
    %v1774 = vpack.c.bf16 %v1674, %v1673
    %1775 = vmatprep.subr.bf16.mxu0 0
    %1776 = vmatpush1.bf16.msra.mxu0 %v255
    %1777 = vmatprep.subr.bf16.mxu0 0
    %1778 = vmatpush1.bf16.msra.mxu0 %v256
    %1779 = vmatprep.subr.bf16.mxu0 0
    %1780 = vmatpush1.bf16.msra.mxu0 %v257
    %1781 = vmatprep.subr.bf16.mxu0 0
    %1782 = vmatpush1.bf16.msra.mxu0 %v258
    %1783 = vmatprep.subr.bf16.mxu0 0
    %1784 = vmatpush1.bf16.msra.mxu0 %v259
    %1785 = vmatprep.subr.bf16.mxu0 0
    %1786 = vmatpush1.bf16.msra.mxu0 %v260
    %1787 = vmatprep.subr.bf16.mxu0 0
    %1788 = vmatpush1.bf16.msra.mxu0 %v261
    %1789 = vmatprep.subr.bf16.mxu0 0
    %1790 = vmatpush1.bf16.msra.mxu0 %v262
    %1791 = vmatprep.subr.bf16.mxu0 0
    %1792 = vmatpush1.bf16.msra.mxu0 0
    %1793 = vmatprep.subr.bf16.mxu0 0
    %1794 = vmatpush1.bf16.msra.mxu0 0
    %1795 = vmatprep.subr.bf16.mxu0 0
    %1796 = vmatpush1.bf16.msra.mxu0 0
    %1797 = vmatprep.subr.bf16.mxu0 0
    %1798 = vmatpush1.bf16.msra.mxu0 0
    %1799 = vmatprep.subr.bf16.mxu0 0
    %1800 = vmatpush1.bf16.msra.mxu0 0
    %1801 = vmatprep.subr.bf16.mxu0 0
    %1802 = vmatpush1.bf16.msra.mxu0 0
    %1803 = vmatprep.subr.bf16.mxu0 0
    %1804 = vmatpush1.bf16.msra.mxu0 0
    %1805 = vmatprep.subr.bf16.mxu0 0
    %1806 = vmatpush1.bf16.msra.mxu0 0
    %1807 = vmatprep.mubr.bf16.mxu0 0
    %1808 = vmatmul.mubr.bf16.gmra.mrb[0].mxu0 %v1774
    %v1809 = vpop.f32.mrb[0].mxu0
    %v1810 = vadd.f32 0.0, %v1809
    %v1811 = vpop.f32.mrb[0].mxu0
    %v1812 = vpop.f32.mrb[0].mxu0
    %v1813 = vadd.f32 0.0, %v1812
    %v1814 = vpop.f32.mrb[0].mxu0
    %1815 = vdwg.mxu0
    %v1816 = vpack.c.bf16 %v1689, %v1688
    %1817 = vmatprep.subr.bf16.mxu0 0
    %1818 = vmatpush1.bf16.msra.mxu0 %v255
    %1819 = vmatprep.subr.bf16.mxu0 0
    %1820 = vmatpush1.bf16.msra.mxu0 %v256
    %1821 = vmatprep.subr.bf16.mxu0 0
    %1822 = vmatpush1.bf16.msra.mxu0 %v257
    %1823 = vmatprep.subr.bf16.mxu0 0
    %1824 = vmatpush1.bf16.msra.mxu0 %v258
    %1825 = vmatprep.subr.bf16.mxu0 0
    %1826 = vmatpush1.bf16.msra.mxu0 %v259
    %1827 = vmatprep.subr.bf16.mxu0 0
    %1828 = vmatpush1.bf16.msra.mxu0 %v260
    %1829 = vmatprep.subr.bf16.mxu0 0
    %1830 = vmatpush1.bf16.msra.mxu0 %v261
    %1831 = vmatprep.subr.bf16.mxu0 0
    %1832 = vmatpush1.bf16.msra.mxu0 %v262
    %1833 = vmatprep.subr.bf16.mxu0 0
    %1834 = vmatpush1.bf16.msra.mxu0 0
    %1835 = vmatprep.subr.bf16.mxu0 0
    %1836 = vmatpush1.bf16.msra.mxu0 0
    %1837 = vmatprep.subr.bf16.mxu0 0
    %1838 = vmatpush1.bf16.msra.mxu0 0
    %1839 = vmatprep.subr.bf16.mxu0 0
    %1840 = vmatpush1.bf16.msra.mxu0 0
    %1841 = vmatprep.subr.bf16.mxu0 0
    %1842 = vmatpush1.bf16.msra.mxu0 0
    %1843 = vmatprep.subr.bf16.mxu0 0
    %1844 = vmatpush1.bf16.msra.mxu0 0
    %1845 = vmatprep.subr.bf16.mxu0 0
    %1846 = vmatpush1.bf16.msra.mxu0 0
    %1847 = vmatprep.subr.bf16.mxu0 0
    %1848 = vmatpush1.bf16.msra.mxu0 0
    %1849 = vmatprep.mubr.bf16.mxu0 0
    %1850 = vmatmul.mubr.bf16.gmra.mrb[0].mxu0 %v1816
    %v1851 = vpop.f32.mrb[0].mxu0
    %v1852 = vadd.f32 0.0, %v1851
    %v1853 = vpop.f32.mrb[0].mxu0
    %v1854 = vpop.f32.mrb[0].mxu0
    %v1855 = vadd.f32 0.0, %v1854
    %v1856 = vpop.f32.mrb[0].mxu0
    %1857 = vdwg.mxu0
    %vm1858 = vcmp.gt.f32.partialorder %v1726, %v1576
    %vm1859 = vcmp.gt.f32.partialorder %v1729, %v1577
    %v1860 = vsel %vm1858, %v1726, %v1576
    %v1861 = vsel %vm1859, %v1729, %v1577
    %v1862 = vsel %vm1858, %v1768, %v1578
    %v1863 = vsel %vm1859, %v1771, %v1579
    %v1864 = vsel %vm1858, %v1810, %v1580
    %v1865 = vsel %vm1859, %v1813, %v1581
    %v1866 = vsel %vm1858, %v1852, %v1582
    %v1867 = vsel %vm1859, %v1855, %v1583
    %vm1868 = vcmp.eq.s32.totalorder %v74, 6
    %vm1869 = vcmp.eq.s32.totalorder %v75, 6
    %v1870 = vsel %vm1868, 1, 0
    %v1871 = vsel %vm1869, 1, 0
    %v1872 = vcvt.s32.f32 %v1870
    %v1873 = vcvt.s32.f32 %v1871
    %v1874 = vadd.f32 %v1872, 0.0
    %v1875 = vadd.f32 %v1873, 0.0
    %v1876 = vsel %vm1868, %v86, 0.0
    %v1877 = vsel %vm1869, %v87, 0.0
    %v1878 = vadd.f32 %v1876, 0.0
    %v1879 = vadd.f32 %v1877, 0.0
    %v1880 = vsel %vm1868, %v95, 0.0
    %v1881 = vsel %vm1869, %v96, 0.0
    %v1882 = vadd.f32 %v1880, 0.0
    %v1883 = vadd.f32 %v1881, 0.0
    %v1884 = vsel %vm1868, %v104, 0.0
    %v1885 = vsel %vm1869, %v105, 0.0
    %v1886 = vadd.f32 %v1884, 0.0
    %v1887 = vadd.f32 %v1885, 0.0
    %vm1888 = vcmp.eq.s32.totalorder %v111, 6
    %vm1889 = vcmp.eq.s32.totalorder %v112, 6
    %v1890 = vsel %vm1888, 1, 0
    %v1891 = vsel %vm1889, 1, 0
    %v1892 = vcvt.s32.f32 %v1890
    %v1893 = vcvt.s32.f32 %v1891
    %v1894 = vadd.f32 %v1874, %v1892
    %v1895 = vadd.f32 %v1875, %v1893
    %v1896 = vsel %vm1888, %v123, 0.0
    %v1897 = vsel %vm1889, %v124, 0.0
    %v1898 = vadd.f32 %v1878, %v1896
    %v1899 = vadd.f32 %v1879, %v1897
    %v1900 = vsel %vm1888, %v131, 0.0
    %v1901 = vsel %vm1889, %v132, 0.0
    %v1902 = vadd.f32 %v1882, %v1900
    %v1903 = vadd.f32 %v1883, %v1901
    %v1904 = vsel %vm1888, %v139, 0.0
    %v1905 = vsel %vm1889, %v140, 0.0
    %v1906 = vadd.f32 %v1886, %v1904
    %v1907 = vadd.f32 %v1887, %v1905
    %vm1908 = vcmp.eq.s32.totalorder %v146, 6
    %vm1909 = vcmp.eq.s32.totalorder %v147, 6
    %vm1910 = vcmp.eq.s32.totalorder %v148, 6
    %v1911 = vsel %vm1908, 1, 0
    %v1912 = vsel %vm1909, 1, 0
    %v1913 = vsel %vm1910, 1, 0
    %v1914 = vcvt.s32.f32 %v1911
    %v1915 = vcvt.s32.f32 %v1912
    %v1916 = vcvt.s32.f32 %v1913
    %v1920 = vrot.slane %v1914, 1
    %v1921 = vrot.slane %v1915, 1
    %v1922 = vsel %vm161, %v1920, %v1921
    %v1923 = vrot.slane %v1916, 1
    %v1924 = vsel %vm161, %v1921, %v1923
    %v1927 = vadd.f32 %v1894, %v1922
    %v1928 = vadd.f32 %v1895, %v1924
    %v1929 = vsel %vm1908, %v86, 0.0
    %v1930 = vsel %vm1909, %v87, 0.0
    %v1931 = vsel %vm1910, %v172, 0.0
    %v1935 = vrot.slane %v1929, 1
    %v1936 = vrot.slane %v1930, 1
    %v1937 = vsel %vm161, %v1935, %v1936
    %v1938 = vrot.slane %v1931, 1
    %v1939 = vsel %vm161, %v1936, %v1938
    %v1942 = vadd.f32 %v1898, %v1937
    %v1943 = vadd.f32 %v1899, %v1939
    %v1944 = vsel %vm1908, %v95, 0.0
    %v1945 = vsel %vm1909, %v96, 0.0
    %v1946 = vsel %vm1910, %v189, 0.0
    %v1950 = vrot.slane %v1944, 1
    %v1951 = vrot.slane %v1945, 1
    %v1952 = vsel %vm161, %v1950, %v1951
    %v1953 = vrot.slane %v1946, 1
    %v1954 = vsel %vm161, %v1951, %v1953
    %v1957 = vadd.f32 %v1902, %v1952
    %v1958 = vadd.f32 %v1903, %v1954
    %v1959 = vsel %vm1908, %v104, 0.0
    %v1960 = vsel %vm1909, %v105, 0.0
    %v1961 = vsel %vm1910, %v206, 0.0
    %v1965 = vrot.slane %v1959, 1
    %v1966 = vrot.slane %v1960, 1
    %v1967 = vsel %vm161, %v1965, %v1966
    %v1968 = vrot.slane %v1961, 1
    %v1969 = vsel %vm161, %v1966, %v1968
    %v1972 = vadd.f32 %v1906, %v1967
    %v1973 = vadd.f32 %v1907, %v1969
    %v1974 = vpack.c.bf16 %v1928, %v1927
    %1975 = vmatprep.subr.bf16.mxu0 0
    %1976 = vmatpush1.bf16.msra.mxu0 %v255
    %1977 = vmatprep.subr.bf16.mxu0 0
    %1978 = vmatpush1.bf16.msra.mxu0 %v256
    %1979 = vmatprep.subr.bf16.mxu0 0
    %1980 = vmatpush1.bf16.msra.mxu0 %v257
    %1981 = vmatprep.subr.bf16.mxu0 0
    %1982 = vmatpush1.bf16.msra.mxu0 %v258
    %1983 = vmatprep.subr.bf16.mxu0 0
    %1984 = vmatpush1.bf16.msra.mxu0 %v259
    %1985 = vmatprep.subr.bf16.mxu0 0
    %1986 = vmatpush1.bf16.msra.mxu0 %v260
    %1987 = vmatprep.subr.bf16.mxu0 0
    %1988 = vmatpush1.bf16.msra.mxu0 %v261
    %1989 = vmatprep.subr.bf16.mxu0 0
    %1990 = vmatpush1.bf16.msra.mxu0 %v262
    %1991 = vmatprep.subr.bf16.mxu0 0
    %1992 = vmatpush1.bf16.msra.mxu0 0
    %1993 = vmatprep.subr.bf16.mxu0 0
    %1994 = vmatpush1.bf16.msra.mxu0 0
    %1995 = vmatprep.subr.bf16.mxu0 0
    %1996 = vmatpush1.bf16.msra.mxu0 0
    %1997 = vmatprep.subr.bf16.mxu0 0
    %1998 = vmatpush1.bf16.msra.mxu0 0
    %1999 = vmatprep.subr.bf16.mxu0 0
    %2000 = vmatpush1.bf16.msra.mxu0 0
    %2001 = vmatprep.subr.bf16.mxu0 0
    %2002 = vmatpush1.bf16.msra.mxu0 0
    %2003 = vmatprep.subr.bf16.mxu0 0
    %2004 = vmatpush1.bf16.msra.mxu0 0
    %2005 = vmatprep.subr.bf16.mxu0 0
    %2006 = vmatpush1.bf16.msra.mxu0 0
    %2007 = vmatprep.mubr.bf16.mxu0 0
    %2008 = vmatmul.mubr.bf16.gmra.mrb[0].mxu0 %v1974
    %v2009 = vpop.f32.mrb[0].mxu0
    %v2010 = vadd.f32 0.0, %v2009
    %v2011 = vpop.f32.mrb[0].mxu0
    %v2012 = vpop.f32.mrb[0].mxu0
    %v2013 = vadd.f32 0.0, %v2012
    %v2014 = vpop.f32.mrb[0].mxu0
    %2015 = vdwg.mxu0
    %v2016 = vpack.c.bf16 %v1943, %v1942
    %2017 = vmatprep.subr.bf16.mxu0 0
    %2018 = vmatpush1.bf16.msra.mxu0 %v255
    %2019 = vmatprep.subr.bf16.mxu0 0
    %2020 = vmatpush1.bf16.msra.mxu0 %v256
    %2021 = vmatprep.subr.bf16.mxu0 0
    %2022 = vmatpush1.bf16.msra.mxu0 %v257
    %2023 = vmatprep.subr.bf16.mxu0 0
    %2024 = vmatpush1.bf16.msra.mxu0 %v258
    %2025 = vmatprep.subr.bf16.mxu0 0
    %2026 = vmatpush1.bf16.msra.mxu0 %v259
    %2027 = vmatprep.subr.bf16.mxu0 0
    %2028 = vmatpush1.bf16.msra.mxu0 %v260
    %2029 = vmatprep.subr.bf16.mxu0 0
    %2030 = vmatpush1.bf16.msra.mxu0 %v261
    %2031 = vmatprep.subr.bf16.mxu0 0
    %2032 = vmatpush1.bf16.msra.mxu0 %v262
    %2033 = vmatprep.subr.bf16.mxu0 0
    %2034 = vmatpush1.bf16.msra.mxu0 0
    %2035 = vmatprep.subr.bf16.mxu0 0
    %2036 = vmatpush1.bf16.msra.mxu0 0
    %2037 = vmatprep.subr.bf16.mxu0 0
    %2038 = vmatpush1.bf16.msra.mxu0 0
    %2039 = vmatprep.subr.bf16.mxu0 0
    %2040 = vmatpush1.bf16.msra.mxu0 0
    %2041 = vmatprep.subr.bf16.mxu0 0
    %2042 = vmatpush1.bf16.msra.mxu0 0
    %2043 = vmatprep.subr.bf16.mxu0 0
    %2044 = vmatpush1.bf16.msra.mxu0 0
    %2045 = vmatprep.subr.bf16.mxu0 0
    %2046 = vmatpush1.bf16.msra.mxu0 0
    %2047 = vmatprep.subr.bf16.mxu0 0
    %2048 = vmatpush1.bf16.msra.mxu0 0
    %2049 = vmatprep.mubr.bf16.mxu0 0
    %2050 = vmatmul.mubr.bf16.gmra.mrb[0].mxu0 %v2016
    %v2051 = vpop.f32.mrb[0].mxu0
    %v2052 = vadd.f32 0.0, %v2051
    %v2053 = vpop.f32.mrb[0].mxu0
    %v2054 = vpop.f32.mrb[0].mxu0
    %v2055 = vadd.f32 0.0, %v2054
    %v2056 = vpop.f32.mrb[0].mxu0
    %2057 = vdwg.mxu0
    %v2058 = vpack.c.bf16 %v1958, %v1957
    %2059 = vmatprep.subr.bf16.mxu0 0
    %2060 = vmatpush1.bf16.msra.mxu0 %v255
    %2061 = vmatprep.subr.bf16.mxu0 0
    %2062 = vmatpush1.bf16.msra.mxu0 %v256
    %2063 = vmatprep.subr.bf16.mxu0 0
    %2064 = vmatpush1.bf16.msra.mxu0 %v257
    %2065 = vmatprep.subr.bf16.mxu0 0
    %2066 = vmatpush1.bf16.msra.mxu0 %v258
    %2067 = vmatprep.subr.bf16.mxu0 0
    %2068 = vmatpush1.bf16.msra.mxu0 %v259
    %2069 = vmatprep.subr.bf16.mxu0 0
    %2070 = vmatpush1.bf16.msra.mxu0 %v260
    %2071 = vmatprep.subr.bf16.mxu0 0
    %2072 = vmatpush1.bf16.msra.mxu0 %v261
    %2073 = vmatprep.subr.bf16.mxu0 0
    %2074 = vmatpush1.bf16.msra.mxu0 %v262
    %2075 = vmatprep.subr.bf16.mxu0 0
    %2076 = vmatpush1.bf16.msra.mxu0 0
    %2077 = vmatprep.subr.bf16.mxu0 0
    %2078 = vmatpush1.bf16.msra.mxu0 0
    %2079 = vmatprep.subr.bf16.mxu0 0
    %2080 = vmatpush1.bf16.msra.mxu0 0
    %2081 = vmatprep.subr.bf16.mxu0 0
    %2082 = vmatpush1.bf16.msra.mxu0 0
    %2083 = vmatprep.subr.bf16.mxu0 0
    %2084 = vmatpush1.bf16.msra.mxu0 0
    %2085 = vmatprep.subr.bf16.mxu0 0
    %2086 = vmatpush1.bf16.msra.mxu0 0
    %2087 = vmatprep.subr.bf16.mxu0 0
    %2088 = vmatpush1.bf16.msra.mxu0 0
    %2089 = vmatprep.subr.bf16.mxu0 0
    %2090 = vmatpush1.bf16.msra.mxu0 0
    %2091 = vmatprep.mubr.bf16.mxu0 0
    %2092 = vmatmul.mubr.bf16.gmra.mrb[0].mxu0 %v2058
    %v2093 = vpop.f32.mrb[0].mxu0
    %v2094 = vadd.f32 0.0, %v2093
    %v2095 = vpop.f32.mrb[0].mxu0
    %v2096 = vpop.f32.mrb[0].mxu0
    %v2097 = vadd.f32 0.0, %v2096
    %v2098 = vpop.f32.mrb[0].mxu0
    %2099 = vdwg.mxu0
    %v2100 = vpack.c.bf16 %v1973, %v1972
    %2101 = vmatprep.subr.bf16.mxu0 0
    %2102 = vmatpush1.bf16.msra.mxu0 %v255
    %2103 = vmatprep.subr.bf16.mxu0 0
    %2104 = vmatpush1.bf16.msra.mxu0 %v256
    %2105 = vmatprep.subr.bf16.mxu0 0
    %2106 = vmatpush1.bf16.msra.mxu0 %v257
    %2107 = vmatprep.subr.bf16.mxu0 0
    %2108 = vmatpush1.bf16.msra.mxu0 %v258
    %2109 = vmatprep.subr.bf16.mxu0 0
    %2110 = vmatpush1.bf16.msra.mxu0 %v259
    %2111 = vmatprep.subr.bf16.mxu0 0
    %2112 = vmatpush1.bf16.msra.mxu0 %v260
    %2113 = vmatprep.subr.bf16.mxu0 0
    %2114 = vmatpush1.bf16.msra.mxu0 %v261
    %2115 = vmatprep.subr.bf16.mxu0 0
    %2116 = vmatpush1.bf16.msra.mxu0 %v262
    %2117 = vmatprep.subr.bf16.mxu0 0
    %2118 = vmatpush1.bf16.msra.mxu0 0
    %2119 = vmatprep.subr.bf16.mxu0 0
    %2120 = vmatpush1.bf16.msra.mxu0 0
    %2121 = vmatprep.subr.bf16.mxu0 0
    %2122 = vmatpush1.bf16.msra.mxu0 0
    %2123 = vmatprep.subr.bf16.mxu0 0
    %2124 = vmatpush1.bf16.msra.mxu0 0
    %2125 = vmatprep.subr.bf16.mxu0 0
    %2126 = vmatpush1.bf16.msra.mxu0 0
    %2127 = vmatprep.subr.bf16.mxu0 0
    %2128 = vmatpush1.bf16.msra.mxu0 0
    %2129 = vmatprep.subr.bf16.mxu0 0
    %2130 = vmatpush1.bf16.msra.mxu0 0
    %2131 = vmatprep.subr.bf16.mxu0 0
    %2132 = vmatpush1.bf16.msra.mxu0 0
    %2133 = vmatprep.mubr.bf16.mxu0 0
    %2134 = vmatmul.mubr.bf16.gmra.mrb[0].mxu0 %v2100
    %v2135 = vpop.f32.mrb[0].mxu0
    %v2136 = vadd.f32 0.0, %v2135
    %v2137 = vpop.f32.mrb[0].mxu0
    %v2138 = vpop.f32.mrb[0].mxu0
    %v2139 = vadd.f32 0.0, %v2138
    %v2140 = vpop.f32.mrb[0].mxu0
    %2141 = vdwg.mxu0
    %vm2142 = vcmp.gt.f32.partialorder %v2010, %v1860
    %vm2143 = vcmp.gt.f32.partialorder %v2013, %v1861
    %v2144 = vsel %vm2142, %v2010, %v1860
    %v2145 = vsel %vm2143, %v2013, %v1861
    %v2146 = vsel %vm2142, %v2052, %v1862
    %v2147 = vsel %vm2143, %v2055, %v1863
    %v2148 = vsel %vm2142, %v2094, %v1864
    %v2149 = vsel %vm2143, %v2097, %v1865
    %v2150 = vsel %vm2142, %v2136, %v1866
    %v2151 = vsel %vm2143, %v2139, %v1867
    %vm2152 = vcmp.eq.s32.totalorder %v74, 7
    %vm2153 = vcmp.eq.s32.totalorder %v75, 7
    %v2154 = vsel %vm2152, 1, 0
    %v2155 = vsel %vm2153, 1, 0
    %v2156 = vcvt.s32.f32 %v2154
    %v2157 = vcvt.s32.f32 %v2155
    %v2158 = vadd.f32 %v2156, 0.0
    %v2159 = vadd.f32 %v2157, 0.0
    %v2160 = vsel %vm2152, %v86, 0.0
    %v2161 = vsel %vm2153, %v87, 0.0
    %v2162 = vadd.f32 %v2160, 0.0
    %v2163 = vadd.f32 %v2161, 0.0
    %v2164 = vsel %vm2152, %v95, 0.0
    %v2165 = vsel %vm2153, %v96, 0.0
    %v2166 = vadd.f32 %v2164, 0.0
    %v2167 = vadd.f32 %v2165, 0.0
    %v2168 = vsel %vm2152, %v104, 0.0
    %v2169 = vsel %vm2153, %v105, 0.0
    %v2170 = vadd.f32 %v2168, 0.0
    %v2171 = vadd.f32 %v2169, 0.0
    %vm2172 = vcmp.eq.s32.totalorder %v111, 7
    %vm2173 = vcmp.eq.s32.totalorder %v112, 7
    %v2174 = vsel %vm2172, 1, 0
    %v2175 = vsel %vm2173, 1, 0
    %v2176 = vcvt.s32.f32 %v2174
    %v2177 = vcvt.s32.f32 %v2175
    %v2178 = vadd.f32 %v2158, %v2176
    %v2179 = vadd.f32 %v2159, %v2177
    %v2180 = vsel %vm2172, %v123, 0.0
    %v2181 = vsel %vm2173, %v124, 0.0
    %v2182 = vadd.f32 %v2162, %v2180
    %v2183 = vadd.f32 %v2163, %v2181
    %v2184 = vsel %vm2172, %v131, 0.0
    %v2185 = vsel %vm2173, %v132, 0.0
    %v2186 = vadd.f32 %v2166, %v2184
    %v2187 = vadd.f32 %v2167, %v2185
    %v2188 = vsel %vm2172, %v139, 0.0
    %v2189 = vsel %vm2173, %v140, 0.0
    %v2190 = vadd.f32 %v2170, %v2188
    %v2191 = vadd.f32 %v2171, %v2189
    %vm2192 = vcmp.eq.s32.totalorder %v146, 7
    %vm2193 = vcmp.eq.s32.totalorder %v147, 7
    %vm2194 = vcmp.eq.s32.totalorder %v148, 7
    %v2195 = vsel %vm2192, 1, 0
    %v2196 = vsel %vm2193, 1, 0
    %v2197 = vsel %vm2194, 1, 0
    %v2198 = vcvt.s32.f32 %v2195
    %v2199 = vcvt.s32.f32 %v2196
    %v2200 = vcvt.s32.f32 %v2197
    %v2204 = vrot.slane %v2198, 1
    %v2205 = vrot.slane %v2199, 1
    %v2206 = vsel %vm161, %v2204, %v2205
    %v2207 = vrot.slane %v2200, 1
    %v2208 = vsel %vm161, %v2205, %v2207
    %v2211 = vadd.f32 %v2178, %v2206
    %v2212 = vadd.f32 %v2179, %v2208
    %v2213 = vsel %vm2192, %v86, 0.0
    %v2214 = vsel %vm2193, %v87, 0.0
    %v2215 = vsel %vm2194, %v172, 0.0
    %v2219 = vrot.slane %v2213, 1
    %v2220 = vrot.slane %v2214, 1
    %v2221 = vsel %vm161, %v2219, %v2220
    %v2222 = vrot.slane %v2215, 1
    %v2223 = vsel %vm161, %v2220, %v2222
    %v2226 = vadd.f32 %v2182, %v2221
    %v2227 = vadd.f32 %v2183, %v2223
    %v2228 = vsel %vm2192, %v95, 0.0
    %v2229 = vsel %vm2193, %v96, 0.0
    %v2230 = vsel %vm2194, %v189, 0.0
    %v2234 = vrot.slane %v2228, 1
    %v2235 = vrot.slane %v2229, 1
    %v2236 = vsel %vm161, %v2234, %v2235
    %v2237 = vrot.slane %v2230, 1
    %v2238 = vsel %vm161, %v2235, %v2237
    %v2241 = vadd.f32 %v2186, %v2236
    %v2242 = vadd.f32 %v2187, %v2238
    %v2243 = vsel %vm2192, %v104, 0.0
    %v2244 = vsel %vm2193, %v105, 0.0
    %v2245 = vsel %vm2194, %v206, 0.0
    %v2249 = vrot.slane %v2243, 1
    %v2250 = vrot.slane %v2244, 1
    %v2251 = vsel %vm161, %v2249, %v2250
    %v2252 = vrot.slane %v2245, 1
    %v2253 = vsel %vm161, %v2250, %v2252
    %v2256 = vadd.f32 %v2190, %v2251
    %v2257 = vadd.f32 %v2191, %v2253
    %v2258 = vpack.c.bf16 %v2212, %v2211
    %2259 = vmatprep.subr.bf16.mxu0 0
    %2260 = vmatpush1.bf16.msra.mxu0 %v255
    %2261 = vmatprep.subr.bf16.mxu0 0
    %2262 = vmatpush1.bf16.msra.mxu0 %v256
    %2263 = vmatprep.subr.bf16.mxu0 0
    %2264 = vmatpush1.bf16.msra.mxu0 %v257
    %2265 = vmatprep.subr.bf16.mxu0 0
    %2266 = vmatpush1.bf16.msra.mxu0 %v258
    %2267 = vmatprep.subr.bf16.mxu0 0
    %2268 = vmatpush1.bf16.msra.mxu0 %v259
    %2269 = vmatprep.subr.bf16.mxu0 0
    %2270 = vmatpush1.bf16.msra.mxu0 %v260
    %2271 = vmatprep.subr.bf16.mxu0 0
    %2272 = vmatpush1.bf16.msra.mxu0 %v261
    %2273 = vmatprep.subr.bf16.mxu0 0
    %2274 = vmatpush1.bf16.msra.mxu0 %v262
    %2275 = vmatprep.subr.bf16.mxu0 0
    %2276 = vmatpush1.bf16.msra.mxu0 0
    %2277 = vmatprep.subr.bf16.mxu0 0
    %2278 = vmatpush1.bf16.msra.mxu0 0
    %2279 = vmatprep.subr.bf16.mxu0 0
    %2280 = vmatpush1.bf16.msra.mxu0 0
    %2281 = vmatprep.subr.bf16.mxu0 0
    %2282 = vmatpush1.bf16.msra.mxu0 0
    %2283 = vmatprep.subr.bf16.mxu0 0
    %2284 = vmatpush1.bf16.msra.mxu0 0
    %2285 = vmatprep.subr.bf16.mxu0 0
    %2286 = vmatpush1.bf16.msra.mxu0 0
    %2287 = vmatprep.subr.bf16.mxu0 0
    %2288 = vmatpush1.bf16.msra.mxu0 0
    %2289 = vmatprep.subr.bf16.mxu0 0
    %2290 = vmatpush1.bf16.msra.mxu0 0
    %2291 = vmatprep.mubr.bf16.mxu0 0
    %2292 = vmatmul.mubr.bf16.gmra.mrb[0].mxu0 %v2258
    %v2293 = vpop.f32.mrb[0].mxu0
    %v2294 = vadd.f32 0.0, %v2293
    %v2295 = vpop.f32.mrb[0].mxu0
    %v2296 = vpop.f32.mrb[0].mxu0
    %v2297 = vadd.f32 0.0, %v2296
    %v2298 = vpop.f32.mrb[0].mxu0
    %2299 = vdwg.mxu0
    %v2300 = vpack.c.bf16 %v2227, %v2226
    %2301 = vmatprep.subr.bf16.mxu0 0
    %2302 = vmatpush1.bf16.msra.mxu0 %v255
    %2303 = vmatprep.subr.bf16.mxu0 0
    %2304 = vmatpush1.bf16.msra.mxu0 %v256
    %2305 = vmatprep.subr.bf16.mxu0 0
    %2306 = vmatpush1.bf16.msra.mxu0 %v257
    %2307 = vmatprep.subr.bf16.mxu0 0
    %2308 = vmatpush1.bf16.msra.mxu0 %v258
    %2309 = vmatprep.subr.bf16.mxu0 0
    %2310 = vmatpush1.bf16.msra.mxu0 %v259
    %2311 = vmatprep.subr.bf16.mxu0 0
    %2312 = vmatpush1.bf16.msra.mxu0 %v260
    %2313 = vmatprep.subr.bf16.mxu0 0
    %2314 = vmatpush1.bf16.msra.mxu0 %v261
    %2315 = vmatprep.subr.bf16.mxu0 0
    %2316 = vmatpush1.bf16.msra.mxu0 %v262
    %2317 = vmatprep.subr.bf16.mxu0 0
    %2318 = vmatpush1.bf16.msra.mxu0 0
    %2319 = vmatprep.subr.bf16.mxu0 0
    %2320 = vmatpush1.bf16.msra.mxu0 0
    %2321 = vmatprep.subr.bf16.mxu0 0
    %2322 = vmatpush1.bf16.msra.mxu0 0
    %2323 = vmatprep.subr.bf16.mxu0 0
    %2324 = vmatpush1.bf16.msra.mxu0 0
    %2325 = vmatprep.subr.bf16.mxu0 0
    %2326 = vmatpush1.bf16.msra.mxu0 0
    %2327 = vmatprep.subr.bf16.mxu0 0
    %2328 = vmatpush1.bf16.msra.mxu0 0
    %2329 = vmatprep.subr.bf16.mxu0 0
    %2330 = vmatpush1.bf16.msra.mxu0 0
    %2331 = vmatprep.subr.bf16.mxu0 0
    %2332 = vmatpush1.bf16.msra.mxu0 0
    %2333 = vmatprep.mubr.bf16.mxu0 0
    %2334 = vmatmul.mubr.bf16.gmra.mrb[0].mxu0 %v2300
    %v2335 = vpop.f32.mrb[0].mxu0
    %v2336 = vadd.f32 0.0, %v2335
    %v2337 = vpop.f32.mrb[0].mxu0
    %v2338 = vpop.f32.mrb[0].mxu0
    %v2339 = vadd.f32 0.0, %v2338
    %v2340 = vpop.f32.mrb[0].mxu0
    %2341 = vdwg.mxu0
    %v2342 = vpack.c.bf16 %v2242, %v2241
    %2343 = vmatprep.subr.bf16.mxu0 0
    %2344 = vmatpush1.bf16.msra.mxu0 %v255
    %2345 = vmatprep.subr.bf16.mxu0 0
    %2346 = vmatpush1.bf16.msra.mxu0 %v256
    %2347 = vmatprep.subr.bf16.mxu0 0
    %2348 = vmatpush1.bf16.msra.mxu0 %v257
    %2349 = vmatprep.subr.bf16.mxu0 0
    %2350 = vmatpush1.bf16.msra.mxu0 %v258
    %2351 = vmatprep.subr.bf16.mxu0 0
    %2352 = vmatpush1.bf16.msra.mxu0 %v259
    %2353 = vmatprep.subr.bf16.mxu0 0
    %2354 = vmatpush1.bf16.msra.mxu0 %v260
    %2355 = vmatprep.subr.bf16.mxu0 0
    %2356 = vmatpush1.bf16.msra.mxu0 %v261
    %2357 = vmatprep.subr.bf16.mxu0 0
    %2358 = vmatpush1.bf16.msra.mxu0 %v262
    %2359 = vmatprep.subr.bf16.mxu0 0
    %2360 = vmatpush1.bf16.msra.mxu0 0
    %2361 = vmatprep.subr.bf16.mxu0 0
    %2362 = vmatpush1.bf16.msra.mxu0 0
    %2363 = vmatprep.subr.bf16.mxu0 0
    %2364 = vmatpush1.bf16.msra.mxu0 0
    %2365 = vmatprep.subr.bf16.mxu0 0
    %2366 = vmatpush1.bf16.msra.mxu0 0
    %2367 = vmatprep.subr.bf16.mxu0 0
    %2368 = vmatpush1.bf16.msra.mxu0 0
    %2369 = vmatprep.subr.bf16.mxu0 0
    %2370 = vmatpush1.bf16.msra.mxu0 0
    %2371 = vmatprep.subr.bf16.mxu0 0
    %2372 = vmatpush1.bf16.msra.mxu0 0
    %2373 = vmatprep.subr.bf16.mxu0 0
    %2374 = vmatpush1.bf16.msra.mxu0 0
    %2375 = vmatprep.mubr.bf16.mxu0 0
    %2376 = vmatmul.mubr.bf16.gmra.mrb[0].mxu0 %v2342
    %v2377 = vpop.f32.mrb[0].mxu0
    %v2378 = vadd.f32 0.0, %v2377
    %v2379 = vpop.f32.mrb[0].mxu0
    %v2380 = vpop.f32.mrb[0].mxu0
    %v2381 = vadd.f32 0.0, %v2380
    %v2382 = vpop.f32.mrb[0].mxu0
    %2383 = vdwg.mxu0
    %v2384 = vpack.c.bf16 %v2257, %v2256
    %2385 = vmatprep.subr.bf16.mxu0 0
    %2386 = vmatpush1.bf16.msra.mxu0 %v255
    %2387 = vmatprep.subr.bf16.mxu0 0
    %2388 = vmatpush1.bf16.msra.mxu0 %v256
    %2389 = vmatprep.subr.bf16.mxu0 0
    %2390 = vmatpush1.bf16.msra.mxu0 %v257
    %2391 = vmatprep.subr.bf16.mxu0 0
    %2392 = vmatpush1.bf16.msra.mxu0 %v258
    %2393 = vmatprep.subr.bf16.mxu0 0
    %2394 = vmatpush1.bf16.msra.mxu0 %v259
    %2395 = vmatprep.subr.bf16.mxu0 0
    %2396 = vmatpush1.bf16.msra.mxu0 %v260
    %2397 = vmatprep.subr.bf16.mxu0 0
    %2398 = vmatpush1.bf16.msra.mxu0 %v261
    %2399 = vmatprep.subr.bf16.mxu0 0
    %2400 = vmatpush1.bf16.msra.mxu0 %v262
    %2401 = vmatprep.subr.bf16.mxu0 0
    %2402 = vmatpush1.bf16.msra.mxu0 0
    %2403 = vmatprep.subr.bf16.mxu0 0
    %2404 = vmatpush1.bf16.msra.mxu0 0
    %2405 = vmatprep.subr.bf16.mxu0 0
    %2406 = vmatpush1.bf16.msra.mxu0 0
    %2407 = vmatprep.subr.bf16.mxu0 0
    %2408 = vmatpush1.bf16.msra.mxu0 0
    %2409 = vmatprep.subr.bf16.mxu0 0
    %2410 = vmatpush1.bf16.msra.mxu0 0
    %2411 = vmatprep.subr.bf16.mxu0 0
    %2412 = vmatpush1.bf16.msra.mxu0 0
    %2413 = vmatprep.subr.bf16.mxu0 0
    %2414 = vmatpush1.bf16.msra.mxu0 0
    %2415 = vmatprep.subr.bf16.mxu0 0
    %2416 = vmatpush1.bf16.msra.mxu0 0
    %2417 = vmatprep.mubr.bf16.mxu0 0
    %2418 = vmatmul.mubr.bf16.gmra.mrb[0].mxu0 %v2384
    %v2419 = vpop.f32.mrb[0].mxu0
    %v2420 = vadd.f32 0.0, %v2419
    %v2421 = vpop.f32.mrb[0].mxu0
    %v2422 = vpop.f32.mrb[0].mxu0
    %v2423 = vadd.f32 0.0, %v2422
    %v2424 = vpop.f32.mrb[0].mxu0
    %2425 = vdwg.mxu0
    %vm2426 = vcmp.gt.f32.partialorder %v2294, %v2144
    %vm2427 = vcmp.gt.f32.partialorder %v2297, %v2145
    %v2428 = vsel %vm2426, %v2294, %v2144
    %v2429 = vsel %vm2427, %v2297, %v2145
    %v2430 = vsel %vm2426, %v2336, %v2146
    %v2431 = vsel %vm2427, %v2339, %v2147
    %v2432 = vsel %vm2426, %v2378, %v2148
    %v2433 = vsel %vm2427, %v2381, %v2149
    %v2434 = vsel %vm2426, %v2420, %v2150
    %v2435 = vsel %vm2427, %v2423, %v2151
    %v2436 = vmax.f32 %v2428, 1.0
    %v2437 = vmax.f32 %v2429, 1.0
    %v2438 = vrcp.pop %v2436
    %v2439 = vrcp.pop %v2437
    %v2440 = vmul.f32 %v2430, %v2438
    %v2441 = vmul.f32 %v2431, %v2439
    %v2442 = vpack.c.bf16 %v2441, %v2440
    %v2444 = vunpack.c.l.b16 %v2442
    %v2445 = vunpack.c.h.b16 %v2442
    %v2446 = vpack.c.b16 %v2444, %v2444
    %v2447 = vpack.c.b16 %v2445, %v2445
    %2450 = vst [vmem:[#allocation8] sm:$0xf] %v2446
    %2451 = vst [vmem:[#allocation8 + $0x4] sm:$0xf] %v2447
    %v2452 = vmul.f32 %v2432, %v2438
    %v2453 = vmul.f32 %v2433, %v2439
    %v2454 = vpack.c.bf16 %v2453, %v2452
    %v2456 = vunpack.c.l.b16 %v2454
    %v2457 = vunpack.c.h.b16 %v2454
    %v2458 = vpack.c.b16 %v2456, %v2456
    %v2459 = vpack.c.b16 %v2457, %v2457
    %s2462 = scalar_lea.vmem [#allocation8], 8
    %2463 = vst [vmem:[%s2462] sm:$0xf] %v2458
    %2464 = vst [vmem:[%s2462 + $0x4] sm:$0xf] %v2459
    %v2465 = vmul.f32 %v2434, %v2438
    %v2466 = vmul.f32 %v2435, %v2439
    %v2467 = vpack.c.bf16 %v2466, %v2465
    %v2469 = vunpack.c.l.b16 %v2467
    %v2470 = vunpack.c.h.b16 %v2467
    %v2471 = vpack.c.b16 %v2469, %v2469
    %v2472 = vpack.c.b16 %v2470, %v2470
    %s2475 = scalar_lea.vmem [#allocation8], 16
    %2476 = vst [vmem:[%s2475] sm:$0xf] %v2471
    %2477 = vst [vmem:[%s2475 + $0x4] sm:$0xf] %v2472
    // Predicated region
    $region26: #{tpu_custom_call.1} parent=1 // pred_check
      _
    $region27: #{tpu_custom_call.1} parent=1 // pred_check_branch
      %2479 = sbr.rel (0) target = $region29
    $region28: #{tpu_custom_call.1} parent=1 // pred_region
      %s2481 = ssub.s32 384, 384
      %2482 = vsyncadd [#allocation4], %s2481
      %s2483 = sshll.u32 [#allocation8], 4
      %s2484 = int_to_ptr.vmem [resolvable:$true] %s2483
      %2489 = dma.vmem_to_hbm [thread:$0]  %s2484, 384, %s3, [#allocation4], 64, 64, 4
    $region29: #{tpu_custom_call.1} parent=1 // pred_fallthru
      _
    // Predicated region
    $region30: #{tpu_custom_call.1} parent=1 // pred_check
      _
    $region31: #{tpu_custom_call.1} parent=1 // pred_check_branch
      %2491 = sbr.rel (0) target = $region33
    $region32: #{tpu_custom_call.1} parent=1 // pred_region
      %2492 = dma.done [#allocation4], 384
    $region33: #{tpu_custom_call.1} parent=1 // pred_fallthru
      _
    %2493 = vsyncpa [#allocation3], 1
    %2494 = vsyncpa [#allocation6], 1
    %2495 = vsyncpa [#allocation4], 1

</llo_original>
